<compile_context>
chip_gen: v7x
topology: tpu7x:2x2x1
jax: 0.10.0
libtpu: 0.0.40
codegen_flags: <defaults>
</compile_context>

<pallas_src>
from typing import NamedTuple

import jax
import jax.numpy as jnp
from jax.experimental import pallas as pl
from jax.experimental.pallas import tpu as pltpu

_K = 5          # conv kernel size
_PAD_OFF = 8    # sublane-aligned offset of the activation inside the padded scratch


def _r8(n):
    return ((n + 7) // 8) * 8


def _r128(n):
    return max(128, ((n + 127) // 128) * 128)


class Dims(NamedTuple):
    num_classes: int
    audio_dim: int
    video_dim: int
    d_hid: int
    n_filters: int


def _layout(d: Dims):
    """Static row/col offsets of every tensor inside the packed weight slabs."""
    F1, F2, F3 = d.n_filters, 2 * d.n_filters, 4 * d.n_filters
    H, C = d.d_hid, d.num_classes
    L = {}
    # conv weight slab (row-stacked im2col weights, col width = F3)
    L["co1"] = 0
    L["co2"] = _r8(5 * d.audio_dim)
    L["co3"] = L["co2"] + _r8(5 * F1)
    L["conv_rows"] = L["co3"] + _r8(5 * F2)
    L["conv_cols"] = F3
    # GRU weight slab (col width = 6H): wih_a, wih_v, block-diag whh_cat, whh_a, whh_v
    L["g_wa"] = 0
    L["g_wv"] = _r8(F3)
    L["g_cat"] = L["g_wv"] + _r8(d.video_dim)
    L["g_ha"] = L["g_cat"] + _r8(2 * H)
    L["g_hv"] = L["g_ha"] + _r8(H)
    L["gru_rows"] = L["g_hv"] + _r8(H)
    L["gru_cols"] = 6 * H
    # classifier slab
    L["l_w2"] = _r8(2 * H)
    L["cls_rows"] = L["l_w2"] + _r8(64)
    L["cls_cols"] = max(64, C)
    # f32 bias slab (8 rows x bias_cols lanes)
    L["bias_cols"] = _r128(max(F1 + F2 + F3, 3 * H, 2 * H, 64, C))
    return L


# ----------------------------------------------------------------------------
# Parameter construction (deterministic, synthetic) and host-side packing
# ----------------------------------------------------------------------------
def init_params(key, dims: Dims):
    d = dims
    F1, F2, F3 = d.n_filters, 2 * d.n_filters, 4 * d.n_filters
    H, C = d.d_hid, d.num_classes
    ks = iter(jax.random.split(key, 24))

    def rnd(shape, scale=0.1):
        return jax.random.normal(next(ks), shape, jnp.float32) * scale

    def conv_w(cin, cout):
        # torch Conv1d weight (Cout,Cin,5) -> (5,Cin,Cout) -> im2col reshape (5*Cin, Cout).
        return rnd((_K, cin, cout)).reshape(_K * cin, cout)

    def gru(din, h):
        wih = rnd((din, 3 * h))        # torch weight_ih_l0.T, gate order [r|z|n]
        whh = rnd((h, 3 * h))          # torch weight_hh_l0.T
        bih = rnd((3 * h,), 0.01)
        bhh = rnd((3 * h,), 0.01)
        # fold b_ih+b_hh for r,z and b_in into the hoisted input projection;
        # b_hn stays on the h-side (it is gated by r).
        bi = jnp.concatenate([bih[:2 * h] + bhh[:2 * h], bih[2 * h:]], axis=0)
        return wih, whh, bi, bhh[2 * h:]

    p = {}
    p["conv1_w"], p["conv1_b"] = conv_w(d.audio_dim, F1), rnd((F1,), 0.01)
    p["conv2_w"], p["conv2_b"] = conv_w(F1, F2), rnd((F2,), 0.01)
    p["conv3_w"], p["conv3_b"] = conv_w(F2, F3), rnd((F3,), 0.01)
    p["a_wih"], p["a_whh"], p["a_bi"], p["a_bhn"] = gru(F3, H)
    p["v_wih"], p["v_whh"], p["v_bi"], p["v_bhn"] = gru(d.video_dim, H)
    p["cls_w1"], p["cls_b1"] = rnd((2 * H, 64)), rnd((64,), 0.01)
    p["cls_w2"], p["cls_b2"] = rnd((64, C)), rnd((C,), 0.01)
    return p


def _block_diag_gates(whh_a, whh_v, H):
    """(H,3H),(H,3H) -> (2H,6H) block-diagonal, gate-major cols [r_a|r_v|z_a|z_v|n_a|n_v]."""
    z = jnp.zeros((H, H), jnp.float32)
    blocks = []
    for g in range(3):
        a_g = whh_a[:, g * H:(g + 1) * H]
        v_g = whh_v[:, g * H:(g + 1) * H]
        blocks.append(jnp.concatenate(
            [jnp.concatenate([a_g, z], axis=1),
             jnp.concatenate([z, v_g], axis=1)], axis=0))
    return jnp.concatenate(blocks, axis=1)


def pack_params(p, dims: Dims):
    """One-time host-side packing: 20 weight/bias tensors -> 3 bf16 slabs + 1 f32 bias slab."""
    d = dims
    F1, F2, F3 = d.n_filters, 2 * d.n_filters, 4 * d.n_filters
    H, C = d.d_hid, d.num_classes
    L = _layout(d)

    conv_w = jnp.zeros((L["conv_rows"], L["conv_cols"]), jnp.float32)
    conv_w = conv_w.at[L["co1"]:L["co1"] + 5 * d.audio_dim, :F1].set(p["conv1_w"])
    conv_w = conv_w.at[L["co2"]:L["co2"] + 5 * F1, :F2].set(p["conv2_w"])
    conv_w = conv_w.at[L["co3"]:L["co3"] + 5 * F2, :F3].set(p["conv3_w"])

    gru_w = jnp.zeros((L["gru_rows"], L["gru_cols"]), jnp.float32)
    gru_w = gru_w.at[L["g_wa"]:L["g_wa"] + F3, :3 * H].set(p["a_wih"])
    gru_w = gru_w.at[L["g_wv"]:L["g_wv"] + d.video_dim, :3 * H].set(p["v_wih"])
    gru_w = gru_w.at[L["g_cat"]:L["g_cat"] + 2 * H, :6 * H].set(
        _block_diag_gates(p["a_whh"], p["v_whh"], H))
    gru_w = gru_w.at[L["g_ha"]:L["g_ha"] + H, :3 * H].set(p["a_whh"])
    gru_w = gru_w.at[L["g_hv"]:L["g_hv"] + H, :3 * H].set(p["v_whh"])

    cls_w = jnp.zeros((L["cls_rows"], L["cls_cols"]), jnp.float32)
    cls_w = cls_w.at[0:2 * H, 0:64].set(p["cls_w1"])
    cls_w = cls_w.at[L["l_w2"]:L["l_w2"] + 64, 0:C].set(p["cls_w2"])

    bias = jnp.zeros((8, L["bias_cols"]), jnp.float32)
    bias = bias.at[0, 0:F1].set(p["conv1_b"])
    bias = bias.at[0, F1:F1 + F2].set(p["conv2_b"])
    bias = bias.at[0, F1 + F2:F1 + F2 + F3].set(p["conv3_b"])
    bias = bias.at[1, 0:3 * H].set(p["a_bi"])
    bias = bias.at[2, 0:3 * H].set(p["v_bi"])
    bias = bias.at[3, 0:H].set(p["a_bhn"])
    bias = bias.at[3, H:2 * H].set(p["v_bhn"])
    bias = bias.at[4, 0:64].set(p["cls_b1"])
    bias = bias.at[5, 0:C].set(p["cls_b2"])

    return {
        "conv_w": conv_w.astype(jnp.bfloat16),   # MXU operands stored bf16 host-side
        "gru_w": gru_w.astype(jnp.bfloat16),
        "cls_w": cls_w.astype(jnp.bfloat16),
        "bias": bias,                            # biases stay f32 (added to f32 accumulators)
    }


# ----------------------------------------------------------------------------
# Fused forward kernel (factory closes over all static dims / slab offsets)
# ----------------------------------------------------------------------------
def make_forward(dims: Dims):
    d = dims
    F1, F2, F3 = d.n_filters, 2 * d.n_filters, 4 * d.n_filters
    H, C = d.d_hid, d.num_classes
    L = _layout(d)

    def forward(packed, x_audio, x_video):
        B, Ta, Da = x_audio.shape
        Bv, Tv, Dv = x_video.shape
        assert B == Bv and Da == d.audio_dim and Dv == d.video_dim
        assert Ta % 8 == 0, "audio length must be divisible by 8 (three maxpool(2) stages)"
        Ta2 = Ta // 8                 # audio GRU steps after the conv stack
        Ts = min(Ta2, Tv)             # steps where both recurrences run fused

        def kernel(xa_ref, xv_ref, cw_ref, gw_ref, lw_ref, b_ref,
                   preds_ref, xmm_ref, pad1_ref, pad2_ref, pad3_ref):
            bias = b_ref[...]                                   # (8, bias_cols) f32

            # ---- Conv1d(k=5,p=2) + ReLU + MaxPool(2) as ONE im2col matmul per stage ----
            def conv_relu_pool(x, w, cb, pad_ref):
                Bx, T, Cin = x.shape
                Cout = w.shape[1]
                # zero only the halo rows; the activation is stored at aligned offset 8
                zhalo = jnp.zeros((Bx, _PAD_OFF, Cin), jnp.float32)
                pad_ref[:, 0:_PAD_OFF, :] = zhalo
                pad_ref[:, _PAD_OFF + T:_PAD_OFF + T + _PAD_OFF, :] = zhalo
                pad_ref[:, _PAD_OFF:_PAD_OFF + T, :] = x
                xp = pad_ref[...]
                base = _PAD_OFF - _K // 2
                cols = jnp.concatenate(
                    [xp[:, base + k:base + k + T, :] for k in range(_K)], axis=2)
                y = jnp.dot(cols.reshape(Bx * T, _K * Cin).astype(jnp.bfloat16), w,
                            preferred_element_type=jnp.float32) + cb
                y = jnp.maximum(y, 0.0).reshape(Bx, T, Cout)      # ReLU
                return jnp.max(y.reshape(Bx, T // 2, 2, Cout), axis=2)   # MaxPool1d(2,2)

            cw = cw_ref[...]
            a = conv_relu_pool(xa_ref[...],
                               cw[L["co1"]:L["co1"] + 5 * Da, 0:F1],
                               bias[0:1, 0:F1], pad1_ref)
            a = conv_relu_pool(a,
                               cw[L["co2"]:L["co2"] + 5 * F1, 0:F2],
                               bias[0:1, F1:F1 + F2], pad2_ref)
            a = conv_relu_pool(a,
                               cw[L["co3"]:L["co3"] + 5 * F2, 0:F3],
                               bias[0:1, F1 + F2:F1 + F2 + F3], pad3_ref)
            # a: (B, Ta2, F3)

            # ---- GRU weights / biases (static slices of the packed slabs) ----
            gw = gw_ref[...]
            wih_a = gw[L["g_wa"]:L["g_wa"] + F3, 0:3 * H]
            wih_v = gw[L["g_wv"]:L["g_wv"] + Dv, 0:3 * H]
            whh_cat = gw[L["g_cat"]:L["g_cat"] + 2 * H, 0:6 * H]   # block-diag fused hidden W
            whh_a = gw[L["g_ha"]:L["g_ha"] + H, 0:3 * H]
            whh_v = gw[L["g_hv"]:L["g_hv"] + H, 0:3 * H]
            a_bi = bias[1:2, 0:3 * H]
            v_bi = bias[2:3, 0:3 * H]
            bhn_cat = bias[3:4, 0:2 * H]
            a_bhn = bias[3:4, 0:H]
            v_bhn = bias[3:4, H:2 * H]

            # hoisted input-to-hidden projections: one big MXU matmul per modality
            def hoisted_proj(x, wih, bi):
                Bx, T, Din = x.shape
                gi = jnp.dot(x.reshape(Bx * T, Din).astype(jnp.bfloat16), wih,
                             preferred_element_type=jnp.float32) + bi
                return gi.reshape(Bx, T, 3 * H)

            gi_a = hoisted_proj(a, wih_a, a_bi)                    # (B, Ta2, 3H)
            gi_v = hoisted_proj(xv_ref[...], wih_v, v_bi)          # (B, Tv,  3H)

            # interleave the hoisted projections gate-major: [r_a|r_v|z_a|z_v|n_a|n_v]
            # (off the serial h-chain; built once for all shared steps)
            gi_cat = jnp.concatenate(
                [gi_a[:, :Ts, 0:H], gi_v[:, :Ts, 0:H],
                 gi_a[:, :Ts, H:2 * H], gi_v[:, :Ts, H:2 * H],
                 gi_a[:, :Ts, 2 * H:3 * H], gi_v[:, :Ts, 2 * H:3 * H]], axis=2)

            def gru_step(h, gi_t, whh, bhn):
                # one fused h @ W_h[r|z|n] MXU push, one sigmoid on the r|z slab, one tanh
                GH = h.shape[1]
                gh = jnp.dot(h.astype(jnp.bfloat16), whh,
                             preferred_element_type=jnp.float32)
                rz = jax.nn.sigmoid(gi_t[:, 0:2 * GH] + gh[:, 0:2 * GH])
                r, z = rz[:, 0:GH], rz[:, GH:2 * GH]
                n = jnp.tanh(gi_t[:, 2 * GH:3 * GH] + r * (gh[:, 2 * GH:3 * GH] + bhn))
                return (1.0 - z) * n + z * h

            # fused audio+video recurrence for the overlapping timesteps (unrolled, Ts small)
            h_cat = jnp.zeros((B, 2 * H), jnp.float32)
            acc_cat = jnp.zeros((B, 2 * H), jnp.float32)
            for t in range(Ts):
                h_cat = gru_step(h_cat, gi_cat[:, t, :], whh_cat, bhn_cat)
                acc_cat = acc_cat + h_cat

            h_a, h_v = h_cat[:, 0:H], h_cat[:, H:2 * H]
            acc_a, acc_v = acc_cat[:, 0:H], acc_cat[:, H:2 * H]

            for t in range(Ts, Ta2):                 # audio-only tail (empty if Ta2 <= Tv)
                h_a = gru_step(h_a, gi_a[:, t, :], whh_a, a_bhn)
                acc_a = acc_a + h_a
            for t in range(Ts, Tv):                  # video-only tail (empty if Tv <= Ta2)
                h_v = gru_step(h_v, gi_v[:, t, :], whh_v, v_bhn)
                acc_v = acc_v + h_v

            # temporal means (full-length sequences) + concat -> x_mm
            x_mm = jnp.concatenate([acc_a * (1.0 / Ta2), acc_v * (1.0 / Tv)], axis=1)
            xmm_ref[...] = x_mm

            # classifier head: Linear(2H,64) -> ReLU -> (Dropout=id) -> Linear(64,C)
            lw = lw_ref[...]
            w1 = lw[0:2 * H, 0:64]
            w2 = lw[L["l_w2"]:L["l_w2"] + 64, 0:C]
            h1 = jnp.dot(x_mm.astype(jnp.bfloat16), w1,
                         preferred_element_type=jnp.float32) + bias[4:5, 0:64]
            h1 = jnp.maximum(h1, 0.0)
            preds_ref[...] = jnp.dot(h1.astype(jnp.bfloat16), w2,
                                     preferred_element_type=jnp.float32) + bias[5:6, 0:C]

        vmem = pl.BlockSpec(memory_space=pltpu.MemorySpace.VMEM)
        args = (x_audio, x_video, packed["conv_w"], packed["gru_w"],
                packed["cls_w"], packed["bias"])
        preds, x_mm = pl.pallas_call(
            kernel,
            out_shape=(jax.ShapeDtypeStruct((B, C), jnp.float32),
                       jax.ShapeDtypeStruct((B, 2 * H), jnp.float32)),
            in_specs=[vmem] * len(args),
            out_specs=(vmem, vmem),
            scratch_shapes=[
                pltpu.VMEM((B, Ta + 2 * _PAD_OFF, Da), jnp.float32),        # conv1 padding
                pltpu.VMEM((B, Ta // 2 + 2 * _PAD_OFF, F1), jnp.float32),   # conv2 padding
                pltpu.VMEM((B, Ta // 4 + 2 * _PAD_OFF, F2), jnp.float32),   # conv3 padding
            ],
        )(*args)
        return preds, x_mm

    return forward


if __name__ == "__main__":
    B = 2
    T_AUDIO = 32          # divisible by 8 (three maxpool(2) stages)
    T_VIDEO = 8
    dims = Dims(num_classes=5, audio_dim=16, video_dim=24, d_hid=32, n_filters=8)

    key = jax.random.PRNGKey(0)
    k_p, k_a, k_v = jax.random.split(key, 3)

    params = init_params(k_p, dims)
    packed = pack_params(params, dims)   # one-time host-side packing -> 4 slabs, 6 DMAs total
    x_audio = jax.random.normal(k_a, (B, T_AUDIO, dims.audio_dim), jnp.float32)
    x_video = jax.random.normal(k_v, (B, T_VIDEO, dims.video_dim), jnp.float32)
    # len_a / len_v are full-length -> pack/pad_packed round-trip is a no-op; masking omitted.

    fwd = jax.jit(make_forward(dims))
    preds, x_mm = fwd(packed, x_audio, x_video)
    jax.block_until_ready((preds, x_mm))

    assert preds.shape == (B, dims.num_classes)
    assert x_mm.shape == (B, 2 * dims.d_hid)
    print("KERNEL_OK")
</pallas_src>

<mosaic_0001>
module attributes {stable_mosaic.version = 11 : i64} {
  func.func @kernel(%arg0: memref<2x32x16xf32, #tpu.memory_space<vmem>>, %arg1: memref<2x8x24xf32, #tpu.memory_space<vmem>>, %arg2: memref<200x32xbf16, #tpu.memory_space<vmem>>, %arg3: memref<184x192xbf16, #tpu.memory_space<vmem>>, %arg4: memref<128x64xbf16, #tpu.memory_space<vmem>>, %arg5: memref<8x128xf32, #tpu.memory_space<vmem>>, %arg6: memref<2x5xf32, #tpu.memory_space<vmem>>, %arg7: memref<2x64xf32, #tpu.memory_space<vmem>>, %arg8: memref<2x48x16xf32, #tpu.memory_space<vmem>>, %arg9: memref<2x32x8xf32, #tpu.memory_space<vmem>>, %arg10: memref<2x24x16xf32, #tpu.memory_space<vmem>>) attributes {dimension_semantics = [], scalar_prefetch = 0 : i64, scratch_operands = 3 : i64, tpu.core_type = #tpu.core_type<tc>} {
    %c0 = arith.constant 0 : index
    %c0_0 = arith.constant 0 : index
    %0 = vector.load %arg5[%c0, %c0_0] : memref<8x128xf32, #tpu.memory_space<vmem>>, vector<8x128xf32>
    %c0_1 = arith.constant 0 : index
    %c0_2 = arith.constant 0 : index
    %1 = vector.load %arg2[%c0_1, %c0_2] : memref<200x32xbf16, #tpu.memory_space<vmem>>, vector<200x32xbf16>
    %c0_3 = arith.constant 0 : index
    %c0_4 = arith.constant 0 : index
    %c0_5 = arith.constant 0 : index
    %2 = vector.load %arg0[%c0_3, %c0_4, %c0_5] : memref<2x32x16xf32, #tpu.memory_space<vmem>>, vector<2x32x16xf32>
    %3 = vector.extract_strided_slice %1 {offsets = [0, 0], sizes = [80, 8], strides = [1, 1]} : vector<200x32xbf16> to vector<80x8xbf16>
    %4 = vector.extract_strided_slice %0 {offsets = [0, 0], sizes = [1, 8], strides = [1, 1]} : vector<8x128xf32> to vector<1x8xf32>
    %cst = arith.constant 0.000000e+00 : f32
    %5 = vector.broadcast %cst : f32 to vector<2x8x16xf32>
    %c0_6 = arith.constant 0 : index
    %c0_7 = arith.constant 0 : index
    %c0_8 = arith.constant 0 : index
    %6 = vector.load %arg8[%c0_6, %c0_7, %c0_8] : memref<2x48x16xf32, #tpu.memory_space<vmem>>, vector<2x8x16xf32>
    tpu.vector_store %arg8[%c0_6, %c0_7, %c0_8], %5 {strides = array<i32>} : memref<2x48x16xf32, #tpu.memory_space<vmem>>, vector<2x8x16xf32>,
    %c0_9 = arith.constant 0 : index
    %c40 = arith.constant 40 : index
    %c0_10 = arith.constant 0 : index
    %7 = vector.load %arg8[%c0_9, %c40, %c0_10] : memref<2x48x16xf32, #tpu.memory_space<vmem>>, vector<2x8x16xf32>
    tpu.vector_store %arg8[%c0_9, %c40, %c0_10], %5 {strides = array<i32>} : memref<2x48x16xf32, #tpu.memory_space<vmem>>, vector<2x8x16xf32>,
    %c0_11 = arith.constant 0 : index
    %c8 = arith.constant 8 : index
    %c0_12 = arith.constant 0 : index
    %8 = vector.load %arg8[%c0_11, %c8, %c0_12] : memref<2x48x16xf32, #tpu.memory_space<vmem>>, vector<2x32x16xf32>
    tpu.vector_store %arg8[%c0_11, %c8, %c0_12], %2 {strides = array<i32>} : memref<2x48x16xf32, #tpu.memory_space<vmem>>, vector<2x32x16xf32>,
    %c0_13 = arith.constant 0 : index
    %c0_14 = arith.constant 0 : index
    %c0_15 = arith.constant 0 : index
    %9 = vector.load %arg8[%c0_13, %c0_14, %c0_15] : memref<2x48x16xf32, #tpu.memory_space<vmem>>, vector<2x48x16xf32>
    %10 = vector.extract_strided_slice %9 {offsets = [0, 6, 0], sizes = [2, 32, 16], strides = [1, 1, 1]} : vector<2x48x16xf32> to vector<2x32x16xf32>
    %11 = vector.extract_strided_slice %9 {offsets = [0, 7, 0], sizes = [2, 32, 16], strides = [1, 1, 1]} : vector<2x48x16xf32> to vector<2x32x16xf32>
    %12 = vector.extract_strided_slice %9 {offsets = [0, 8, 0], sizes = [2, 32, 16], strides = [1, 1, 1]} : vector<2x48x16xf32> to vector<2x32x16xf32>
    %13 = vector.extract_strided_slice %9 {offsets = [0, 9, 0], sizes = [2, 32, 16], strides = [1, 1, 1]} : vector<2x48x16xf32> to vector<2x32x16xf32>
    %14 = vector.extract_strided_slice %9 {offsets = [0, 10, 0], sizes = [2, 32, 16], strides = [1, 1, 1]} : vector<2x48x16xf32> to vector<2x32x16xf32>
    %15 = tpu.concatenate %10, %11, %12, %13, %14 in 2 : vector<2x32x16xf32>, vector<2x32x16xf32>, vector<2x32x16xf32>, vector<2x32x16xf32>, vector<2x32x16xf32> -> vector<2x32x80xf32>
    %16 = vector.shape_cast %15 : vector<2x32x80xf32> to vector<64x80xf32>
    %17 = arith.truncf %16 : vector<64x80xf32> to vector<64x80xbf16>
    %cst_16 = arith.constant dense<0.000000e+00> : vector<64x8xf32>
    %18 = tpu.matmul %17, %3, %cst_16 {dimension_numbers = #tpu.dot_dimension_numbers<[1], [0], [0], [1], [0, 0, 1, 1], [], []>} : vector<64x80xbf16>, vector<80x8xbf16>, vector<64x8xf32> -> vector<64x8xf32>
    %19 = vector.broadcast %4 : vector<1x8xf32> to vector<64x8xf32>
    %20 = arith.addf %18, %19 : vector<64x8xf32>
    %cst_17 = arith.constant 0.000000e+00 : f32
    %21 = vector.broadcast %cst_17 : f32 to vector<64x8xf32>
    %22 = arith.maximumf %20, %21 : vector<64x8xf32>
    %23 = vector.shape_cast %22 : vector<64x8xf32> to vector<2x32x8xf32>
    %24 = vector.shape_cast %23 : vector<2x32x8xf32> to vector<2x16x2x8xf32>
    %cst_18 = arith.constant dense<0xFF800000> : vector<2x16x8xf32>
    %25 = vector.multi_reduction <maximumf>, %24, %cst_18 [2] : vector<2x16x2x8xf32> to vector<2x16x8xf32>
    %26 = vector.extract_strided_slice %1 {offsets = [80, 0], sizes = [40, 16], strides = [1, 1]} : vector<200x32xbf16> to vector<40x16xbf16>
    %27 = vector.extract_strided_slice %0 {offsets = [0, 8], sizes = [1, 16], strides = [1, 1]} : vector<8x128xf32> to vector<1x16xf32>
    %cst_19 = arith.constant 0.000000e+00 : f32
    %28 = vector.broadcast %cst_19 : f32 to vector<2x8x8xf32>
    %c0_20 = arith.constant 0 : index
    %c0_21 = arith.constant 0 : index
    %c0_22 = arith.constant 0 : index
    %29 = vector.load %arg9[%c0_20, %c0_21, %c0_22] : memref<2x32x8xf32, #tpu.memory_space<vmem>>, vector<2x8x8xf32>
    tpu.vector_store %arg9[%c0_20, %c0_21, %c0_22], %28 {strides = array<i32>} : memref<2x32x8xf32, #tpu.memory_space<vmem>>, vector<2x8x8xf32>,
    %c0_23 = arith.constant 0 : index
    %c24 = arith.constant 24 : index
    %c0_24 = arith.constant 0 : index
    %30 = vector.load %arg9[%c0_23, %c24, %c0_24] : memref<2x32x8xf32, #tpu.memory_space<vmem>>, vector<2x8x8xf32>
    tpu.vector_store %arg9[%c0_23, %c24, %c0_24], %28 {strides = array<i32>} : memref<2x32x8xf32, #tpu.memory_space<vmem>>, vector<2x8x8xf32>,
    %c0_25 = arith.constant 0 : index
    %c8_26 = arith.constant 8 : index
    %c0_27 = arith.constant 0 : index
    %31 = vector.load %arg9[%c0_25, %c8_26, %c0_27] : memref<2x32x8xf32, #tpu.memory_space<vmem>>, vector<2x16x8xf32>
    tpu.vector_store %arg9[%c0_25, %c8_26, %c0_27], %25 {strides = array<i32>} : memref<2x32x8xf32, #tpu.memory_space<vmem>>, vector<2x16x8xf32>,
    %c0_28 = arith.constant 0 : index
    %c0_29 = arith.constant 0 : index
    %c0_30 = arith.constant 0 : index
    %32 = vector.load %arg9[%c0_28, %c0_29, %c0_30] : memref<2x32x8xf32, #tpu.memory_space<vmem>>, vector<2x32x8xf32>
    %33 = vector.extract_strided_slice %32 {offsets = [0, 6, 0], sizes = [2, 16, 8], strides = [1, 1, 1]} : vector<2x32x8xf32> to vector<2x16x8xf32>
    %34 = vector.extract_strided_slice %32 {offsets = [0, 7, 0], sizes = [2, 16, 8], strides = [1, 1, 1]} : vector<2x32x8xf32> to vector<2x16x8xf32>
    %35 = vector.extract_strided_slice %32 {offsets = [0, 8, 0], sizes = [2, 16, 8], strides = [1, 1, 1]} : vector<2x32x8xf32> to vector<2x16x8xf32>
    %36 = vector.extract_strided_slice %32 {offsets = [0, 9, 0], sizes = [2, 16, 8], strides = [1, 1, 1]} : vector<2x32x8xf32> to vector<2x16x8xf32>
    %37 = vector.extract_strided_slice %32 {offsets = [0, 10, 0], sizes = [2, 16, 8], strides = [1, 1, 1]} : vector<2x32x8xf32> to vector<2x16x8xf32>
    %38 = tpu.concatenate %33, %34, %35, %36, %37 in 2 : vector<2x16x8xf32>, vector<2x16x8xf32>, vector<2x16x8xf32>, vector<2x16x8xf32>, vector<2x16x8xf32> -> vector<2x16x40xf32>
    %39 = vector.shape_cast %38 : vector<2x16x40xf32> to vector<32x40xf32>
    %40 = arith.truncf %39 : vector<32x40xf32> to vector<32x40xbf16>
    %cst_31 = arith.constant dense<0.000000e+00> : vector<32x16xf32>
    %41 = tpu.matmul %40, %26, %cst_31 {dimension_numbers = #tpu.dot_dimension_numbers<[1], [0], [0], [1], [0, 0, 1, 1], [], []>} : vector<32x40xbf16>, vector<40x16xbf16>, vector<32x16xf32> -> vector<32x16xf32>
    %42 = vector.broadcast %27 : vector<1x16xf32> to vector<32x16xf32>
    %43 = arith.addf %41, %42 : vector<32x16xf32>
    %cst_32 = arith.constant 0.000000e+00 : f32
    %44 = vector.broadcast %cst_32 : f32 to vector<32x16xf32>
    %45 = arith.maximumf %43, %44 : vector<32x16xf32>
    %46 = vector.shape_cast %45 : vector<32x16xf32> to vector<2x16x16xf32>
    %47 = vector.shape_cast %46 : vector<2x16x16xf32> to vector<2x8x2x16xf32>
    %cst_33 = arith.constant dense<0xFF800000> : vector<2x8x16xf32>
    %48 = vector.multi_reduction <maximumf>, %47, %cst_33 [2] : vector<2x8x2x16xf32> to vector<2x8x16xf32>
    %49 = vector.extract_strided_slice %1 {offsets = [120, 0], sizes = [80, 32], strides = [1, 1]} : vector<200x32xbf16> to vector<80x32xbf16>
    %50 = vector.extract_strided_slice %0 {offsets = [0, 24], sizes = [1, 32], strides = [1, 1]} : vector<8x128xf32> to vector<1x32xf32>
    %cst_34 = arith.constant 0.000000e+00 : f32
    %51 = vector.broadcast %cst_34 : f32 to vector<2x8x16xf32>
    %c0_35 = arith.constant 0 : index
    %c0_36 = arith.constant 0 : index
    %c0_37 = arith.constant 0 : index
    %52 = vector.load %arg10[%c0_35, %c0_36, %c0_37] : memref<2x24x16xf32, #tpu.memory_space<vmem>>, vector<2x8x16xf32>
    tpu.vector_store %arg10[%c0_35, %c0_36, %c0_37], %51 {strides = array<i32>} : memref<2x24x16xf32, #tpu.memory_space<vmem>>, vector<2x8x16xf32>,
    %c0_38 = arith.constant 0 : index
    %c16 = arith.constant 16 : index
    %c0_39 = arith.constant 0 : index
    %53 = vector.load %arg10[%c0_38, %c16, %c0_39] : memref<2x24x16xf32, #tpu.memory_space<vmem>>, vector<2x8x16xf32>
    tpu.vector_store %arg10[%c0_38, %c16, %c0_39], %51 {strides = array<i32>} : memref<2x24x16xf32, #tpu.memory_space<vmem>>, vector<2x8x16xf32>,
    %c0_40 = arith.constant 0 : index
    %c8_41 = arith.constant 8 : index
    %c0_42 = arith.constant 0 : index
    %54 = vector.load %arg10[%c0_40, %c8_41, %c0_42] : memref<2x24x16xf32, #tpu.memory_space<vmem>>, vector<2x8x16xf32>
    tpu.vector_store %arg10[%c0_40, %c8_41, %c0_42], %48 {strides = array<i32>} : memref<2x24x16xf32, #tpu.memory_space<vmem>>, vector<2x8x16xf32>,
    %c0_43 = arith.constant 0 : index
    %c0_44 = arith.constant 0 : index
    %c0_45 = arith.constant 0 : index
    %55 = vector.load %arg10[%c0_43, %c0_44, %c0_45] : memref<2x24x16xf32, #tpu.memory_space<vmem>>, vector<2x24x16xf32>
    %56 = vector.extract_strided_slice %55 {offsets = [0, 6, 0], sizes = [2, 8, 16], strides = [1, 1, 1]} : vector<2x24x16xf32> to vector<2x8x16xf32>
    %57 = vector.extract_strided_slice %55 {offsets = [0, 7, 0], sizes = [2, 8, 16], strides = [1, 1, 1]} : vector<2x24x16xf32> to vector<2x8x16xf32>
    %58 = vector.extract_strided_slice %55 {offsets = [0, 8, 0], sizes = [2, 8, 16], strides = [1, 1, 1]} : vector<2x24x16xf32> to vector<2x8x16xf32>
    %59 = vector.extract_strided_slice %55 {offsets = [0, 9, 0], sizes = [2, 8, 16], strides = [1, 1, 1]} : vector<2x24x16xf32> to vector<2x8x16xf32>
    %60 = vector.extract_strided_slice %55 {offsets = [0, 10, 0], sizes = [2, 8, 16], strides = [1, 1, 1]} : vector<2x24x16xf32> to vector<2x8x16xf32>
    %61 = tpu.concatenate %56, %57, %58, %59, %60 in 2 : vector<2x8x16xf32>, vector<2x8x16xf32>, vector<2x8x16xf32>, vector<2x8x16xf32>, vector<2x8x16xf32> -> vector<2x8x80xf32>
    %62 = vector.shape_cast %61 : vector<2x8x80xf32> to vector<16x80xf32>
    %63 = arith.truncf %62 : vector<16x80xf32> to vector<16x80xbf16>
    %cst_46 = arith.constant dense<0.000000e+00> : vector<16x32xf32>
    %64 = tpu.matmul %63, %49, %cst_46 {dimension_numbers = #tpu.dot_dimension_numbers<[1], [0], [0], [1], [0, 0, 1, 1], [], []>} : vector<16x80xbf16>, vector<80x32xbf16>, vector<16x32xf32> -> vector<16x32xf32>
    %65 = vector.broadcast %50 : vector<1x32xf32> to vector<16x32xf32>
    %66 = arith.addf %64, %65 : vector<16x32xf32>
    %cst_47 = arith.constant 0.000000e+00 : f32
    %67 = vector.broadcast %cst_47 : f32 to vector<16x32xf32>
    %68 = arith.maximumf %66, %67 : vector<16x32xf32>
    %69 = vector.shape_cast %68 : vector<16x32xf32> to vector<2x8x32xf32>
    %70 = vector.shape_cast %69 : vector<2x8x32xf32> to vector<2x4x2x32xf32>
    %cst_48 = arith.constant dense<0xFF800000> : vector<2x4x32xf32>
    %71 = vector.multi_reduction <maximumf>, %70, %cst_48 [2] : vector<2x4x2x32xf32> to vector<2x4x32xf32>
    %c0_49 = arith.constant 0 : index
    %c0_50 = arith.constant 0 : index
    %72 = vector.load %arg3[%c0_49, %c0_50] : memref<184x192xbf16, #tpu.memory_space<vmem>>, vector<184x192xbf16>
    %73 = vector.extract_strided_slice %72 {offsets = [0, 0], sizes = [32, 96], strides = [1, 1]} : vector<184x192xbf16> to vector<32x96xbf16>
    %74 = vector.extract_strided_slice %72 {offsets = [32, 0], sizes = [24, 96], strides = [1, 1]} : vector<184x192xbf16> to vector<24x96xbf16>
    %75 = vector.extract_strided_slice %72 {offsets = [56, 0], sizes = [64, 192], strides = [1, 1]} : vector<184x192xbf16> to vector<64x192xbf16>
    %76 = vector.extract_strided_slice %72 {offsets = [152, 0], sizes = [32, 96], strides = [1, 1]} : vector<184x192xbf16> to vector<32x96xbf16>
    %77 = vector.extract_strided_slice %0 {offsets = [1, 0], sizes = [1, 96], strides = [1, 1]} : vector<8x128xf32> to vector<1x96xf32>
    %78 = vector.extract_strided_slice %0 {offsets = [2, 0], sizes = [1, 96], strides = [1, 1]} : vector<8x128xf32> to vector<1x96xf32>
    %79 = vector.extract_strided_slice %0 {offsets = [3, 0], sizes = [1, 64], strides = [1, 1]} : vector<8x128xf32> to vector<1x64xf32>
    %80 = vector.extract_strided_slice %0 {offsets = [3, 32], sizes = [1, 32], strides = [1, 1]} : vector<8x128xf32> to vector<1x32xf32>
    %81 = vector.shape_cast %71 : vector<2x4x32xf32> to vector<8x32xf32>
    %82 = arith.truncf %81 : vector<8x32xf32> to vector<8x32xbf16>
    %cst_51 = arith.constant dense<0.000000e+00> : vector<8x96xf32>
    %83 = tpu.matmul %82, %73, %cst_51 {dimension_numbers = #tpu.dot_dimension_numbers<[1], [0], [0], [1], [0, 0, 1, 1], [], []>} : vector<8x32xbf16>, vector<32x96xbf16>, vector<8x96xf32> -> vector<8x96xf32>
    %84 = vector.broadcast %77 : vector<1x96xf32> to vector<8x96xf32>
    %85 = arith.addf %83, %84 : vector<8x96xf32>
    %86 = vector.shape_cast %85 : vector<8x96xf32> to vector<2x4x96xf32>
    %c0_52 = arith.constant 0 : index
    %c0_53 = arith.constant 0 : index
    %c0_54 = arith.constant 0 : index
    %87 = vector.load %arg1[%c0_52, %c0_53, %c0_54] : memref<2x8x24xf32, #tpu.memory_space<vmem>>, vector<2x8x24xf32>
    %88 = vector.shape_cast %87 : vector<2x8x24xf32> to vector<16x24xf32>
    %89 = arith.truncf %88 : vector<16x24xf32> to vector<16x24xbf16>
    %cst_55 = arith.constant dense<0.000000e+00> : vector<16x96xf32>
    %90 = tpu.matmul %89, %74, %cst_55 {dimension_numbers = #tpu.dot_dimension_numbers<[1], [0], [0], [1], [0, 0, 1, 1], [], []>} : vector<16x24xbf16>, vector<24x96xbf16>, vector<16x96xf32> -> vector<16x96xf32>
    %91 = vector.broadcast %78 : vector<1x96xf32> to vector<16x96xf32>
    %92 = arith.addf %90, %91 : vector<16x96xf32>
    %93 = vector.shape_cast %92 : vector<16x96xf32> to vector<2x8x96xf32>
    %94 = vector.extract_strided_slice %86 {offsets = [0, 0, 0], sizes = [2, 4, 32], strides = [1, 1, 1]} : vector<2x4x96xf32> to vector<2x4x32xf32>
    %95 = vector.extract_strided_slice %93 {offsets = [0, 0, 0], sizes = [2, 4, 32], strides = [1, 1, 1]} : vector<2x8x96xf32> to vector<2x4x32xf32>
    %96 = vector.extract_strided_slice %86 {offsets = [0, 0, 32], sizes = [2, 4, 32], strides = [1, 1, 1]} : vector<2x4x96xf32> to vector<2x4x32xf32>
    %97 = vector.extract_strided_slice %93 {offsets = [0, 0, 32], sizes = [2, 4, 32], strides = [1, 1, 1]} : vector<2x8x96xf32> to vector<2x4x32xf32>
    %98 = vector.extract_strided_slice %86 {offsets = [0, 0, 64], sizes = [2, 4, 32], strides = [1, 1, 1]} : vector<2x4x96xf32> to vector<2x4x32xf32>
    %99 = vector.extract_strided_slice %93 {offsets = [0, 0, 64], sizes = [2, 4, 32], strides = [1, 1, 1]} : vector<2x8x96xf32> to vector<2x4x32xf32>
    %100 = tpu.concatenate %94, %95, %96, %97, %98, %99 in 2 : vector<2x4x32xf32>, vector<2x4x32xf32>, vector<2x4x32xf32>, vector<2x4x32xf32>, vector<2x4x32xf32>, vector<2x4x32xf32> -> vector<2x4x192xf32>
    %cst_56 = arith.constant 0.000000e+00 : f32
    %101 = vector.broadcast %cst_56 : f32 to vector<2x64xf32>
    %cst_57 = arith.constant 0.000000e+00 : f32
    %102 = vector.broadcast %cst_57 : f32 to vector<2x64xf32>
    %103 = vector.extract_strided_slice %100 {offsets = [0, 0, 0], sizes = [2, 1, 192], strides = [1, 1, 1]} : vector<2x4x192xf32> to vector<2x1x192xf32>
    %104 = vector.shape_cast %103 : vector<2x1x192xf32> to vector<2x192xf32>
    %105 = arith.truncf %101 : vector<2x64xf32> to vector<2x64xbf16>
    %cst_58 = arith.constant dense<0.000000e+00> : vector<2x192xf32>
    %106 = tpu.matmul %105, %75, %cst_58 {dimension_numbers = #tpu.dot_dimension_numbers<[1], [0], [0], [1], [0, 0, 1, 1], [], []>} : vector<2x64xbf16>, vector<64x192xbf16>, vector<2x192xf32> -> vector<2x192xf32>
    %107 = vector.extract_strided_slice %104 {offsets = [0, 0], sizes = [2, 128], strides = [1, 1]} : vector<2x192xf32> to vector<2x128xf32>
    %108 = vector.extract_strided_slice %106 {offsets = [0, 0], sizes = [2, 128], strides = [1, 1]} : vector<2x192xf32> to vector<2x128xf32>
    %109 = arith.addf %107, %108 : vector<2x128xf32>
    %110 = arith.negf %109 : vector<2x128xf32>
    %111 = math.exp %110 : vector<2x128xf32>
    %cst_59 = arith.constant 1.000000e+00 : f32
    %112 = vector.broadcast %cst_59 : f32 to vector<2x128xf32>
    %113 = arith.addf %112, %111 : vector<2x128xf32>
    %114 = arith.divf %112, %113 : vector<2x128xf32>
    %115 = vector.extract_strided_slice %114 {offsets = [0, 0], sizes = [2, 64], strides = [1, 1]} : vector<2x128xf32> to vector<2x64xf32>
    %116 = vector.extract_strided_slice %114 {offsets = [0, 64], sizes = [2, 64], strides = [1, 1]} : vector<2x128xf32> to vector<2x64xf32>
    %117 = vector.extract_strided_slice %104 {offsets = [0, 128], sizes = [2, 64], strides = [1, 1]} : vector<2x192xf32> to vector<2x64xf32>
    %118 = vector.extract_strided_slice %106 {offsets = [0, 128], sizes = [2, 64], strides = [1, 1]} : vector<2x192xf32> to vector<2x64xf32>
    %119 = vector.broadcast %79 : vector<1x64xf32> to vector<2x64xf32>
    %120 = arith.addf %118, %119 : vector<2x64xf32>
    %121 = arith.mulf %115, %120 : vector<2x64xf32>
    %122 = arith.addf %117, %121 : vector<2x64xf32>
    %123 = math.tanh %122 : vector<2x64xf32>
    %cst_60 = arith.constant 1.000000e+00 : f32
    %124 = vector.broadcast %cst_60 : f32 to vector<2x64xf32>
    %125 = arith.subf %124, %116 : vector<2x64xf32>
    %126 = arith.mulf %125, %123 : vector<2x64xf32>
    %127 = arith.mulf %116, %101 : vector<2x64xf32>
    %128 = arith.addf %126, %127 : vector<2x64xf32>
    %129 = arith.addf %102, %128 : vector<2x64xf32>
    %130 = vector.extract_strided_slice %100 {offsets = [0, 1, 0], sizes = [2, 1, 192], strides = [1, 1, 1]} : vector<2x4x192xf32> to vector<2x1x192xf32>
    %131 = vector.shape_cast %130 : vector<2x1x192xf32> to vector<2x192xf32>
    %132 = arith.truncf %128 : vector<2x64xf32> to vector<2x64xbf16>
    %cst_61 = arith.constant dense<0.000000e+00> : vector<2x192xf32>
    %133 = tpu.matmul %132, %75, %cst_61 {dimension_numbers = #tpu.dot_dimension_numbers<[1], [0], [0], [1], [0, 0, 1, 1], [], []>} : vector<2x64xbf16>, vector<64x192xbf16>, vector<2x192xf32> -> vector<2x192xf32>
    %134 = vector.extract_strided_slice %131 {offsets = [0, 0], sizes = [2, 128], strides = [1, 1]} : vector<2x192xf32> to vector<2x128xf32>
    %135 = vector.extract_strided_slice %133 {offsets = [0, 0], sizes = [2, 128], strides = [1, 1]} : vector<2x192xf32> to vector<2x128xf32>
    %136 = arith.addf %134, %135 : vector<2x128xf32>
    %137 = arith.negf %136 : vector<2x128xf32>
    %138 = math.exp %137 : vector<2x128xf32>
    %cst_62 = arith.constant 1.000000e+00 : f32
    %139 = vector.broadcast %cst_62 : f32 to vector<2x128xf32>
    %140 = arith.addf %139, %138 : vector<2x128xf32>
    %141 = arith.divf %139, %140 : vector<2x128xf32>
    %142 = vector.extract_strided_slice %141 {offsets = [0, 0], sizes = [2, 64], strides = [1, 1]} : vector<2x128xf32> to vector<2x64xf32>
    %143 = vector.extract_strided_slice %141 {offsets = [0, 64], sizes = [2, 64], strides = [1, 1]} : vector<2x128xf32> to vector<2x64xf32>
    %144 = vector.extract_strided_slice %131 {offsets = [0, 128], sizes = [2, 64], strides = [1, 1]} : vector<2x192xf32> to vector<2x64xf32>
    %145 = vector.extract_strided_slice %133 {offsets = [0, 128], sizes = [2, 64], strides = [1, 1]} : vector<2x192xf32> to vector<2x64xf32>
    %146 = vector.broadcast %79 : vector<1x64xf32> to vector<2x64xf32>
    %147 = arith.addf %145, %146 : vector<2x64xf32>
    %148 = arith.mulf %142, %147 : vector<2x64xf32>
    %149 = arith.addf %144, %148 : vector<2x64xf32>
    %150 = math.tanh %149 : vector<2x64xf32>
    %cst_63 = arith.constant 1.000000e+00 : f32
    %151 = vector.broadcast %cst_63 : f32 to vector<2x64xf32>
    %152 = arith.subf %151, %143 : vector<2x64xf32>
    %153 = arith.mulf %152, %150 : vector<2x64xf32>
    %154 = arith.mulf %143, %128 : vector<2x64xf32>
    %155 = arith.addf %153, %154 : vector<2x64xf32>
    %156 = arith.addf %129, %155 : vector<2x64xf32>
    %157 = vector.extract_strided_slice %100 {offsets = [0, 2, 0], sizes = [2, 1, 192], strides = [1, 1, 1]} : vector<2x4x192xf32> to vector<2x1x192xf32>
    %158 = vector.shape_cast %157 : vector<2x1x192xf32> to vector<2x192xf32>
    %159 = arith.truncf %155 : vector<2x64xf32> to vector<2x64xbf16>
    %cst_64 = arith.constant dense<0.000000e+00> : vector<2x192xf32>
    %160 = tpu.matmul %159, %75, %cst_64 {dimension_numbers = #tpu.dot_dimension_numbers<[1], [0], [0], [1], [0, 0, 1, 1], [], []>} : vector<2x64xbf16>, vector<64x192xbf16>, vector<2x192xf32> -> vector<2x192xf32>
    %161 = vector.extract_strided_slice %158 {offsets = [0, 0], sizes = [2, 128], strides = [1, 1]} : vector<2x192xf32> to vector<2x128xf32>
    %162 = vector.extract_strided_slice %160 {offsets = [0, 0], sizes = [2, 128], strides = [1, 1]} : vector<2x192xf32> to vector<2x128xf32>
    %163 = arith.addf %161, %162 : vector<2x128xf32>
    %164 = arith.negf %163 : vector<2x128xf32>
    %165 = math.exp %164 : vector<2x128xf32>
    %cst_65 = arith.constant 1.000000e+00 : f32
    %166 = vector.broadcast %cst_65 : f32 to vector<2x128xf32>
    %167 = arith.addf %166, %165 : vector<2x128xf32>
    %168 = arith.divf %166, %167 : vector<2x128xf32>
    %169 = vector.extract_strided_slice %168 {offsets = [0, 0], sizes = [2, 64], strides = [1, 1]} : vector<2x128xf32> to vector<2x64xf32>
    %170 = vector.extract_strided_slice %168 {offsets = [0, 64], sizes = [2, 64], strides = [1, 1]} : vector<2x128xf32> to vector<2x64xf32>
    %171 = vector.extract_strided_slice %158 {offsets = [0, 128], sizes = [2, 64], strides = [1, 1]} : vector<2x192xf32> to vector<2x64xf32>
    %172 = vector.extract_strided_slice %160 {offsets = [0, 128], sizes = [2, 64], strides = [1, 1]} : vector<2x192xf32> to vector<2x64xf32>
    %173 = vector.broadcast %79 : vector<1x64xf32> to vector<2x64xf32>
    %174 = arith.addf %172, %173 : vector<2x64xf32>
    %175 = arith.mulf %169, %174 : vector<2x64xf32>
    %176 = arith.addf %171, %175 : vector<2x64xf32>
    %177 = math.tanh %176 : vector<2x64xf32>
    %cst_66 = arith.constant 1.000000e+00 : f32
    %178 = vector.broadcast %cst_66 : f32 to vector<2x64xf32>
    %179 = arith.subf %178, %170 : vector<2x64xf32>
    %180 = arith.mulf %179, %177 : vector<2x64xf32>
    %181 = arith.mulf %170, %155 : vector<2x64xf32>
    %182 = arith.addf %180, %181 : vector<2x64xf32>
    %183 = arith.addf %156, %182 : vector<2x64xf32>
    %184 = vector.extract_strided_slice %100 {offsets = [0, 3, 0], sizes = [2, 1, 192], strides = [1, 1, 1]} : vector<2x4x192xf32> to vector<2x1x192xf32>
    %185 = vector.shape_cast %184 : vector<2x1x192xf32> to vector<2x192xf32>
    %186 = arith.truncf %182 : vector<2x64xf32> to vector<2x64xbf16>
    %cst_67 = arith.constant dense<0.000000e+00> : vector<2x192xf32>
    %187 = tpu.matmul %186, %75, %cst_67 {dimension_numbers = #tpu.dot_dimension_numbers<[1], [0], [0], [1], [0, 0, 1, 1], [], []>} : vector<2x64xbf16>, vector<64x192xbf16>, vector<2x192xf32> -> vector<2x192xf32>
    %188 = vector.extract_strided_slice %185 {offsets = [0, 0], sizes = [2, 128], strides = [1, 1]} : vector<2x192xf32> to vector<2x128xf32>
    %189 = vector.extract_strided_slice %187 {offsets = [0, 0], sizes = [2, 128], strides = [1, 1]} : vector<2x192xf32> to vector<2x128xf32>
    %190 = arith.addf %188, %189 : vector<2x128xf32>
    %191 = arith.negf %190 : vector<2x128xf32>
    %192 = math.exp %191 : vector<2x128xf32>
    %cst_68 = arith.constant 1.000000e+00 : f32
    %193 = vector.broadcast %cst_68 : f32 to vector<2x128xf32>
    %194 = arith.addf %193, %192 : vector<2x128xf32>
    %195 = arith.divf %193, %194 : vector<2x128xf32>
    %196 = vector.extract_strided_slice %195 {offsets = [0, 0], sizes = [2, 64], strides = [1, 1]} : vector<2x128xf32> to vector<2x64xf32>
    %197 = vector.extract_strided_slice %195 {offsets = [0, 64], sizes = [2, 64], strides = [1, 1]} : vector<2x128xf32> to vector<2x64xf32>
    %198 = vector.extract_strided_slice %185 {offsets = [0, 128], sizes = [2, 64], strides = [1, 1]} : vector<2x192xf32> to vector<2x64xf32>
    %199 = vector.extract_strided_slice %187 {offsets = [0, 128], sizes = [2, 64], strides = [1, 1]} : vector<2x192xf32> to vector<2x64xf32>
    %200 = vector.broadcast %79 : vector<1x64xf32> to vector<2x64xf32>
    %201 = arith.addf %199, %200 : vector<2x64xf32>
    %202 = arith.mulf %196, %201 : vector<2x64xf32>
    %203 = arith.addf %198, %202 : vector<2x64xf32>
    %204 = math.tanh %203 : vector<2x64xf32>
    %cst_69 = arith.constant 1.000000e+00 : f32
    %205 = vector.broadcast %cst_69 : f32 to vector<2x64xf32>
    %206 = arith.subf %205, %197 : vector<2x64xf32>
    %207 = arith.mulf %206, %204 : vector<2x64xf32>
    %208 = arith.mulf %197, %182 : vector<2x64xf32>
    %209 = arith.addf %207, %208 : vector<2x64xf32>
    %210 = arith.addf %183, %209 : vector<2x64xf32>
    %211 = vector.extract_strided_slice %209 {offsets = [0, 32], sizes = [2, 32], strides = [1, 1]} : vector<2x64xf32> to vector<2x32xf32>
    %212 = vector.extract_strided_slice %210 {offsets = [0, 0], sizes = [2, 32], strides = [1, 1]} : vector<2x64xf32> to vector<2x32xf32>
    %213 = vector.extract_strided_slice %210 {offsets = [0, 32], sizes = [2, 32], strides = [1, 1]} : vector<2x64xf32> to vector<2x32xf32>
    %214 = vector.extract_strided_slice %93 {offsets = [0, 4, 0], sizes = [2, 1, 96], strides = [1, 1, 1]} : vector<2x8x96xf32> to vector<2x1x96xf32>
    %215 = vector.shape_cast %214 : vector<2x1x96xf32> to vector<2x96xf32>
    %216 = arith.truncf %211 : vector<2x32xf32> to vector<2x32xbf16>
    %cst_70 = arith.constant dense<0.000000e+00> : vector<2x96xf32>
    %217 = tpu.matmul %216, %76, %cst_70 {dimension_numbers = #tpu.dot_dimension_numbers<[1], [0], [0], [1], [0, 0, 1, 1], [], []>} : vector<2x32xbf16>, vector<32x96xbf16>, vector<2x96xf32> -> vector<2x96xf32>
    %218 = vector.extract_strided_slice %215 {offsets = [0, 0], sizes = [2, 64], strides = [1, 1]} : vector<2x96xf32> to vector<2x64xf32>
    %219 = vector.extract_strided_slice %217 {offsets = [0, 0], sizes = [2, 64], strides = [1, 1]} : vector<2x96xf32> to vector<2x64xf32>
    %220 = arith.addf %218, %219 : vector<2x64xf32>
    %221 = arith.negf %220 : vector<2x64xf32>
    %222 = math.exp %221 : vector<2x64xf32>
    %cst_71 = arith.constant 1.000000e+00 : f32
    %223 = vector.broadcast %cst_71 : f32 to vector<2x64xf32>
    %224 = arith.addf %223, %222 : vector<2x64xf32>
    %225 = arith.divf %223, %224 : vector<2x64xf32>
    %226 = vector.extract_strided_slice %225 {offsets = [0, 0], sizes = [2, 32], strides = [1, 1]} : vector<2x64xf32> to vector<2x32xf32>
    %227 = vector.extract_strided_slice %225 {offsets = [0, 32], sizes = [2, 32], strides = [1, 1]} : vector<2x64xf32> to vector<2x32xf32>
    %228 = vector.extract_strided_slice %215 {offsets = [0, 64], sizes = [2, 32], strides = [1, 1]} : vector<2x96xf32> to vector<2x32xf32>
    %229 = vector.extract_strided_slice %217 {offsets = [0, 64], sizes = [2, 32], strides = [1, 1]} : vector<2x96xf32> to vector<2x32xf32>
    %230 = vector.broadcast %80 : vector<1x32xf32> to vector<2x32xf32>
    %231 = arith.addf %229, %230 : vector<2x32xf32>
    %232 = arith.mulf %226, %231 : vector<2x32xf32>
    %233 = arith.addf %228, %232 : vector<2x32xf32>
    %234 = math.tanh %233 : vector<2x32xf32>
    %cst_72 = arith.constant 1.000000e+00 : f32
    %235 = vector.broadcast %cst_72 : f32 to vector<2x32xf32>
    %236 = arith.subf %235, %227 : vector<2x32xf32>
    %237 = arith.mulf %236, %234 : vector<2x32xf32>
    %238 = arith.mulf %227, %211 : vector<2x32xf32>
    %239 = arith.addf %237, %238 : vector<2x32xf32>
    %240 = arith.addf %213, %239 : vector<2x32xf32>
    %241 = vector.extract_strided_slice %93 {offsets = [0, 5, 0], sizes = [2, 1, 96], strides = [1, 1, 1]} : vector<2x8x96xf32> to vector<2x1x96xf32>
    %242 = vector.shape_cast %241 : vector<2x1x96xf32> to vector<2x96xf32>
    %243 = arith.truncf %239 : vector<2x32xf32> to vector<2x32xbf16>
    %cst_73 = arith.constant dense<0.000000e+00> : vector<2x96xf32>
    %244 = tpu.matmul %243, %76, %cst_73 {dimension_numbers = #tpu.dot_dimension_numbers<[1], [0], [0], [1], [0, 0, 1, 1], [], []>} : vector<2x32xbf16>, vector<32x96xbf16>, vector<2x96xf32> -> vector<2x96xf32>
    %245 = vector.extract_strided_slice %242 {offsets = [0, 0], sizes = [2, 64], strides = [1, 1]} : vector<2x96xf32> to vector<2x64xf32>
    %246 = vector.extract_strided_slice %244 {offsets = [0, 0], sizes = [2, 64], strides = [1, 1]} : vector<2x96xf32> to vector<2x64xf32>
    %247 = arith.addf %245, %246 : vector<2x64xf32>
    %248 = arith.negf %247 : vector<2x64xf32>
    %249 = math.exp %248 : vector<2x64xf32>
    %cst_74 = arith.constant 1.000000e+00 : f32
    %250 = vector.broadcast %cst_74 : f32 to vector<2x64xf32>
    %251 = arith.addf %250, %249 : vector<2x64xf32>
    %252 = arith.divf %250, %251 : vector<2x64xf32>
    %253 = vector.extract_strided_slice %252 {offsets = [0, 0], sizes = [2, 32], strides = [1, 1]} : vector<2x64xf32> to vector<2x32xf32>
    %254 = vector.extract_strided_slice %252 {offsets = [0, 32], sizes = [2, 32], strides = [1, 1]} : vector<2x64xf32> to vector<2x32xf32>
    %255 = vector.extract_strided_slice %242 {offsets = [0, 64], sizes = [2, 32], strides = [1, 1]} : vector<2x96xf32> to vector<2x32xf32>
    %256 = vector.extract_strided_slice %244 {offsets = [0, 64], sizes = [2, 32], strides = [1, 1]} : vector<2x96xf32> to vector<2x32xf32>
    %257 = vector.broadcast %80 : vector<1x32xf32> to vector<2x32xf32>
    %258 = arith.addf %256, %257 : vector<2x32xf32>
    %259 = arith.mulf %253, %258 : vector<2x32xf32>
    %260 = arith.addf %255, %259 : vector<2x32xf32>
    %261 = math.tanh %260 : vector<2x32xf32>
    %cst_75 = arith.constant 1.000000e+00 : f32
    %262 = vector.broadcast %cst_75 : f32 to vector<2x32xf32>
    %263 = arith.subf %262, %254 : vector<2x32xf32>
    %264 = arith.mulf %263, %261 : vector<2x32xf32>
    %265 = arith.mulf %254, %239 : vector<2x32xf32>
    %266 = arith.addf %264, %265 : vector<2x32xf32>
    %267 = arith.addf %240, %266 : vector<2x32xf32>
    %268 = vector.extract_strided_slice %93 {offsets = [0, 6, 0], sizes = [2, 1, 96], strides = [1, 1, 1]} : vector<2x8x96xf32> to vector<2x1x96xf32>
    %269 = vector.shape_cast %268 : vector<2x1x96xf32> to vector<2x96xf32>
    %270 = arith.truncf %266 : vector<2x32xf32> to vector<2x32xbf16>
    %cst_76 = arith.constant dense<0.000000e+00> : vector<2x96xf32>
    %271 = tpu.matmul %270, %76, %cst_76 {dimension_numbers = #tpu.dot_dimension_numbers<[1], [0], [0], [1], [0, 0, 1, 1], [], []>} : vector<2x32xbf16>, vector<32x96xbf16>, vector<2x96xf32> -> vector<2x96xf32>
    %272 = vector.extract_strided_slice %269 {offsets = [0, 0], sizes = [2, 64], strides = [1, 1]} : vector<2x96xf32> to vector<2x64xf32>
    %273 = vector.extract_strided_slice %271 {offsets = [0, 0], sizes = [2, 64], strides = [1, 1]} : vector<2x96xf32> to vector<2x64xf32>
    %274 = arith.addf %272, %273 : vector<2x64xf32>
    %275 = arith.negf %274 : vector<2x64xf32>
    %276 = math.exp %275 : vector<2x64xf32>
    %cst_77 = arith.constant 1.000000e+00 : f32
    %277 = vector.broadcast %cst_77 : f32 to vector<2x64xf32>
    %278 = arith.addf %277, %276 : vector<2x64xf32>
    %279 = arith.divf %277, %278 : vector<2x64xf32>
    %280 = vector.extract_strided_slice %279 {offsets = [0, 0], sizes = [2, 32], strides = [1, 1]} : vector<2x64xf32> to vector<2x32xf32>
    %281 = vector.extract_strided_slice %279 {offsets = [0, 32], sizes = [2, 32], strides = [1, 1]} : vector<2x64xf32> to vector<2x32xf32>
    %282 = vector.extract_strided_slice %269 {offsets = [0, 64], sizes = [2, 32], strides = [1, 1]} : vector<2x96xf32> to vector<2x32xf32>
    %283 = vector.extract_strided_slice %271 {offsets = [0, 64], sizes = [2, 32], strides = [1, 1]} : vector<2x96xf32> to vector<2x32xf32>
    %284 = vector.broadcast %80 : vector<1x32xf32> to vector<2x32xf32>
    %285 = arith.addf %283, %284 : vector<2x32xf32>
    %286 = arith.mulf %280, %285 : vector<2x32xf32>
    %287 = arith.addf %282, %286 : vector<2x32xf32>
    %288 = math.tanh %287 : vector<2x32xf32>
    %cst_78 = arith.constant 1.000000e+00 : f32
    %289 = vector.broadcast %cst_78 : f32 to vector<2x32xf32>
    %290 = arith.subf %289, %281 : vector<2x32xf32>
    %291 = arith.mulf %290, %288 : vector<2x32xf32>
    %292 = arith.mulf %281, %266 : vector<2x32xf32>
    %293 = arith.addf %291, %292 : vector<2x32xf32>
    %294 = arith.addf %267, %293 : vector<2x32xf32>
    %295 = vector.extract_strided_slice %93 {offsets = [0, 7, 0], sizes = [2, 1, 96], strides = [1, 1, 1]} : vector<2x8x96xf32> to vector<2x1x96xf32>
    %296 = vector.shape_cast %295 : vector<2x1x96xf32> to vector<2x96xf32>
    %297 = arith.truncf %293 : vector<2x32xf32> to vector<2x32xbf16>
    %cst_79 = arith.constant dense<0.000000e+00> : vector<2x96xf32>
    %298 = tpu.matmul %297, %76, %cst_79 {dimension_numbers = #tpu.dot_dimension_numbers<[1], [0], [0], [1], [0, 0, 1, 1], [], []>} : vector<2x32xbf16>, vector<32x96xbf16>, vector<2x96xf32> -> vector<2x96xf32>
    %299 = vector.extract_strided_slice %296 {offsets = [0, 0], sizes = [2, 64], strides = [1, 1]} : vector<2x96xf32> to vector<2x64xf32>
    %300 = vector.extract_strided_slice %298 {offsets = [0, 0], sizes = [2, 64], strides = [1, 1]} : vector<2x96xf32> to vector<2x64xf32>
    %301 = arith.addf %299, %300 : vector<2x64xf32>
    %302 = arith.negf %301 : vector<2x64xf32>
    %303 = math.exp %302 : vector<2x64xf32>
    %cst_80 = arith.constant 1.000000e+00 : f32
    %304 = vector.broadcast %cst_80 : f32 to vector<2x64xf32>
    %305 = arith.addf %304, %303 : vector<2x64xf32>
    %306 = arith.divf %304, %305 : vector<2x64xf32>
    %307 = vector.extract_strided_slice %306 {offsets = [0, 0], sizes = [2, 32], strides = [1, 1]} : vector<2x64xf32> to vector<2x32xf32>
    %308 = vector.extract_strided_slice %306 {offsets = [0, 32], sizes = [2, 32], strides = [1, 1]} : vector<2x64xf32> to vector<2x32xf32>
    %309 = vector.extract_strided_slice %296 {offsets = [0, 64], sizes = [2, 32], strides = [1, 1]} : vector<2x96xf32> to vector<2x32xf32>
    %310 = vector.extract_strided_slice %298 {offsets = [0, 64], sizes = [2, 32], strides = [1, 1]} : vector<2x96xf32> to vector<2x32xf32>
    %311 = vector.broadcast %80 : vector<1x32xf32> to vector<2x32xf32>
    %312 = arith.addf %310, %311 : vector<2x32xf32>
    %313 = arith.mulf %307, %312 : vector<2x32xf32>
    %314 = arith.addf %309, %313 : vector<2x32xf32>
    %315 = math.tanh %314 : vector<2x32xf32>
    %cst_81 = arith.constant 1.000000e+00 : f32
    %316 = vector.broadcast %cst_81 : f32 to vector<2x32xf32>
    %317 = arith.subf %316, %308 : vector<2x32xf32>
    %318 = arith.mulf %317, %315 : vector<2x32xf32>
    %319 = arith.mulf %308, %293 : vector<2x32xf32>
    %320 = arith.addf %318, %319 : vector<2x32xf32>
    %321 = arith.addf %294, %320 : vector<2x32xf32>
    %cst_82 = arith.constant 2.500000e-01 : f32
    %322 = vector.broadcast %cst_82 : f32 to vector<2x32xf32>
    %323 = arith.mulf %212, %322 : vector<2x32xf32>
    %cst_83 = arith.constant 1.250000e-01 : f32
    %324 = vector.broadcast %cst_83 : f32 to vector<2x32xf32>
    %325 = arith.mulf %321, %324 : vector<2x32xf32>
    %326 = tpu.concatenate %323, %325 in 1 : vector<2x32xf32>, vector<2x32xf32> -> vector<2x64xf32>
    %c0_84 = arith.constant 0 : index
    %c0_85 = arith.constant 0 : index
    %327 = vector.load %arg7[%c0_84, %c0_85] : memref<2x64xf32, #tpu.memory_space<vmem>>, vector<2x64xf32>
    tpu.vector_store %arg7[%c0_84, %c0_85], %326 {strides = array<i32>} : memref<2x64xf32, #tpu.memory_space<vmem>>, vector<2x64xf32>,
    %c0_86 = arith.constant 0 : index
    %c0_87 = arith.constant 0 : index
    %328 = vector.load %arg4[%c0_86, %c0_87] : memref<128x64xbf16, #tpu.memory_space<vmem>>, vector<128x64xbf16>
    %329 = vector.extract_strided_slice %328 {offsets = [0, 0], sizes = [64, 64], strides = [1, 1]} : vector<128x64xbf16> to vector<64x64xbf16>
    %330 = vector.extract_strided_slice %328 {offsets = [64, 0], sizes = [64, 5], strides = [1, 1]} : vector<128x64xbf16> to vector<64x5xbf16>
    %331 = arith.truncf %326 : vector<2x64xf32> to vector<2x64xbf16>
    %cst_88 = arith.constant dense<0.000000e+00> : vector<2x64xf32>
    %332 = tpu.matmul %331, %329, %cst_88 {dimension_numbers = #tpu.dot_dimension_numbers<[1], [0], [0], [1], [0, 0, 1, 1], [], []>} : vector<2x64xbf16>, vector<64x64xbf16>, vector<2x64xf32> -> vector<2x64xf32>
    %333 = vector.extract_strided_slice %0 {offsets = [4, 0], sizes = [1, 64], strides = [1, 1]} : vector<8x128xf32> to vector<1x64xf32>
    %334 = vector.broadcast %333 : vector<1x64xf32> to vector<2x64xf32>
    %335 = arith.addf %332, %334 : vector<2x64xf32>
    %cst_89 = arith.constant 0.000000e+00 : f32
    %336 = vector.broadcast %cst_89 : f32 to vector<2x64xf32>
    %337 = arith.maximumf %335, %336 : vector<2x64xf32>
    %338 = arith.truncf %337 : vector<2x64xf32> to vector<2x64xbf16>
    %cst_90 = arith.constant dense<0.000000e+00> : vector<2x5xf32>
    %339 = tpu.matmul %338, %330, %cst_90 {dimension_numbers = #tpu.dot_dimension_numbers<[1], [0], [0], [1], [0, 0, 1, 1], [], []>} : vector<2x64xbf16>, vector<64x5xbf16>, vector<2x5xf32> -> vector<2x5xf32>
    %340 = vector.extract_strided_slice %0 {offsets = [5, 0], sizes = [1, 5], strides = [1, 1]} : vector<8x128xf32> to vector<1x5xf32>
    %341 = vector.broadcast %340 : vector<1x5xf32> to vector<2x5xf32>
    %342 = arith.addf %339, %341 : vector<2x5xf32>
    %c0_91 = arith.constant 0 : index
    %c0_92 = arith.constant 0 : index
    %343 = vector.load %arg6[%c0_91, %c0_92] : memref<2x5xf32, #tpu.memory_space<vmem>>, vector<2x5xf32>
    tpu.vector_store %arg6[%c0_91, %c0_92], %342 {strides = array<i32>} : memref<2x5xf32, #tpu.memory_space<vmem>>, vector<2x5xf32>,
    return
  }
}

</mosaic_0001>

<llo_original>
// kernel: forward.1
$region0: #{forward.1}
  #allocation0 [shape = 'u32[]', space=smem, size = 0x4, offset = 0x4, fixed_abs, tag = 'smem constant byte address 0x4 - core index']
  #allocation1 [shape = 'u32[144,128]{1,0:T(1,128)}', space=vmem, size = 0x12000, scoped, tag = 'internal scratch']
  #allocation2 [shape = 'f32[2,48,16]{2,1,0:T(8,128)}', space=vmem, size = 0xc000, scoped, tag = 'scratch operand']
  #allocation3 [shape = 'f32[2,32,8]{2,1,0:T(8,128)}', space=vmem, size = 0x8000, scoped, tag = 'scratch operand']
  #allocation4 [shape = 'f32[2,24,16]{2,1,0:T(8,128)}', space=vmem, size = 0x6000, scoped, tag = 'scratch operand']
  %s0 = inlined_call_operand.vmem [shape: f32[2,32,16], index: 0, kind: input, shape index: {}]
  %s1 = inlined_call_operand.vmem [shape: f32[2,8,24], index: 1, kind: input, shape index: {}]
  %s2 = inlined_call_operand.vmem [shape: bf16[200,32], index: 2, kind: input, shape index: {}]
  %s3 = inlined_call_operand.vmem [shape: bf16[184,192], index: 3, kind: input, shape index: {}]
  %s4 = inlined_call_operand.vmem [shape: bf16[128,64], index: 4, kind: input, shape index: {}]
  %s5 = inlined_call_operand.vmem [shape: f32[8,128], index: 5, kind: input, shape index: {}]
  %s6 = inlined_call_operand.hbm [shape: f32[2,5], index: 6, kind: output, shape index: {0}]
  %s7 = inlined_call_operand.hbm [shape: f32[2,64], index: 7, kind: output, shape index: {1}]
  %8 = xla_tuple %s6, %s7
  %s9 = sld [smem:[#allocation0]]
  $region42: #{forward.1} parent=0
    _
  %s11 = ssub.s32 1, %s9
  %s12 = scalar_select 0, %s11, %s9
  $region1: #{forward.1} parent=0
    #allocation5 [shape = 'u8[1024]{0}', space=vmem, size = 0x400, scoped, tag = 'output window, operand 0, single buffered']
    #allocation6 [shape = 's32[1]{0}', space=sflag, size = 0x4, scoped, tag = 'scoped memory for forward.1']
    #allocation7 [shape = 'u8[1024]{0}', space=vmem, size = 0x400, scoped, tag = 'output window, operand 1, single buffered']
    #allocation8 [shape = 's32[1]{0}', space=sflag, size = 0x4, scoped, tag = 'scoped memory for forward.1']
    %13 = vsyncpa [#allocation6], 0
    %14 = vsyncpa [#allocation8], 0
    // Predicated region
    $region2: #{forward.1} parent=1 // pred_check
      _
    $region3: #{forward.1} parent=1 // pred_check_branch
      %16 = sbr.rel (0) target = $region5
    $region4: #{forward.1} parent=1 // pred_region
      _
    $region5: #{forward.1} parent=1 // pred_fallthru
      _
    // Predicated region
    $region6: #{forward.1} parent=1 // pred_check
      _
    $region7: #{forward.1} parent=1 // pred_check_branch
      %18 = sbr.rel (0) target = $region9
    $region8: #{forward.1} parent=1 // pred_region
      _
    $region9: #{forward.1} parent=1 // pred_fallthru
      _
    // Predicated region
    $region10: #{forward.1} parent=1 // pred_check
      _
    $region11: #{forward.1} parent=1 // pred_check_branch
      %20 = sbr.rel (0) target = $region13
    $region12: #{forward.1} parent=1 // pred_region
      _
    $region13: #{forward.1} parent=1 // pred_fallthru
      _
    // Predicated region
    $region14: #{forward.1} parent=1 // pred_check
      _
    $region15: #{forward.1} parent=1 // pred_check_branch
      %22 = sbr.rel (0) target = $region17
    $region16: #{forward.1} parent=1 // pred_region
      _
    $region17: #{forward.1} parent=1 // pred_fallthru
      _
    // Predicated region
    $region18: #{forward.1} parent=1 // pred_check
      _
    $region19: #{forward.1} parent=1 // pred_check_branch
      %24 = sbr.rel (0) target = $region21
    $region20: #{forward.1} parent=1 // pred_region
      _
    $region21: #{forward.1} parent=1 // pred_fallthru
      _
    // Predicated region
    $region22: #{forward.1} parent=1 // pred_check
      _
    $region23: #{forward.1} parent=1 // pred_check_branch
      %26 = sbr.rel (0) target = $region25
    $region24: #{forward.1} parent=1 // pred_region
      _
    $region25: #{forward.1} parent=1 // pred_fallthru
      _
    %v28 = vld [vmem:[%s5] sm:$0xff]
    %v29 = vld [vmem:[%s2] sm:$0xf]
    %v30 = vld [vmem:[%s2 + $0x4] sm:$0xf]
    %v31 = vld [vmem:[%s2 + $0x8] sm:$0xf]
    %v32 = vld [vmem:[%s2 + $0xc] sm:$0xf]
    %v33 = vld [vmem:[%s2 + $0x10] sm:$0xf]
    %v34 = vld [vmem:[%s2 + $0x14] sm:$0xf]
    %v35 = vld [vmem:[%s2 + $0x18] sm:$0xf]
    %v36 = vld [vmem:[%s2 + $0x1c] sm:$0xf]
    %v37 = vld [vmem:[%s2 + $0x20] sm:$0xf]
    %v38 = vld [vmem:[%s2 + $0x24] sm:$0xf]
    %v39 = vld [vmem:[%s2 + $0x28] sm:$0xf]
    %v40 = vld [vmem:[%s2 + $0x2c] sm:$0xf]
    %v41 = vld [vmem:[%s2 + $0x30] sm:$0xf]
    %v42 = vld [vmem:[%s2 + $0x34] sm:$0xf]
    %v43 = vld [vmem:[%s2 + $0x38] sm:$0xf]
    %v44 = vld [vmem:[%s2 + $0x3c] sm:$0xf]
    %v45 = vld [vmem:[%s2 + $0x40] sm:$0xf]
    %v46 = vld [vmem:[%s2 + $0x44] sm:$0xf]
    %v47 = vld [vmem:[%s2 + $0x48] sm:$0xf]
    %v48 = vld [vmem:[%s2 + $0x4c] sm:$0xf]
    %v49 = vld [vmem:[%s2 + $0x50] sm:$0xf]
    %v50 = vld [vmem:[%s2 + $0x54] sm:$0xf]
    %v51 = vld [vmem:[%s2 + $0x58] sm:$0xf]
    %v52 = vld [vmem:[%s2 + $0x5c] sm:$0xf]
    %v53 = vld [vmem:[%s2 + $0x60] sm:$0xf]
    %v54 = vld [vmem:[%s0] sm:$0xff]
    %v55 = vld [vmem:[%s0 + $0x8] sm:$0xff]
    %v56 = vld [vmem:[%s0 + $0x10] sm:$0xff]
    %v57 = vld [vmem:[%s0 + $0x18] sm:$0xff]
    %v58 = vld [vmem:[%s0 + $0x20] sm:$0xff]
    %v59 = vld [vmem:[%s0 + $0x28] sm:$0xff]
    %v60 = vld [vmem:[%s0 + $0x30] sm:$0xff]
    %v61 = vld [vmem:[%s0 + $0x38] sm:$0xff]
    %vm62 = vcmask 130048
    %63 = vst.msk [vmem:[#allocation2] sm:$0xff] %vm62, 0.0
    %64 = vst.msk [vmem:[#allocation2 + $0x30] sm:$0xff] %vm62, 0.0
    %65 = vst.msk [vmem:[#allocation2 + $0x28] sm:$0xff] %vm62, 0.0
    %66 = vst.msk [vmem:[#allocation2 + $0x58] sm:$0xff] %vm62, 0.0
    %67 = vst.msk [vmem:[#allocation2 + $0x8] sm:$0xff] %vm62, %v54
    %68 = vst.msk [vmem:[#allocation2 + $0x10] sm:$0xff] %vm62, %v55
    %69 = vst.msk [vmem:[#allocation2 + $0x18] sm:$0xff] %vm62, %v56
    %70 = vst.msk [vmem:[#allocation2 + $0x20] sm:$0xff] %vm62, %v57
    %71 = vst.msk [vmem:[#allocation2 + $0x38] sm:$0xff] %vm62, %v58
    %72 = vst.msk [vmem:[#allocation2 + $0x40] sm:$0xff] %vm62, %v59
    %73 = vst.msk [vmem:[#allocation2 + $0x48] sm:$0xff] %vm62, %v60
    %74 = vst.msk [vmem:[#allocation2 + $0x50] sm:$0xff] %vm62, %v61
    %v75 = vld [vmem:[#allocation2] sm:$0xff]
    %v76 = vld [vmem:[#allocation2 + $0x8] sm:$0xff]
    %v77 = vld [vmem:[#allocation2 + $0x10] sm:$0xff]
    %v78 = vld [vmem:[#allocation2 + $0x18] sm:$0xff]
    %v79 = vld [vmem:[#allocation2 + $0x20] sm:$0xff]
    %v80 = vld [vmem:[#allocation2 + $0x28] sm:$0xff]
    %v81 = vld [vmem:[#allocation2 + $0x30] sm:$0xff]
    %v82 = vld [vmem:[#allocation2 + $0x38] sm:$0xff]
    %v83 = vld [vmem:[#allocation2 + $0x40] sm:$0xff]
    %v84 = vld [vmem:[#allocation2 + $0x48] sm:$0xff]
    %v85 = vld [vmem:[#allocation2 + $0x50] sm:$0xff]
    %v86 = vld [vmem:[#allocation2 + $0x58] sm:$0xff]
    %vm97 = vcmask 1046528
    %v98 = vrot.slane %v75, 1
    %v99 = vrot.slane %v76, 1
    %v100 = vsel %vm97, %v98, %v99
    %v101 = vrot.slane %v77, 1
    %v102 = vsel %vm97, %v99, %v101
    %v103 = vrot.slane %v78, 1
    %v104 = vsel %vm97, %v101, %v103
    %v105 = vrot.slane %v79, 1
    %v106 = vsel %vm97, %v103, %v105
    %v107 = vrot.slane %v81, 1
    %v108 = vrot.slane %v82, 1
    %v109 = vsel %vm97, %v107, %v108
    %v110 = vrot.slane %v83, 1
    %v111 = vsel %vm97, %v108, %v110
    %v112 = vrot.slane %v84, 1
    %v113 = vsel %vm97, %v110, %v112
    %v114 = vrot.slane %v85, 1
    %v115 = vsel %vm97, %v112, %v114
    %116 = vrot.lane.b32.xlu0 %v100, 16
    %v117 = vpop.permute.xlu0 %116
    %118 = vrot.lane.b32.xlu0 %v102, 16
    %v119 = vpop.permute.xlu0 %118
    %120 = vrot.lane.b32.xlu0 %v104, 16
    %v121 = vpop.permute.xlu0 %120
    %122 = vrot.lane.b32.xlu0 %v106, 16
    %v123 = vpop.permute.xlu0 %122
    %124 = vrot.lane.b32.xlu0 %v105, 16
    %v125 = vpop.permute.xlu0 %124
    %126 = vrot.lane.b32.xlu0 %v109, 16
    %v127 = vpop.permute.xlu0 %126
    %128 = vrot.lane.b32.xlu0 %v111, 16
    %v129 = vpop.permute.xlu0 %128
    %130 = vrot.lane.b32.xlu0 %v113, 16
    %v131 = vpop.permute.xlu0 %130
    %132 = vrot.lane.b32.xlu0 %v115, 16
    %v133 = vpop.permute.xlu0 %132
    %134 = vrot.lane.b32.xlu0 %v114, 16
    %v135 = vpop.permute.xlu0 %134
    %vm146 = vcmask 1045504
    %v147 = vrot.slane %v76, 2
    %v148 = vrot.slane %v77, 2
    %v149 = vsel %vm146, %v147, %v148
    %v150 = vrot.slane %v78, 2
    %v151 = vsel %vm146, %v148, %v150
    %v152 = vrot.slane %v79, 2
    %v153 = vsel %vm146, %v150, %v152
    %v154 = vrot.slane %v82, 2
    %v155 = vrot.slane %v83, 2
    %v156 = vsel %vm146, %v154, %v155
    %v157 = vrot.slane %v84, 2
    %v158 = vsel %vm146, %v155, %v157
    %v159 = vrot.slane %v85, 2
    %v160 = vsel %vm146, %v157, %v159
    %161 = vrot.lane.b32.xlu0 %v147, 32
    %v162 = vpop.permute.xlu0 %161
    %163 = vrot.lane.b32.xlu0 %v149, 32
    %v164 = vpop.permute.xlu0 %163
    %165 = vrot.lane.b32.xlu0 %v151, 32
    %v166 = vpop.permute.xlu0 %165
    %167 = vrot.lane.b32.xlu0 %v153, 32
    %v168 = vpop.permute.xlu0 %167
    %169 = vrot.lane.b32.xlu0 %v152, 32
    %v170 = vpop.permute.xlu0 %169
    %171 = vrot.lane.b32.xlu0 %v154, 32
    %v172 = vpop.permute.xlu0 %171
    %173 = vrot.lane.b32.xlu0 %v156, 32
    %v174 = vpop.permute.xlu0 %173
    %175 = vrot.lane.b32.xlu0 %v158, 32
    %v176 = vpop.permute.xlu0 %175
    %177 = vrot.lane.b32.xlu0 %v160, 32
    %v178 = vpop.permute.xlu0 %177
    %179 = vrot.lane.b32.xlu0 %v159, 32
    %v180 = vpop.permute.xlu0 %179
    %vm193 = vcmask 1044480
    %v194 = vrot.slane %v76, 3
    %v195 = vrot.slane %v77, 3
    %v196 = vsel %vm193, %v194, %v195
    %v197 = vrot.slane %v78, 3
    %v198 = vsel %vm193, %v195, %v197
    %v199 = vrot.slane %v79, 3
    %v200 = vsel %vm193, %v197, %v199
    %v201 = vrot.slane %v80, 3
    %v202 = vsel %vm193, %v199, %v201
    %v203 = vrot.slane %v82, 3
    %v204 = vrot.slane %v83, 3
    %v205 = vsel %vm193, %v203, %v204
    %v206 = vrot.slane %v84, 3
    %v207 = vsel %vm193, %v204, %v206
    %v208 = vrot.slane %v85, 3
    %v209 = vsel %vm193, %v206, %v208
    %v210 = vrot.slane %v86, 3
    %v211 = vsel %vm193, %v208, %v210
    %212 = vrot.lane.b32.xlu0 %v194, 48
    %v213 = vpop.permute.xlu0 %212
    %214 = vrot.lane.b32.xlu0 %v196, 48
    %v215 = vpop.permute.xlu0 %214
    %216 = vrot.lane.b32.xlu0 %v198, 48
    %v217 = vpop.permute.xlu0 %216
    %218 = vrot.lane.b32.xlu0 %v200, 48
    %v219 = vpop.permute.xlu0 %218
    %220 = vrot.lane.b32.xlu0 %v202, 48
    %v221 = vpop.permute.xlu0 %220
    %222 = vrot.lane.b32.xlu0 %v203, 48
    %v223 = vpop.permute.xlu0 %222
    %224 = vrot.lane.b32.xlu0 %v205, 48
    %v225 = vpop.permute.xlu0 %224
    %226 = vrot.lane.b32.xlu0 %v207, 48
    %v227 = vpop.permute.xlu0 %226
    %228 = vrot.lane.b32.xlu0 %v209, 48
    %v229 = vpop.permute.xlu0 %228
    %230 = vrot.lane.b32.xlu0 %v211, 48
    %v231 = vpop.permute.xlu0 %230
    %vm242 = vcmask 1043456
    %v243 = vrot.slane %v76, 4
    %v244 = vrot.slane %v77, 4
    %v245 = vsel %vm242, %v243, %v244
    %v246 = vrot.slane %v78, 4
    %v247 = vsel %vm242, %v244, %v246
    %v248 = vrot.slane %v79, 4
    %v249 = vsel %vm242, %v246, %v248
    %v250 = vrot.slane %v80, 4
    %v251 = vsel %vm242, %v248, %v250
    %v252 = vrot.slane %v82, 4
    %v253 = vrot.slane %v83, 4
    %v254 = vsel %vm242, %v252, %v253
    %v255 = vrot.slane %v84, 4
    %v256 = vsel %vm242, %v253, %v255
    %v257 = vrot.slane %v85, 4
    %v258 = vsel %vm242, %v255, %v257
    %v259 = vrot.slane %v86, 4
    %v260 = vsel %vm242, %v257, %v259
    %261 = vrot.lane.b32.xlu0 %v243, 64
    %v262 = vpop.permute.xlu0 %261
    %263 = vrot.lane.b32.xlu0 %v245, 64
    %v264 = vpop.permute.xlu0 %263
    %265 = vrot.lane.b32.xlu0 %v247, 64
    %v266 = vpop.permute.xlu0 %265
    %267 = vrot.lane.b32.xlu0 %v249, 64
    %v268 = vpop.permute.xlu0 %267
    %269 = vrot.lane.b32.xlu0 %v251, 64
    %v270 = vpop.permute.xlu0 %269
    %271 = vrot.lane.b32.xlu0 %v252, 64
    %v272 = vpop.permute.xlu0 %271
    %273 = vrot.lane.b32.xlu0 %v254, 64
    %v274 = vpop.permute.xlu0 %273
    %275 = vrot.lane.b32.xlu0 %v256, 64
    %v276 = vpop.permute.xlu0 %275
    %277 = vrot.lane.b32.xlu0 %v258, 64
    %v278 = vpop.permute.xlu0 %277
    %279 = vrot.lane.b32.xlu0 %v260, 64
    %v280 = vpop.permute.xlu0 %279
    %v291 = vsel %vm62, %v75, %v117
    %v292 = vsel %vm62, %v76, %v119
    %v293 = vsel %vm62, %v77, %v121
    %v294 = vsel %vm62, %v78, %v123
    %v295 = vsel %vm62, %v79, %v125
    %v296 = vsel %vm62, %v81, %v127
    %v297 = vsel %vm62, %v82, %v129
    %v298 = vsel %vm62, %v83, %v131
    %v299 = vsel %vm62, %v84, %v133
    %v300 = vsel %vm62, %v85, %v135
    %vm301 = vcmask 261120
    %v302 = vsel %vm301, %v291, %v162
    %v303 = vsel %vm301, %v292, %v164
    %v304 = vsel %vm301, %v293, %v166
    %v305 = vsel %vm301, %v294, %v168
    %v306 = vsel %vm301, %v295, %v170
    %v307 = vsel %vm301, %v296, %v172
    %v308 = vsel %vm301, %v297, %v174
    %v309 = vsel %vm301, %v298, %v176
    %v310 = vsel %vm301, %v299, %v178
    %v311 = vsel %vm301, %v300, %v180
    %vm312 = vcmask 392192
    %v313 = vsel %vm312, %v302, %v213
    %v314 = vsel %vm312, %v303, %v215
    %v315 = vsel %vm312, %v304, %v217
    %v316 = vsel %vm312, %v305, %v219
    %v317 = vsel %vm312, %v306, %v221
    %v318 = vsel %vm312, %v307, %v223
    %v319 = vsel %vm312, %v308, %v225
    %v320 = vsel %vm312, %v309, %v227
    %v321 = vsel %vm312, %v310, %v229
    %v322 = vsel %vm312, %v311, %v231
    %vm323 = vcmask 523264
    %v324 = vsel %vm323, %v313, %v262
    %v325 = vsel %vm323, %v314, %v264
    %v326 = vsel %vm323, %v315, %v266
    %v327 = vsel %vm323, %v316, %v268
    %v328 = vsel %vm323, %v317, %v270
    %v329 = vsel %vm323, %v318, %v272
    %v330 = vsel %vm323, %v319, %v274
    %v331 = vsel %vm323, %v320, %v276
    %v332 = vsel %vm323, %v321, %v278
    %v333 = vsel %vm323, %v322, %v280
    %vm344 = vcmask 1041408
    %v345 = vrot.slane %v324, 6
    %v346 = vrot.slane %v325, 6
    %v347 = vsel %vm344, %v345, %v346
    %v348 = vrot.slane %v326, 6
    %v349 = vsel %vm344, %v346, %v348
    %v350 = vrot.slane %v327, 6
    %v351 = vsel %vm344, %v348, %v350
    %v352 = vrot.slane %v328, 6
    %v353 = vsel %vm344, %v350, %v352
    %v354 = vrot.slane %v329, 6
    %v355 = vrot.slane %v330, 6
    %v356 = vsel %vm344, %v354, %v355
    %v357 = vrot.slane %v331, 6
    %v358 = vsel %vm344, %v355, %v357
    %v359 = vrot.slane %v332, 6
    %v360 = vsel %vm344, %v357, %v359
    %v361 = vrot.slane %v333, 6
    %v362 = vsel %vm344, %v359, %v361
    %v371 = vpack.c.bf16 %v349, %v347
    %v372 = vpack.c.bf16 %v353, %v351
    %v373 = vpack.c.bf16 %v358, %v356
    %v374 = vpack.c.bf16 %v362, %v360
    %v375 = vlaneseq
    %v376 = vshrl.u32 %v375, 7
    %v377 = vsub.s32 0, %v376
    %v378 = vrot.slane %v28, %v377
    %v389 = vunpack.c.l.b16 %v29
    %v390 = vunpack.c.l.b16 %v30
    %v391 = vunpack.c.l.b16 %v31
    %v392 = vunpack.c.l.b16 %v32
    %v393 = vunpack.c.l.b16 %v33
    %v394 = vunpack.c.l.b16 %v34
    %v395 = vunpack.c.l.b16 %v35
    %v396 = vunpack.c.l.b16 %v36
    %v397 = vunpack.c.l.b16 %v37
    %v398 = vunpack.c.l.b16 %v38
    %v399 = vpack.c.b16 %v390, %v389
    %v400 = vpack.c.b16 %v392, %v391
    %v401 = vpack.c.b16 %v394, %v393
    %v402 = vpack.c.b16 %v396, %v395
    %v403 = vpack.c.b16 %v398, %v397
    %vm409 = vcmask 654336
    %v411 = vsel %vm409, %v371, 0
    %v414 = vsel %vm409, %v372, 0
    %v417 = vsel %vm409, %v373, 0
    %v420 = vsel %vm409, %v374, 0
    %422 = vmatprep.subr.bf16.mxu0 0
    %423 = vmatpush1.bf16.msra.mxu0 %v399
    %424 = vmatprep.subr.bf16.mxu0 0
    %425 = vmatpush1.bf16.msra.mxu0 %v400
    %426 = vmatprep.subr.bf16.mxu0 0
    %427 = vmatpush1.bf16.msra.mxu0 %v401
    %428 = vmatprep.subr.bf16.mxu0 0
    %429 = vmatpush1.bf16.msra.mxu0 %v402
    %430 = vmatprep.subr.bf16.mxu0 0
    %431 = vmatpush1.bf16.msra.mxu0 %v403
    %432 = vmatprep.subr.bf16.mxu0 0
    %433 = vmatpush1.bf16.msra.mxu0 0
    %434 = vmatprep.subr.bf16.mxu0 0
    %435 = vmatpush1.bf16.msra.mxu0 0
    %436 = vmatprep.subr.bf16.mxu0 0
    %437 = vmatpush1.bf16.msra.mxu0 0
    %438 = vmatprep.subr.bf16.mxu0 0
    %439 = vmatpush1.bf16.msra.mxu0 0
    %440 = vmatprep.subr.bf16.mxu0 0
    %441 = vmatpush1.bf16.msra.mxu0 0
    %442 = vmatprep.subr.bf16.mxu0 0
    %443 = vmatpush1.bf16.msra.mxu0 0
    %444 = vmatprep.subr.bf16.mxu0 0
    %445 = vmatpush1.bf16.msra.mxu0 0
    %446 = vmatprep.subr.bf16.mxu0 0
    %447 = vmatpush1.bf16.msra.mxu0 0
    %448 = vmatprep.subr.bf16.mxu0 0
    %449 = vmatpush1.bf16.msra.mxu0 0
    %450 = vmatprep.subr.bf16.mxu0 0
    %451 = vmatpush1.bf16.msra.mxu0 0
    %452 = vmatprep.subr.bf16.mxu0 0
    %453 = vmatpush1.bf16.msra.mxu0 0
    %454 = vmatprep.mubr.bf16.mxu0 0
    %455 = vmatmul.mubr.bf16.gmra.mrb[0].mxu0 %v411
    %v456 = vpop.f32.mrb[0].mxu0
    %v457 = vadd.f32 %v378, %v456
    %v458 = vpop.f32.mrb[0].mxu0
    %v459 = vpop.f32.mrb[0].mxu0
    %v460 = vadd.f32 %v378, %v459
    %v461 = vpop.f32.mrb[0].mxu0
    %462 = vmatprep.mubr.bf16.mxu0 0
    %463 = vmatmul.mubr.bf16.gmra.mrb[0].mxu0 %v414
    %v464 = vpop.f32.mrb[0].mxu0
    %v465 = vadd.f32 %v378, %v464
    %v466 = vpop.f32.mrb[0].mxu0
    %v467 = vpop.f32.mrb[0].mxu0
    %v468 = vadd.f32 %v378, %v467
    %v469 = vpop.f32.mrb[0].mxu0
    %470 = vmatprep.mubr.bf16.mxu0 0
    %471 = vmatmul.mubr.bf16.gmra.mrb[0].mxu0 %v417
    %v472 = vpop.f32.mrb[0].mxu0
    %v473 = vadd.f32 %v378, %v472
    %v474 = vpop.f32.mrb[0].mxu0
    %v475 = vpop.f32.mrb[0].mxu0
    %v476 = vadd.f32 %v378, %v475
    %v477 = vpop.f32.mrb[0].mxu0
    %478 = vmatprep.mubr.bf16.mxu0 0
    %479 = vmatmul.mubr.bf16.gmra.mrb[0].mxu0 %v420
    %v480 = vpop.f32.mrb[0].mxu0
    %v481 = vadd.f32 %v378, %v480
    %v482 = vpop.f32.mrb[0].mxu0
    %v483 = vpop.f32.mrb[0].mxu0
    %v484 = vadd.f32 %v378, %v483
    %v485 = vpop.f32.mrb[0].mxu0
    %486 = vdwg.mxu0
    %v487 = vmax.f32 %v457, 0.0
    %v488 = vmax.f32 %v460, 0.0
    %v489 = vmax.f32 %v465, 0.0
    %v490 = vmax.f32 %v468, 0.0
    %v491 = vmax.f32 %v473, 0.0
    %v492 = vmax.f32 %v476, 0.0
    %v493 = vmax.f32 %v481, 0.0
    %v494 = vmax.f32 %v484, 0.0
    %v503 = vcombine.high %v487, %v487
    %v505 = vunpack.c.l.s4 1983009808
    %v506 = vunpack.c.0.s8 %v505
    %v507 = vlaneseq
    %v508 = vshrl.u32 %v507, 7
    %v509 = vsub.s32 %v506, %v508
    %v510 = vrot.slane %v487, %v509
    %v512 = vunpack.c.l.s4 1983009808
    %v513 = vunpack.c.0.s8 %v512
    %v514 = vlaneseq
    %v515 = vshrl.u32 %v514, 7
    %v516 = vsub.s32 %v513, %v515
    %v517 = vrot.slane %v503, %v516
    %v518 = vcombine.high %v510, %v510
    %v519 = vcombine.high %v517, %v517
    %v520 = vcombine.high %v488, %v488
    %v522 = vunpack.c.l.s4 1983009808
    %v523 = vunpack.c.0.s8 %v522
    %v524 = vlaneseq
    %v525 = vshrl.u32 %v524, 7
    %v526 = vsub.s32 %v523, %v525
    %v527 = vrot.slane %v488, %v526
    %v529 = vunpack.c.l.s4 1983009808
    %v530 = vunpack.c.0.s8 %v529
    %v531 = vlaneseq
    %v532 = vshrl.u32 %v531, 7
    %v533 = vsub.s32 %v530, %v532
    %v534 = vrot.slane %v520, %v533
    %v535 = vcombine.high %v527, %v527
    %v536 = vcombine.high %v534, %v534
    %v537 = vcombine.high %v489, %v489
    %v539 = vunpack.c.l.s4 1983009808
    %v540 = vunpack.c.0.s8 %v539
    %v541 = vlaneseq
    %v542 = vshrl.u32 %v541, 7
    %v543 = vsub.s32 %v540, %v542
    %v544 = vrot.slane %v489, %v543
    %v546 = vunpack.c.l.s4 1983009808
    %v547 = vunpack.c.0.s8 %v546
    %v548 = vlaneseq
    %v549 = vshrl.u32 %v548, 7
    %v550 = vsub.s32 %v547, %v549
    %v551 = vrot.slane %v537, %v550
    %v552 = vcombine.high %v544, %v544
    %v553 = vcombine.high %v551, %v551
    %v554 = vcombine.high %v490, %v490
    %v556 = vunpack.c.l.s4 1983009808
    %v557 = vunpack.c.0.s8 %v556
    %v558 = vlaneseq
    %v559 = vshrl.u32 %v558, 7
    %v560 = vsub.s32 %v557, %v559
    %v561 = vrot.slane %v490, %v560
    %v563 = vunpack.c.l.s4 1983009808
    %v564 = vunpack.c.0.s8 %v563
    %v565 = vlaneseq
    %v566 = vshrl.u32 %v565, 7
    %v567 = vsub.s32 %v564, %v566
    %v568 = vrot.slane %v554, %v567
    %v569 = vcombine.high %v561, %v561
    %v570 = vcombine.high %v568, %v568
    %v571 = vcombine.high %v491, %v491
    %v573 = vunpack.c.l.s4 1983009808
    %v574 = vunpack.c.0.s8 %v573
    %v575 = vlaneseq
    %v576 = vshrl.u32 %v575, 7
    %v577 = vsub.s32 %v574, %v576
    %v578 = vrot.slane %v491, %v577
    %v580 = vunpack.c.l.s4 1983009808
    %v581 = vunpack.c.0.s8 %v580
    %v582 = vlaneseq
    %v583 = vshrl.u32 %v582, 7
    %v584 = vsub.s32 %v581, %v583
    %v585 = vrot.slane %v571, %v584
    %v586 = vcombine.high %v578, %v578
    %v587 = vcombine.high %v585, %v585
    %v588 = vcombine.high %v492, %v492
    %v590 = vunpack.c.l.s4 1983009808
    %v591 = vunpack.c.0.s8 %v590
    %v592 = vlaneseq
    %v593 = vshrl.u32 %v592, 7
    %v594 = vsub.s32 %v591, %v593
    %v595 = vrot.slane %v492, %v594
    %v597 = vunpack.c.l.s4 1983009808
    %v598 = vunpack.c.0.s8 %v597
    %v599 = vlaneseq
    %v600 = vshrl.u32 %v599, 7
    %v601 = vsub.s32 %v598, %v600
    %v602 = vrot.slane %v588, %v601
    %v603 = vcombine.high %v595, %v595
    %v604 = vcombine.high %v602, %v602
    %v605 = vcombine.high %v493, %v493
    %v607 = vunpack.c.l.s4 1983009808
    %v608 = vunpack.c.0.s8 %v607
    %v609 = vlaneseq
    %v610 = vshrl.u32 %v609, 7
    %v611 = vsub.s32 %v608, %v610
    %v612 = vrot.slane %v493, %v611
    %v614 = vunpack.c.l.s4 1983009808
    %v615 = vunpack.c.0.s8 %v614
    %v616 = vlaneseq
    %v617 = vshrl.u32 %v616, 7
    %v618 = vsub.s32 %v615, %v617
    %v619 = vrot.slane %v605, %v618
    %v620 = vcombine.high %v612, %v612
    %v621 = vcombine.high %v619, %v619
    %v622 = vcombine.high %v494, %v494
    %v624 = vunpack.c.l.s4 1983009808
    %v625 = vunpack.c.0.s8 %v624
    %v626 = vlaneseq
    %v627 = vshrl.u32 %v626, 7
    %v628 = vsub.s32 %v625, %v627
    %v629 = vrot.slane %v494, %v628
    %v631 = vunpack.c.l.s4 1983009808
    %v632 = vunpack.c.0.s8 %v631
    %v633 = vlaneseq
    %v634 = vshrl.u32 %v633, 7
    %v635 = vsub.s32 %v632, %v634
    %v636 = vrot.slane %v622, %v635
    %v637 = vcombine.high %v629, %v629
    %v638 = vcombine.high %v636, %v636
    %vm671 = vcmask 58368
    %v672 = vsel %vm671, %v510, -inf
    %v673 = vrot.slane %v672, 4
    %v674 = vmax.f32 %v672, %v673
    %v675 = vrot.slane %v674, 2
    %v676 = vmax.f32 %v674, %v675
    %v677 = vrot.slane %v676, 1
    %v678 = vmax.f32 %v676, %v677
    %v679 = vsel %vm671, %v518, -inf
    %v680 = vrot.slane %v679, 4
    %v681 = vmax.f32 %v679, %v680
    %v682 = vrot.slane %v681, 2
    %v683 = vmax.f32 %v681, %v682
    %v684 = vrot.slane %v683, 1
    %v685 = vmax.f32 %v683, %v684
    %v686 = vsel %vm671, %v517, -inf
    %v687 = vrot.slane %v686, 4
    %v688 = vmax.f32 %v686, %v687
    %v689 = vrot.slane %v688, 2
    %v690 = vmax.f32 %v688, %v689
    %v691 = vrot.slane %v690, 1
    %v692 = vmax.f32 %v690, %v691
    %v693 = vsel %vm671, %v519, -inf
    %v694 = vrot.slane %v693, 4
    %v695 = vmax.f32 %v693, %v694
    %v696 = vrot.slane %v695, 2
    %v697 = vmax.f32 %v695, %v696
    %v698 = vrot.slane %v697, 1
    %v699 = vmax.f32 %v697, %v698
    %v700 = vsel %vm671, %v527, -inf
    %v701 = vrot.slane %v700, 4
    %v702 = vmax.f32 %v700, %v701
    %v703 = vrot.slane %v702, 2
    %v704 = vmax.f32 %v702, %v703
    %v705 = vrot.slane %v704, 1
    %v706 = vmax.f32 %v704, %v705
    %v707 = vsel %vm671, %v535, -inf
    %v708 = vrot.slane %v707, 4
    %v709 = vmax.f32 %v707, %v708
    %v710 = vrot.slane %v709, 2
    %v711 = vmax.f32 %v709, %v710
    %v712 = vrot.slane %v711, 1
    %v713 = vmax.f32 %v711, %v712
    %v714 = vsel %vm671, %v534, -inf
    %v715 = vrot.slane %v714, 4
    %v716 = vmax.f32 %v714, %v715
    %v717 = vrot.slane %v716, 2
    %v718 = vmax.f32 %v716, %v717
    %v719 = vrot.slane %v718, 1
    %v720 = vmax.f32 %v718, %v719
    %v721 = vsel %vm671, %v536, -inf
    %v722 = vrot.slane %v721, 4
    %v723 = vmax.f32 %v721, %v722
    %v724 = vrot.slane %v723, 2
    %v725 = vmax.f32 %v723, %v724
    %v726 = vrot.slane %v725, 1
    %v727 = vmax.f32 %v725, %v726
    %v728 = vsel %vm671, %v544, -inf
    %v729 = vrot.slane %v728, 4
    %v730 = vmax.f32 %v728, %v729
    %v731 = vrot.slane %v730, 2
    %v732 = vmax.f32 %v730, %v731
    %v733 = vrot.slane %v732, 1
    %v734 = vmax.f32 %v732, %v733
    %v735 = vsel %vm671, %v552, -inf
    %v736 = vrot.slane %v735, 4
    %v737 = vmax.f32 %v735, %v736
    %v738 = vrot.slane %v737, 2
    %v739 = vmax.f32 %v737, %v738
    %v740 = vrot.slane %v739, 1
    %v741 = vmax.f32 %v739, %v740
    %v742 = vsel %vm671, %v551, -inf
    %v743 = vrot.slane %v742, 4
    %v744 = vmax.f32 %v742, %v743
    %v745 = vrot.slane %v744, 2
    %v746 = vmax.f32 %v744, %v745
    %v747 = vrot.slane %v746, 1
    %v748 = vmax.f32 %v746, %v747
    %v749 = vsel %vm671, %v553, -inf
    %v750 = vrot.slane %v749, 4
    %v751 = vmax.f32 %v749, %v750
    %v752 = vrot.slane %v751, 2
    %v753 = vmax.f32 %v751, %v752
    %v754 = vrot.slane %v753, 1
    %v755 = vmax.f32 %v753, %v754
    %v756 = vsel %vm671, %v561, -inf
    %v757 = vrot.slane %v756, 4
    %v758 = vmax.f32 %v756, %v757
    %v759 = vrot.slane %v758, 2
    %v760 = vmax.f32 %v758, %v759
    %v761 = vrot.slane %v760, 1
    %v762 = vmax.f32 %v760, %v761
    %v763 = vsel %vm671, %v569, -inf
    %v764 = vrot.slane %v763, 4
    %v765 = vmax.f32 %v763, %v764
    %v766 = vrot.slane %v765, 2
    %v767 = vmax.f32 %v765, %v766
    %v768 = vrot.slane %v767, 1
    %v769 = vmax.f32 %v767, %v768
    %v770 = vsel %vm671, %v568, -inf
    %v771 = vrot.slane %v770, 4
    %v772 = vmax.f32 %v770, %v771
    %v773 = vrot.slane %v772, 2
    %v774 = vmax.f32 %v772, %v773
    %v775 = vrot.slane %v774, 1
    %v776 = vmax.f32 %v774, %v775
    %v777 = vsel %vm671, %v570, -inf
    %v778 = vrot.slane %v777, 4
    %v779 = vmax.f32 %v777, %v778
    %v780 = vrot.slane %v779, 2
    %v781 = vmax.f32 %v779, %v780
    %v782 = vrot.slane %v781, 1
    %v783 = vmax.f32 %v781, %v782
    %v784 = vsel %vm671, %v578, -inf
    %v785 = vrot.slane %v784, 4
    %v786 = vmax.f32 %v784, %v785
    %v787 = vrot.slane %v786, 2
    %v788 = vmax.f32 %v786, %v787
    %v789 = vrot.slane %v788, 1
    %v790 = vmax.f32 %v788, %v789
    %v791 = vsel %vm671, %v586, -inf
    %v792 = vrot.slane %v791, 4
    %v793 = vmax.f32 %v791, %v792
    %v794 = vrot.slane %v793, 2
    %v795 = vmax.f32 %v793, %v794
    %v796 = vrot.slane %v795, 1
    %v797 = vmax.f32 %v795, %v796
    %v798 = vsel %vm671, %v585, -inf
    %v799 = vrot.slane %v798, 4
    %v800 = vmax.f32 %v798, %v799
    %v801 = vrot.slane %v800, 2
    %v802 = vmax.f32 %v800, %v801
    %v803 = vrot.slane %v802, 1
    %v804 = vmax.f32 %v802, %v803
    %v805 = vsel %vm671, %v587, -inf
    %v806 = vrot.slane %v805, 4
    %v807 = vmax.f32 %v805, %v806
    %v808 = vrot.slane %v807, 2
    %v809 = vmax.f32 %v807, %v808
    %v810 = vrot.slane %v809, 1
    %v811 = vmax.f32 %v809, %v810
    %v812 = vsel %vm671, %v595, -inf
    %v813 = vrot.slane %v812, 4
    %v814 = vmax.f32 %v812, %v813
    %v815 = vrot.slane %v814, 2
    %v816 = vmax.f32 %v814, %v815
    %v817 = vrot.slane %v816, 1
    %v818 = vmax.f32 %v816, %v817
    %v819 = vsel %vm671, %v603, -inf
    %v820 = vrot.slane %v819, 4
    %v821 = vmax.f32 %v819, %v820
    %v822 = vrot.slane %v821, 2
    %v823 = vmax.f32 %v821, %v822
    %v824 = vrot.slane %v823, 1
    %v825 = vmax.f32 %v823, %v824
    %v826 = vsel %vm671, %v602, -inf
    %v827 = vrot.slane %v826, 4
    %v828 = vmax.f32 %v826, %v827
    %v829 = vrot.slane %v828, 2
    %v830 = vmax.f32 %v828, %v829
    %v831 = vrot.slane %v830, 1
    %v832 = vmax.f32 %v830, %v831
    %v833 = vsel %vm671, %v604, -inf
    %v834 = vrot.slane %v833, 4
    %v835 = vmax.f32 %v833, %v834
    %v836 = vrot.slane %v835, 2
    %v837 = vmax.f32 %v835, %v836
    %v838 = vrot.slane %v837, 1
    %v839 = vmax.f32 %v837, %v838
    %v840 = vsel %vm671, %v612, -inf
    %v841 = vrot.slane %v840, 4
    %v842 = vmax.f32 %v840, %v841
    %v843 = vrot.slane %v842, 2
    %v844 = vmax.f32 %v842, %v843
    %v845 = vrot.slane %v844, 1
    %v846 = vmax.f32 %v844, %v845
    %v847 = vsel %vm671, %v620, -inf
    %v848 = vrot.slane %v847, 4
    %v849 = vmax.f32 %v847, %v848
    %v850 = vrot.slane %v849, 2
    %v851 = vmax.f32 %v849, %v850
    %v852 = vrot.slane %v851, 1
    %v853 = vmax.f32 %v851, %v852
    %v854 = vsel %vm671, %v619, -inf
    %v855 = vrot.slane %v854, 4
    %v856 = vmax.f32 %v854, %v855
    %v857 = vrot.slane %v856, 2
    %v858 = vmax.f32 %v856, %v857
    %v859 = vrot.slane %v858, 1
    %v860 = vmax.f32 %v858, %v859
    %v861 = vsel %vm671, %v621, -inf
    %v862 = vrot.slane %v861, 4
    %v863 = vmax.f32 %v861, %v862
    %v864 = vrot.slane %v863, 2
    %v865 = vmax.f32 %v863, %v864
    %v866 = vrot.slane %v865, 1
    %v867 = vmax.f32 %v865, %v866
    %v868 = vsel %vm671, %v629, -inf
    %v869 = vrot.slane %v868, 4
    %v870 = vmax.f32 %v868, %v869
    %v871 = vrot.slane %v870, 2
    %v872 = vmax.f32 %v870, %v871
    %v873 = vrot.slane %v872, 1
    %v874 = vmax.f32 %v872, %v873
    %v875 = vsel %vm671, %v637, -inf
    %v876 = vrot.slane %v875, 4
    %v877 = vmax.f32 %v875, %v876
    %v878 = vrot.slane %v877, 2
    %v879 = vmax.f32 %v877, %v878
    %v880 = vrot.slane %v879, 1
    %v881 = vmax.f32 %v879, %v880
    %v882 = vsel %vm671, %v636, -inf
    %v883 = vrot.slane %v882, 4
    %v884 = vmax.f32 %v882, %v883
    %v885 = vrot.slane %v884, 2
    %v886 = vmax.f32 %v884, %v885
    %v887 = vrot.slane %v886, 1
    %v888 = vmax.f32 %v886, %v887
    %v889 = vsel %vm671, %v638, -inf
    %v890 = vrot.slane %v889, 4
    %v891 = vmax.f32 %v889, %v890
    %v892 = vrot.slane %v891, 2
    %v893 = vmax.f32 %v891, %v892
    %v894 = vrot.slane %v893, 1
    %v895 = vmax.f32 %v893, %v894
    %vm896 = vcmask 64512
    %897 = vst.msk [vmem:[#allocation3] sm:$0xff] %vm896, 0.0
    %898 = vst.msk [vmem:[#allocation3 + $0x20] sm:$0xff] %vm896, 0.0
    %899 = vst.msk [vmem:[#allocation3 + $0x18] sm:$0xff] %vm896, 0.0
    %900 = vst.msk [vmem:[#allocation3 + $0x38] sm:$0xff] %vm896, 0.0
    %vm933 = vcmask 1041409
    %v934 = vsel %vm933, %v685, %v678
    %vm935 = vcmask 1042434
    %v936 = vsel %vm935, %v692, %v934
    %vm937 = vcmask 1043459
    %v938 = vsel %vm937, %v699, %v936
    %vm939 = vcmask 1044484
    %v940 = vsel %vm939, %v706, %v938
    %vm941 = vcmask 1045509
    %v942 = vsel %vm941, %v713, %v940
    %vm943 = vcmask 1046534
    %v944 = vsel %vm943, %v720, %v942
    %vm945 = vcmask 1047559
    %v946 = vsel %vm945, %v727, %v944
    %v947 = vsel %vm933, %v741, %v734
    %v948 = vsel %vm935, %v748, %v947
    %v949 = vsel %vm937, %v755, %v948
    %v950 = vsel %vm939, %v762, %v949
    %v951 = vsel %vm941, %v769, %v950
    %v952 = vsel %vm943, %v776, %v951
    %v953 = vsel %vm945, %v783, %v952
    %v954 = vsel %vm933, %v797, %v790
    %v955 = vsel %vm935, %v804, %v954
    %v956 = vsel %vm937, %v811, %v955
    %v957 = vsel %vm939, %v818, %v956
    %v958 = vsel %vm941, %v825, %v957
    %v959 = vsel %vm943, %v832, %v958
    %v960 = vsel %vm945, %v839, %v959
    %v961 = vsel %vm933, %v853, %v846
    %v962 = vsel %vm935, %v860, %v961
    %v963 = vsel %vm937, %v867, %v962
    %v964 = vsel %vm939, %v874, %v963
    %v965 = vsel %vm941, %v881, %v964
    %v966 = vsel %vm943, %v888, %v965
    %v967 = vsel %vm945, %v895, %v966
    %972 = vst.msk [vmem:[#allocation3 + $0x8] sm:$0xff] %vm896, %v946
    %973 = vst.msk [vmem:[#allocation3 + $0x10] sm:$0xff] %vm896, %v953
    %974 = vst.msk [vmem:[#allocation3 + $0x28] sm:$0xff] %vm896, %v960
    %975 = vst.msk [vmem:[#allocation3 + $0x30] sm:$0xff] %vm896, %v967
    %v976 = vld [vmem:[#allocation3] sm:$0xff]
    %v977 = vld [vmem:[#allocation3 + $0x8] sm:$0xff]
    %v978 = vld [vmem:[#allocation3 + $0x10] sm:$0xff]
    %v979 = vld [vmem:[#allocation3 + $0x18] sm:$0xff]
    %v980 = vld [vmem:[#allocation3 + $0x20] sm:$0xff]
    %v981 = vld [vmem:[#allocation3 + $0x28] sm:$0xff]
    %v982 = vld [vmem:[#allocation3 + $0x30] sm:$0xff]
    %v983 = vld [vmem:[#allocation3 + $0x38] sm:$0xff]
    %v990 = vrot.slane %v976, 1
    %v991 = vrot.slane %v977, 1
    %v992 = vsel %vm97, %v990, %v991
    %v993 = vrot.slane %v978, 1
    %v994 = vsel %vm97, %v991, %v993
    %v995 = vrot.slane %v980, 1
    %v996 = vrot.slane %v981, 1
    %v997 = vsel %vm97, %v995, %v996
    %v998 = vrot.slane %v982, 1
    %v999 = vsel %vm97, %v996, %v998
    %1000 = vrot.lane.b32.xlu0 %v992, 8
    %v1001 = vpop.permute.xlu0 %1000
    %1002 = vrot.lane.b32.xlu0 %v994, 8
    %v1003 = vpop.permute.xlu0 %1002
    %1004 = vrot.lane.b32.xlu0 %v993, 8
    %v1005 = vpop.permute.xlu0 %1004
    %1006 = vrot.lane.b32.xlu0 %v997, 8
    %v1007 = vpop.permute.xlu0 %1006
    %1008 = vrot.lane.b32.xlu0 %v999, 8
    %v1009 = vpop.permute.xlu0 %1008
    %1010 = vrot.lane.b32.xlu0 %v998, 8
    %v1011 = vpop.permute.xlu0 %1010
    %v1018 = vrot.slane %v977, 2
    %v1019 = vrot.slane %v978, 2
    %v1020 = vsel %vm146, %v1018, %v1019
    %v1021 = vrot.slane %v981, 2
    %v1022 = vrot.slane %v982, 2
    %v1023 = vsel %vm146, %v1021, %v1022
    %1024 = vrot.lane.b32.xlu0 %v1018, 16
    %v1025 = vpop.permute.xlu0 %1024
    %1026 = vrot.lane.b32.xlu0 %v1020, 16
    %v1027 = vpop.permute.xlu0 %1026
    %1028 = vrot.lane.b32.xlu0 %v1019, 16
    %v1029 = vpop.permute.xlu0 %1028
    %1030 = vrot.lane.b32.xlu0 %v1021, 16
    %v1031 = vpop.permute.xlu0 %1030
    %1032 = vrot.lane.b32.xlu0 %v1023, 16
    %v1033 = vpop.permute.xlu0 %1032
    %1034 = vrot.lane.b32.xlu0 %v1022, 16
    %v1035 = vpop.permute.xlu0 %1034
    %v1044 = vrot.slane %v977, 3
    %v1045 = vrot.slane %v978, 3
    %v1046 = vsel %vm193, %v1044, %v1045
    %v1047 = vrot.slane %v979, 3
    %v1048 = vsel %vm193, %v1045, %v1047
    %v1049 = vrot.slane %v981, 3
    %v1050 = vrot.slane %v982, 3
    %v1051 = vsel %vm193, %v1049, %v1050
    %v1052 = vrot.slane %v983, 3
    %v1053 = vsel %vm193, %v1050, %v1052
    %1054 = vrot.lane.b32.xlu0 %v1044, 24
    %v1055 = vpop.permute.xlu0 %1054
    %1056 = vrot.lane.b32.xlu0 %v1046, 24
    %v1057 = vpop.permute.xlu0 %1056
    %1058 = vrot.lane.b32.xlu0 %v1048, 24
    %v1059 = vpop.permute.xlu0 %1058
    %1060 = vrot.lane.b32.xlu0 %v1049, 24
    %v1061 = vpop.permute.xlu0 %1060
    %1062 = vrot.lane.b32.xlu0 %v1051, 24
    %v1063 = vpop.permute.xlu0 %1062
    %1064 = vrot.lane.b32.xlu0 %v1053, 24
    %v1065 = vpop.permute.xlu0 %1064
    %v1072 = vrot.slane %v977, 4
    %v1073 = vrot.slane %v978, 4
    %v1074 = vsel %vm242, %v1072, %v1073
    %v1075 = vrot.slane %v979, 4
    %v1076 = vsel %vm242, %v1073, %v1075
    %v1077 = vrot.slane %v981, 4
    %v1078 = vrot.slane %v982, 4
    %v1079 = vsel %vm242, %v1077, %v1078
    %v1080 = vrot.slane %v983, 4
    %v1081 = vsel %vm242, %v1078, %v1080
    %1082 = vrot.lane.b32.xlu0 %v1072, 32
    %v1083 = vpop.permute.xlu0 %1082
    %1084 = vrot.lane.b32.xlu0 %v1074, 32
    %v1085 = vpop.permute.xlu0 %1084
    %1086 = vrot.lane.b32.xlu0 %v1076, 32
    %v1087 = vpop.permute.xlu0 %1086
    %1088 = vrot.lane.b32.xlu0 %v1077, 32
    %v1089 = vpop.permute.xlu0 %1088
    %1090 = vrot.lane.b32.xlu0 %v1079, 32
    %v1091 = vpop.permute.xlu0 %1090
    %1092 = vrot.lane.b32.xlu0 %v1081, 32
    %v1093 = vpop.permute.xlu0 %1092
    %v1100 = vsel %vm896, %v976, %v1001
    %v1101 = vsel %vm896, %v977, %v1003
    %v1102 = vsel %vm896, %v978, %v1005
    %v1103 = vsel %vm896, %v980, %v1007
    %v1104 = vsel %vm896, %v981, %v1009
    %v1105 = vsel %vm896, %v982, %v1011
    %v1106 = vsel %vm62, %v1100, %v1025
    %v1107 = vsel %vm62, %v1101, %v1027
    %v1108 = vsel %vm62, %v1102, %v1029
    %v1109 = vsel %vm62, %v1103, %v1031
    %v1110 = vsel %vm62, %v1104, %v1033
    %v1111 = vsel %vm62, %v1105, %v1035
    %vm1112 = vcmask 195584
    %v1113 = vsel %vm1112, %v1106, %v1055
    %v1114 = vsel %vm1112, %v1107, %v1057
    %v1115 = vsel %vm1112, %v1108, %v1059
    %v1116 = vsel %vm1112, %v1109, %v1061
    %v1117 = vsel %vm1112, %v1110, %v1063
    %v1118 = vsel %vm1112, %v1111, %v1065
    %v1119 = vsel %vm301, %v1113, %v1083
    %v1120 = vsel %vm301, %v1114, %v1085
    %v1121 = vsel %vm301, %v1115, %v1087
    %v1122 = vsel %vm301, %v1116, %v1089
    %v1123 = vsel %vm301, %v1117, %v1091
    %v1124 = vsel %vm301, %v1118, %v1093
    %v1131 = vrot.slane %v1119, 6
    %v1132 = vrot.slane %v1120, 6
    %v1133 = vsel %vm344, %v1131, %v1132
    %v1134 = vrot.slane %v1121, 6
    %v1135 = vsel %vm344, %v1132, %v1134
    %v1136 = vrot.slane %v1122, 6
    %v1137 = vrot.slane %v1123, 6
    %v1138 = vsel %vm344, %v1136, %v1137
    %v1139 = vrot.slane %v1124, 6
    %v1140 = vsel %vm344, %v1137, %v1139
    %v1145 = vpack.c.bf16 %v1135, %v1133
    %v1146 = vpack.c.bf16 %v1140, %v1138
    %v1152 = vunpack.c.l.b16 %v39
    %v1153 = vunpack.c.l.b16 %v40
    %v1154 = vunpack.c.l.b16 %v41
    %v1155 = vunpack.c.l.b16 %v42
    %v1156 = vunpack.c.l.b16 %v43
    %v1157 = vpack.c.b16 %v1153, %v1152
    %v1158 = vpack.c.b16 %v1155, %v1154
    %v1159 = vpack.c.b16 %v1156, %v1156
    %1163 = vrot.lane.b32.xlu0 %v378, 120
    %v1164 = vpop.permute.xlu0 %1163
    %vm1166 = vcmask 326656
    %v1168 = vsel %vm1166, %v1145, 0
    %v1171 = vsel %vm1166, %v1146, 0
    %v1174 = vsel %vm242, %v1159, 0
    %1176 = vmatprep.subr.bf16.mxu0 0
    %1177 = vmatpush1.bf16.msra.mxu0 %v1157
    %1178 = vmatprep.subr.bf16.mxu0 0
    %1179 = vmatpush1.bf16.msra.mxu0 %v1158
    %1180 = vmatprep.subr.bf16.mxu0 0
    %1181 = vmatpush1.bf16.msra.mxu0 %v1174
    %1182 = vmatprep.subr.bf16.mxu0 0
    %1183 = vmatpush1.bf16.msra.mxu0 0
    %1184 = vmatprep.subr.bf16.mxu0 0
    %1185 = vmatpush1.bf16.msra.mxu0 0
    %1186 = vmatprep.subr.bf16.mxu0 0
    %1187 = vmatpush1.bf16.msra.mxu0 0
    %1188 = vmatprep.subr.bf16.mxu0 0
    %1189 = vmatpush1.bf16.msra.mxu0 0
    %1190 = vmatprep.subr.bf16.mxu0 0
    %1191 = vmatpush1.bf16.msra.mxu0 0
    %1192 = vmatprep.subr.bf16.mxu0 0
    %1193 = vmatpush1.bf16.msra.mxu0 0
    %1194 = vmatprep.subr.bf16.mxu0 0
    %1195 = vmatpush1.bf16.msra.mxu0 0
    %1196 = vmatprep.subr.bf16.mxu0 0
    %1197 = vmatpush1.bf16.msra.mxu0 0
    %1198 = vmatprep.subr.bf16.mxu0 0
    %1199 = vmatpush1.bf16.msra.mxu0 0
    %1200 = vmatprep.subr.bf16.mxu0 0
    %1201 = vmatpush1.bf16.msra.mxu0 0
    %1202 = vmatprep.subr.bf16.mxu0 0
    %1203 = vmatpush1.bf16.msra.mxu0 0
    %1204 = vmatprep.subr.bf16.mxu0 0
    %1205 = vmatpush1.bf16.msra.mxu0 0
    %1206 = vmatprep.subr.bf16.mxu0 0
    %1207 = vmatpush1.bf16.msra.mxu0 0
    %1208 = vmatprep.mubr.bf16.mxu0 0
    %1209 = vmatmul.mubr.bf16.gmra.mrb[0].mxu0 %v1168
    %v1210 = vpop.f32.mrb[0].mxu0
    %v1211 = vadd.f32 %v1164, %v1210
    %v1212 = vpop.f32.mrb[0].mxu0
    %v1213 = vpop.f32.mrb[0].mxu0
    %v1214 = vadd.f32 %v1164, %v1213
    %v1215 = vpop.f32.mrb[0].mxu0
    %1216 = vmatprep.mubr.bf16.mxu0 0
    %1217 = vmatmul.mubr.bf16.gmra.mrb[0].mxu0 %v1171
    %v1218 = vpop.f32.mrb[0].mxu0
    %v1219 = vadd.f32 %v1164, %v1218
    %v1220 = vpop.f32.mrb[0].mxu0
    %v1221 = vpop.f32.mrb[0].mxu0
    %v1222 = vadd.f32 %v1164, %v1221
    %v1223 = vpop.f32.mrb[0].mxu0
    %1224 = vdwg.mxu0
    %v1225 = vmax.f32 %v1211, 0.0
    %v1226 = vmax.f32 %v1214, 0.0
    %v1227 = vmax.f32 %v1219, 0.0
    %v1228 = vmax.f32 %v1222, 0.0
    %v1233 = vcombine.high %v1225, %v1225
    %v1235 = vunpack.c.l.s4 1983009808
    %v1236 = vunpack.c.0.s8 %v1235
    %v1237 = vlaneseq
    %v1238 = vshrl.u32 %v1237, 7
    %v1239 = vsub.s32 %v1236, %v1238
    %v1240 = vrot.slane %v1225, %v1239
    %v1242 = vunpack.c.l.s4 1983009808
    %v1243 = vunpack.c.0.s8 %v1242
    %v1244 = vlaneseq
    %v1245 = vshrl.u32 %v1244, 7
    %v1246 = vsub.s32 %v1243, %v1245
    %v1247 = vrot.slane %v1233, %v1246
    %v1248 = vcombine.high %v1240, %v1240
    %v1249 = vcombine.high %v1247, %v1247
    %v1250 = vcombine.high %v1226, %v1226
    %v1252 = vunpack.c.l.s4 1983009808
    %v1253 = vunpack.c.0.s8 %v1252
    %v1254 = vlaneseq
    %v1255 = vshrl.u32 %v1254, 7
    %v1256 = vsub.s32 %v1253, %v1255
    %v1257 = vrot.slane %v1226, %v1256
    %v1259 = vunpack.c.l.s4 1983009808
    %v1260 = vunpack.c.0.s8 %v1259
    %v1261 = vlaneseq
    %v1262 = vshrl.u32 %v1261, 7
    %v1263 = vsub.s32 %v1260, %v1262
    %v1264 = vrot.slane %v1250, %v1263
    %v1265 = vcombine.high %v1257, %v1257
    %v1266 = vcombine.high %v1264, %v1264
    %v1267 = vcombine.high %v1227, %v1227
    %v1269 = vunpack.c.l.s4 1983009808
    %v1270 = vunpack.c.0.s8 %v1269
    %v1271 = vlaneseq
    %v1272 = vshrl.u32 %v1271, 7
    %v1273 = vsub.s32 %v1270, %v1272
    %v1274 = vrot.slane %v1227, %v1273
    %v1276 = vunpack.c.l.s4 1983009808
    %v1277 = vunpack.c.0.s8 %v1276
    %v1278 = vlaneseq
    %v1279 = vshrl.u32 %v1278, 7
    %v1280 = vsub.s32 %v1277, %v1279
    %v1281 = vrot.slane %v1267, %v1280
    %v1282 = vcombine.high %v1274, %v1274
    %v1283 = vcombine.high %v1281, %v1281
    %v1284 = vcombine.high %v1228, %v1228
    %v1286 = vunpack.c.l.s4 1983009808
    %v1287 = vunpack.c.0.s8 %v1286
    %v1288 = vlaneseq
    %v1289 = vshrl.u32 %v1288, 7
    %v1290 = vsub.s32 %v1287, %v1289
    %v1291 = vrot.slane %v1228, %v1290
    %v1293 = vunpack.c.l.s4 1983009808
    %v1294 = vunpack.c.0.s8 %v1293
    %v1295 = vlaneseq
    %v1296 = vshrl.u32 %v1295, 7
    %v1297 = vsub.s32 %v1294, %v1296
    %v1298 = vrot.slane %v1284, %v1297
    %v1299 = vcombine.high %v1291, %v1291
    %v1300 = vcombine.high %v1298, %v1298
    %vm1317 = vcmask 123904
    %v1318 = vsel %vm1317, %v1240, -inf
    %v1319 = vrot.slane %v1318, 4
    %v1320 = vmax.f32 %v1318, %v1319
    %v1321 = vrot.slane %v1320, 2
    %v1322 = vmax.f32 %v1320, %v1321
    %v1323 = vrot.slane %v1322, 1
    %v1324 = vmax.f32 %v1322, %v1323
    %v1325 = vsel %vm1317, %v1248, -inf
    %v1326 = vrot.slane %v1325, 4
    %v1327 = vmax.f32 %v1325, %v1326
    %v1328 = vrot.slane %v1327, 2
    %v1329 = vmax.f32 %v1327, %v1328
    %v1330 = vrot.slane %v1329, 1
    %v1331 = vmax.f32 %v1329, %v1330
    %v1332 = vsel %vm1317, %v1247, -inf
    %v1333 = vrot.slane %v1332, 4
    %v1334 = vmax.f32 %v1332, %v1333
    %v1335 = vrot.slane %v1334, 2
    %v1336 = vmax.f32 %v1334, %v1335
    %v1337 = vrot.slane %v1336, 1
    %v1338 = vmax.f32 %v1336, %v1337
    %v1339 = vsel %vm1317, %v1249, -inf
    %v1340 = vrot.slane %v1339, 4
    %v1341 = vmax.f32 %v1339, %v1340
    %v1342 = vrot.slane %v1341, 2
    %v1343 = vmax.f32 %v1341, %v1342
    %v1344 = vrot.slane %v1343, 1
    %v1345 = vmax.f32 %v1343, %v1344
    %v1346 = vsel %vm1317, %v1257, -inf
    %v1347 = vrot.slane %v1346, 4
    %v1348 = vmax.f32 %v1346, %v1347
    %v1349 = vrot.slane %v1348, 2
    %v1350 = vmax.f32 %v1348, %v1349
    %v1351 = vrot.slane %v1350, 1
    %v1352 = vmax.f32 %v1350, %v1351
    %v1353 = vsel %vm1317, %v1265, -inf
    %v1354 = vrot.slane %v1353, 4
    %v1355 = vmax.f32 %v1353, %v1354
    %v1356 = vrot.slane %v1355, 2
    %v1357 = vmax.f32 %v1355, %v1356
    %v1358 = vrot.slane %v1357, 1
    %v1359 = vmax.f32 %v1357, %v1358
    %v1360 = vsel %vm1317, %v1264, -inf
    %v1361 = vrot.slane %v1360, 4
    %v1362 = vmax.f32 %v1360, %v1361
    %v1363 = vrot.slane %v1362, 2
    %v1364 = vmax.f32 %v1362, %v1363
    %v1365 = vrot.slane %v1364, 1
    %v1366 = vmax.f32 %v1364, %v1365
    %v1367 = vsel %vm1317, %v1266, -inf
    %v1368 = vrot.slane %v1367, 4
    %v1369 = vmax.f32 %v1367, %v1368
    %v1370 = vrot.slane %v1369, 2
    %v1371 = vmax.f32 %v1369, %v1370
    %v1372 = vrot.slane %v1371, 1
    %v1373 = vmax.f32 %v1371, %v1372
    %v1374 = vsel %vm1317, %v1274, -inf
    %v1375 = vrot.slane %v1374, 4
    %v1376 = vmax.f32 %v1374, %v1375
    %v1377 = vrot.slane %v1376, 2
    %v1378 = vmax.f32 %v1376, %v1377
    %v1379 = vrot.slane %v1378, 1
    %v1380 = vmax.f32 %v1378, %v1379
    %v1381 = vsel %vm1317, %v1282, -inf
    %v1382 = vrot.slane %v1381, 4
    %v1383 = vmax.f32 %v1381, %v1382
    %v1384 = vrot.slane %v1383, 2
    %v1385 = vmax.f32 %v1383, %v1384
    %v1386 = vrot.slane %v1385, 1
    %v1387 = vmax.f32 %v1385, %v1386
    %v1388 = vsel %vm1317, %v1281, -inf
    %v1389 = vrot.slane %v1388, 4
    %v1390 = vmax.f32 %v1388, %v1389
    %v1391 = vrot.slane %v1390, 2
    %v1392 = vmax.f32 %v1390, %v1391
    %v1393 = vrot.slane %v1392, 1
    %v1394 = vmax.f32 %v1392, %v1393
    %v1395 = vsel %vm1317, %v1283, -inf
    %v1396 = vrot.slane %v1395, 4
    %v1397 = vmax.f32 %v1395, %v1396
    %v1398 = vrot.slane %v1397, 2
    %v1399 = vmax.f32 %v1397, %v1398
    %v1400 = vrot.slane %v1399, 1
    %v1401 = vmax.f32 %v1399, %v1400
    %v1402 = vsel %vm1317, %v1291, -inf
    %v1403 = vrot.slane %v1402, 4
    %v1404 = vmax.f32 %v1402, %v1403
    %v1405 = vrot.slane %v1404, 2
    %v1406 = vmax.f32 %v1404, %v1405
    %v1407 = vrot.slane %v1406, 1
    %v1408 = vmax.f32 %v1406, %v1407
    %v1409 = vsel %vm1317, %v1299, -inf
    %v1410 = vrot.slane %v1409, 4
    %v1411 = vmax.f32 %v1409, %v1410
    %v1412 = vrot.slane %v1411, 2
    %v1413 = vmax.f32 %v1411, %v1412
    %v1414 = vrot.slane %v1413, 1
    %v1415 = vmax.f32 %v1413, %v1414
    %v1416 = vsel %vm1317, %v1298, -inf
    %v1417 = vrot.slane %v1416, 4
    %v1418 = vmax.f32 %v1416, %v1417
    %v1419 = vrot.slane %v1418, 2
    %v1420 = vmax.f32 %v1418, %v1419
    %v1421 = vrot.slane %v1420, 1
    %v1422 = vmax.f32 %v1420, %v1421
    %v1423 = vsel %vm1317, %v1300, -inf
    %v1424 = vrot.slane %v1423, 4
    %v1425 = vmax.f32 %v1423, %v1424
    %v1426 = vrot.slane %v1425, 2
    %v1427 = vmax.f32 %v1425, %v1426
    %v1428 = vrot.slane %v1427, 1
    %v1429 = vmax.f32 %v1427, %v1428
    %1430 = vst.msk [vmem:[#allocation4] sm:$0xff] %vm62, 0.0
    %1431 = vst.msk [vmem:[#allocation4 + $0x18] sm:$0xff] %vm62, 0.0
    %1432 = vst.msk [vmem:[#allocation4 + $0x10] sm:$0xff] %vm62, 0.0
    %1433 = vst.msk [vmem:[#allocation4 + $0x28] sm:$0xff] %vm62, 0.0
    %v1450 = vsel %vm933, %v1331, %v1324
    %v1451 = vsel %vm935, %v1338, %v1450
    %v1452 = vsel %vm937, %v1345, %v1451
    %v1453 = vsel %vm939, %v1352, %v1452
    %v1454 = vsel %vm941, %v1359, %v1453
    %v1455 = vsel %vm943, %v1366, %v1454
    %v1456 = vsel %vm945, %v1373, %v1455
    %v1457 = vsel %vm933, %v1387, %v1380
    %v1458 = vsel %vm935, %v1394, %v1457
    %v1459 = vsel %vm937, %v1401, %v1458
    %v1460 = vsel %vm939, %v1408, %v1459
    %v1461 = vsel %vm941, %v1415, %v1460
    %v1462 = vsel %vm943, %v1422, %v1461
    %v1463 = vsel %vm945, %v1429, %v1462
    %1466 = vst.msk [vmem:[#allocation4 + $0x8] sm:$0xff] %vm62, %v1456
    %1467 = vst.msk [vmem:[#allocation4 + $0x20] sm:$0xff] %vm62, %v1463
    %v1468 = vld [vmem:[#allocation4] sm:$0xff]
    %v1469 = vld [vmem:[#allocation4 + $0x8] sm:$0xff]
    %v1470 = vld [vmem:[#allocation4 + $0x10] sm:$0xff]
    %v1471 = vld [vmem:[#allocation4 + $0x18] sm:$0xff]
    %v1472 = vld [vmem:[#allocation4 + $0x20] sm:$0xff]
    %v1473 = vld [vmem:[#allocation4 + $0x28] sm:$0xff]
    %v1478 = vrot.slane %v1468, 1
    %v1479 = vrot.slane %v1469, 1
    %v1480 = vsel %vm97, %v1478, %v1479
    %v1481 = vrot.slane %v1471, 1
    %v1482 = vrot.slane %v1472, 1
    %v1483 = vsel %vm97, %v1481, %v1482
    %1484 = vrot.lane.b32.xlu0 %v1480, 16
    %v1485 = vpop.permute.xlu0 %1484
    %1486 = vrot.lane.b32.xlu0 %v1479, 16
    %v1487 = vpop.permute.xlu0 %1486
    %1488 = vrot.lane.b32.xlu0 %v1483, 16
    %v1489 = vpop.permute.xlu0 %1488
    %1490 = vrot.lane.b32.xlu0 %v1482, 16
    %v1491 = vpop.permute.xlu0 %1490
    %v1496 = vrot.slane %v1469, 2
    %v1497 = vrot.slane %v1472, 2
    %1498 = vrot.lane.b32.xlu0 %v1496, 32
    %v1499 = vpop.permute.xlu0 %1498
    %1500 = vrot.lane.b32.xlu0 %v1497, 32
    %v1501 = vpop.permute.xlu0 %1500
    %v1506 = vrot.slane %v1469, 3
    %v1507 = vrot.slane %v1470, 3
    %v1508 = vsel %vm193, %v1506, %v1507
    %v1509 = vrot.slane %v1472, 3
    %v1510 = vrot.slane %v1473, 3
    %v1511 = vsel %vm193, %v1509, %v1510
    %1512 = vrot.lane.b32.xlu0 %v1506, 48
    %v1513 = vpop.permute.xlu0 %1512
    %1514 = vrot.lane.b32.xlu0 %v1508, 48
    %v1515 = vpop.permute.xlu0 %1514
    %1516 = vrot.lane.b32.xlu0 %v1509, 48
    %v1517 = vpop.permute.xlu0 %1516
    %1518 = vrot.lane.b32.xlu0 %v1511, 48
    %v1519 = vpop.permute.xlu0 %1518
    %v1524 = vrot.slane %v1469, 4
    %v1525 = vrot.slane %v1470, 4
    %v1526 = vsel %vm242, %v1524, %v1525
    %v1527 = vrot.slane %v1472, 4
    %v1528 = vrot.slane %v1473, 4
    %v1529 = vsel %vm242, %v1527, %v1528
    %1530 = vrot.lane.b32.xlu0 %v1524, 64
    %v1531 = vpop.permute.xlu0 %1530
    %1532 = vrot.lane.b32.xlu0 %v1526, 64
    %v1533 = vpop.permute.xlu0 %1532
    %1534 = vrot.lane.b32.xlu0 %v1527, 64
    %v1535 = vpop.permute.xlu0 %1534
    %1536 = vrot.lane.b32.xlu0 %v1529, 64
    %v1537 = vpop.permute.xlu0 %1536
    %v1542 = vsel %vm62, %v1468, %v1485
    %v1543 = vsel %vm62, %v1469, %v1487
    %v1544 = vsel %vm62, %v1471, %v1489
    %v1545 = vsel %vm62, %v1472, %v1491
    %v1546 = vsel %vm301, %v1542, %v1499
    %v1547 = vsel %vm301, %v1543, %v1499
    %v1548 = vsel %vm301, %v1544, %v1501
    %v1549 = vsel %vm301, %v1545, %v1501
    %v1550 = vsel %vm312, %v1546, %v1513
    %v1551 = vsel %vm312, %v1547, %v1515
    %v1552 = vsel %vm312, %v1548, %v1517
    %v1553 = vsel %vm312, %v1549, %v1519
    %v1554 = vsel %vm323, %v1550, %v1531
    %v1555 = vsel %vm323, %v1551, %v1533
    %v1556 = vsel %vm323, %v1552, %v1535
    %v1557 = vsel %vm323, %v1553, %v1537
    %v1562 = vrot.slane %v1554, 6
    %v1563 = vrot.slane %v1555, 6
    %v1564 = vsel %vm344, %v1562, %v1563
    %v1565 = vrot.slane %v1556, 6
    %v1566 = vrot.slane %v1557, 6
    %v1567 = vsel %vm344, %v1565, %v1566
    %v1570 = vpack.c.bf16 %v1567, %v1564
    %v1581 = vunpack.c.l.b16 %v44
    %v1582 = vunpack.c.l.b16 %v45
    %v1583 = vunpack.c.l.b16 %v46
    %v1584 = vunpack.c.l.b16 %v47
    %v1585 = vunpack.c.l.b16 %v48
    %v1586 = vunpack.c.l.b16 %v49
    %v1587 = vunpack.c.l.b16 %v50
    %v1588 = vunpack.c.l.b16 %v51
    %v1589 = vunpack.c.l.b16 %v52
    %v1590 = vunpack.c.l.b16 %v53
    %v1591 = vpack.c.b16 %v1582, %v1581
    %v1592 = vpack.c.b16 %v1584, %v1583
    %v1593 = vpack.c.b16 %v1586, %v1585
    %v1594 = vpack.c.b16 %v1588, %v1587
    %v1595 = vpack.c.b16 %v1590, %v1589
    %1601 = vrot.lane.b32.xlu0 %v378, 104
    %v1602 = vpop.permute.xlu0 %1601
    %v1605 = vsel %vm409, %v1570, 0
    %1607 = vmatprep.subr.bf16.mxu0 0
    %1608 = vmatpush1.bf16.msra.mxu0 %v1591
    %1609 = vmatprep.subr.bf16.mxu0 0
    %1610 = vmatpush1.bf16.msra.mxu0 %v1592
    %1611 = vmatprep.subr.bf16.mxu0 0
    %1612 = vmatpush1.bf16.msra.mxu0 %v1593
    %1613 = vmatprep.subr.bf16.mxu0 0
    %1614 = vmatpush1.bf16.msra.mxu0 %v1594
    %1615 = vmatprep.subr.bf16.mxu0 0
    %1616 = vmatpush1.bf16.msra.mxu0 %v1595
    %1617 = vmatprep.subr.bf16.mxu0 0
    %1618 = vmatpush1.bf16.msra.mxu0 0
    %1619 = vmatprep.subr.bf16.mxu0 0
    %1620 = vmatpush1.bf16.msra.mxu0 0
    %1621 = vmatprep.subr.bf16.mxu0 0
    %1622 = vmatpush1.bf16.msra.mxu0 0
    %1623 = vmatprep.subr.bf16.mxu0 0
    %1624 = vmatpush1.bf16.msra.mxu0 0
    %1625 = vmatprep.subr.bf16.mxu0 0
    %1626 = vmatpush1.bf16.msra.mxu0 0
    %1627 = vmatprep.subr.bf16.mxu0 0
    %1628 = vmatpush1.bf16.msra.mxu0 0
    %1629 = vmatprep.subr.bf16.mxu0 0
    %1630 = vmatpush1.bf16.msra.mxu0 0
    %1631 = vmatprep.subr.bf16.mxu0 0
    %1632 = vmatpush1.bf16.msra.mxu0 0
    %1633 = vmatprep.subr.bf16.mxu0 0
    %1634 = vmatpush1.bf16.msra.mxu0 0
    %1635 = vmatprep.subr.bf16.mxu0 0
    %1636 = vmatpush1.bf16.msra.mxu0 0
    %1637 = vmatprep.subr.bf16.mxu0 0
    %1638 = vmatpush1.bf16.msra.mxu0 0
    %1639 = vmatprep.mubr.bf16.mxu0 0
    %1640 = vmatmul.mubr.bf16.gmra.mrb[0].mxu0 %v1605
    %v1641 = vpop.f32.mrb[0].mxu0
    %v1642 = vadd.f32 %v1602, %v1641
    %v1643 = vpop.f32.mrb[0].mxu0
    %v1644 = vpop.f32.mrb[0].mxu0
    %v1645 = vadd.f32 %v1602, %v1644
    %v1646 = vpop.f32.mrb[0].mxu0
    %1647 = vdwg.mxu0
    %v1648 = vmax.f32 %v1642, 0.0
    %v1649 = vmax.f32 %v1645, 0.0
    %v1652 = vcombine.high %v1648, %v1648
    %v1654 = vunpack.c.l.s4 1983009808
    %v1655 = vunpack.c.0.s8 %v1654
    %v1656 = vlaneseq
    %v1657 = vshrl.u32 %v1656, 7
    %v1658 = vsub.s32 %v1655, %v1657
    %v1659 = vrot.slane %v1648, %v1658
    %v1661 = vunpack.c.l.s4 1983009808
    %v1662 = vunpack.c.0.s8 %v1661
    %v1663 = vlaneseq
    %v1664 = vshrl.u32 %v1663, 7
    %v1665 = vsub.s32 %v1662, %v1664
    %v1666 = vrot.slane %v1652, %v1665
    %v1667 = vcombine.high %v1659, %v1659
    %v1668 = vcombine.high %v1666, %v1666
    %v1669 = vcombine.high %v1649, %v1649
    %v1671 = vunpack.c.l.s4 1983009808
    %v1672 = vunpack.c.0.s8 %v1671
    %v1673 = vlaneseq
    %v1674 = vshrl.u32 %v1673, 7
    %v1675 = vsub.s32 %v1672, %v1674
    %v1676 = vrot.slane %v1649, %v1675
    %v1678 = vunpack.c.l.s4 1983009808
    %v1679 = vunpack.c.0.s8 %v1678
    %v1680 = vlaneseq
    %v1681 = vshrl.u32 %v1680, 7
    %v1682 = vsub.s32 %v1679, %v1681
    %v1683 = vrot.slane %v1669, %v1682
    %v1684 = vcombine.high %v1676, %v1676
    %v1685 = vcombine.high %v1683, %v1683
    %vm1694 = vcmask 254976
    %v1695 = vsel %vm1694, %v1659, -inf
    %v1696 = vrot.slane %v1695, 4
    %v1697 = vmax.f32 %v1695, %v1696
    %v1698 = vrot.slane %v1697, 2
    %v1699 = vmax.f32 %v1697, %v1698
    %v1700 = vrot.slane %v1699, 1
    %v1701 = vmax.f32 %v1699, %v1700
    %v1702 = vsel %vm1694, %v1667, -inf
    %v1703 = vrot.slane %v1702, 4
    %v1704 = vmax.f32 %v1702, %v1703
    %v1705 = vrot.slane %v1704, 2
    %v1706 = vmax.f32 %v1704, %v1705
    %v1707 = vrot.slane %v1706, 1
    %v1708 = vmax.f32 %v1706, %v1707
    %v1709 = vsel %vm1694, %v1666, -inf
    %v1710 = vrot.slane %v1709, 4
    %v1711 = vmax.f32 %v1709, %v1710
    %v1712 = vrot.slane %v1711, 2
    %v1713 = vmax.f32 %v1711, %v1712
    %v1714 = vrot.slane %v1713, 1
    %v1715 = vmax.f32 %v1713, %v1714
    %v1716 = vsel %vm1694, %v1668, -inf
    %v1717 = vrot.slane %v1716, 4
    %v1718 = vmax.f32 %v1716, %v1717
    %v1719 = vrot.slane %v1718, 2
    %v1720 = vmax.f32 %v1718, %v1719
    %v1721 = vrot.slane %v1720, 1
    %v1722 = vmax.f32 %v1720, %v1721
    %v1723 = vsel %vm1694, %v1676, -inf
    %v1724 = vrot.slane %v1723, 4
    %v1725 = vmax.f32 %v1723, %v1724
    %v1726 = vrot.slane %v1725, 2
    %v1727 = vmax.f32 %v1725, %v1726
    %v1728 = vrot.slane %v1727, 1
    %v1729 = vmax.f32 %v1727, %v1728
    %v1730 = vsel %vm1694, %v1684, -inf
    %v1731 = vrot.slane %v1730, 4
    %v1732 = vmax.f32 %v1730, %v1731
    %v1733 = vrot.slane %v1732, 2
    %v1734 = vmax.f32 %v1732, %v1733
    %v1735 = vrot.slane %v1734, 1
    %v1736 = vmax.f32 %v1734, %v1735
    %v1737 = vsel %vm1694, %v1683, -inf
    %v1738 = vrot.slane %v1737, 4
    %v1739 = vmax.f32 %v1737, %v1738
    %v1740 = vrot.slane %v1739, 2
    %v1741 = vmax.f32 %v1739, %v1740
    %v1742 = vrot.slane %v1741, 1
    %v1743 = vmax.f32 %v1741, %v1742
    %v1744 = vsel %vm1694, %v1685, -inf
    %v1745 = vrot.slane %v1744, 4
    %v1746 = vmax.f32 %v1744, %v1745
    %v1747 = vrot.slane %v1746, 2
    %v1748 = vmax.f32 %v1746, %v1747
    %v1749 = vrot.slane %v1748, 1
    %v1750 = vmax.f32 %v1748, %v1749
    %v1751 = vld [vmem:[%s3] sm:$0xff]
    %v1752 = vld [vmem:[%s3 + $0x8] sm:$0xff]
    %v1753 = vld [vmem:[%s3 + $0x10] sm:$0xff]
    %v1754 = vld [vmem:[%s3 + $0x18] sm:$0xff]
    %v1755 = vld [vmem:[%s3 + $0x20] sm:$0xff]
    %v1756 = vld [vmem:[%s3 + $0x28] sm:$0xff]
    %v1757 = vld [vmem:[%s3 + $0x30] sm:$0xff]
    %v1758 = vld [vmem:[%s3 + $0x38] sm:$0xff]
    %v1759 = vld [vmem:[%s3 + $0x40] sm:$0xff]
    %v1760 = vld [vmem:[%s3 + $0x48] sm:$0xff]
    %v1761 = vld [vmem:[%s3 + $0x50] sm:$0xff]
    %v1762 = vld [vmem:[%s3 + $0x58] sm:$0xff]
    %v1763 = vld [vmem:[%s3 + $0x60] sm:$0xff]
    %v1764 = vld [vmem:[%s3 + $0x68] sm:$0xff]
    %v1765 = vld [vmem:[%s3 + $0x70] sm:$0xff]
    %v1766 = vld [vmem:[%s3 + $0x98] sm:$0xff]
    %v1767 = vld [vmem:[%s3 + $0xa0] sm:$0xff]
    %v1768 = vld [vmem:[%s3 + $0xa8] sm:$0xff]
    %v1769 = vld [vmem:[%s3 + $0xb0] sm:$0xff]
    %v1770 = vpack.c.bf16 %v1701, %v1701
    %v1771 = vpack.c.bf16 %v1708, %v1708
    %v1772 = vpack.c.bf16 %v1715, %v1715
    %v1773 = vpack.c.bf16 %v1722, %v1722
    %v1774 = vpack.c.bf16 %v1729, %v1729
    %v1775 = vpack.c.bf16 %v1736, %v1736
    %v1776 = vpack.c.bf16 %v1743, %v1743
    %v1777 = vpack.c.bf16 %v1750, %v1750
    %v1778 = vlaneseq
    %v1779 = vshrl.u32 %v1778, 7
    %v1780 = vsub.s32 1, %v1779
    %v1781 = vrot.slane %v28, %v1780
    %v1790 = vunpack.c.l.b16 %v1770
    %v1791 = vunpack.c.l.b16 %v1771
    %v1792 = vunpack.c.l.b16 %v1772
    %v1793 = vunpack.c.l.b16 %v1773
    %v1794 = vunpack.c.l.b16 %v1774
    %v1795 = vunpack.c.l.b16 %v1775
    %v1796 = vunpack.c.l.b16 %v1776
    %v1797 = vunpack.c.l.b16 %v1777
    %v1798 = vsel %vm933, %v1791, %v1790
    %v1799 = vsel %vm935, %v1792, %v1798
    %v1800 = vsel %vm937, %v1793, %v1799
    %v1801 = vsel %vm939, %v1794, %v1800
    %v1802 = vsel %vm941, %v1795, %v1801
    %v1803 = vsel %vm943, %v1796, %v1802
    %v1804 = vsel %vm945, %v1797, %v1803
    %v1805 = vpack.c.b16 %v1804, %v1804
    %v1810 = vunpack.c.l.b16 %v1751
    %v1811 = vunpack.c.l.b16 %v1752
    %v1812 = vunpack.c.l.b16 %v1753
    %v1813 = vunpack.c.l.b16 %v1754
    %v1814 = vpack.c.b16 %v1811, %v1810
    %v1815 = vpack.c.b16 %v1813, %v1812
    %v1819 = vsel %vm301, %v1805, 0
    %1821 = vmatprep.subr.bf16.mxu0 0
    %1822 = vmatpush1.bf16.msra.mxu0 %v1814
    %1823 = vmatprep.subr.bf16.mxu0 0
    %1824 = vmatpush1.bf16.msra.mxu0 %v1815
    %1825 = vmatprep.subr.bf16.mxu0 0
    %1826 = vmatpush1.bf16.msra.mxu0 0
    %1827 = vmatprep.subr.bf16.mxu0 0
    %1828 = vmatpush1.bf16.msra.mxu0 0
    %1829 = vmatprep.subr.bf16.mxu0 0
    %1830 = vmatpush1.bf16.msra.mxu0 0
    %1831 = vmatprep.subr.bf16.mxu0 0
    %1832 = vmatpush1.bf16.msra.mxu0 0
    %1833 = vmatprep.subr.bf16.mxu0 0
    %1834 = vmatpush1.bf16.msra.mxu0 0
    %1835 = vmatprep.subr.bf16.mxu0 0
    %1836 = vmatpush1.bf16.msra.mxu0 0
    %1837 = vmatprep.subr.bf16.mxu0 0
    %1838 = vmatpush1.bf16.msra.mxu0 0
    %1839 = vmatprep.subr.bf16.mxu0 0
    %1840 = vmatpush1.bf16.msra.mxu0 0
    %1841 = vmatprep.subr.bf16.mxu0 0
    %1842 = vmatpush1.bf16.msra.mxu0 0
    %1843 = vmatprep.subr.bf16.mxu0 0
    %1844 = vmatpush1.bf16.msra.mxu0 0
    %1845 = vmatprep.subr.bf16.mxu0 0
    %1846 = vmatpush1.bf16.msra.mxu0 0
    %1847 = vmatprep.subr.bf16.mxu0 0
    %1848 = vmatpush1.bf16.msra.mxu0 0
    %1849 = vmatprep.subr.bf16.mxu0 0
    %1850 = vmatpush1.bf16.msra.mxu0 0
    %1851 = vmatprep.subr.bf16.mxu0 0
    %1852 = vmatpush1.bf16.msra.mxu0 0
    %1853 = vmatprep.mubr.bf16.mxu0 0
    %1854 = vmatmul.mubr.bf16.gmra.mrb[0].mxu0 %v1819
    %v1855 = vpop.f32.mrb[0].mxu0
    %v1856 = vadd.f32 %v1781, %v1855
    %v1857 = vpop.f32.mrb[0].mxu0
    %v1858 = vpop.f32.mrb[0].mxu0
    %v1859 = vpop.f32.mrb[0].mxu0
    %1860 = vdwg.mxu0
    %v1862 = vcombine.high %v1856, %v1856
    %v1864 = vld [vmem:[%s1] sm:$0xff]
    %v1865 = vld [vmem:[%s1 + $0x8] sm:$0xff]
    %v1866 = vpack.c.bf16 %v1865, %v1864
    %v1867 = vlaneseq
    %v1868 = vshrl.u32 %v1867, 7
    %v1869 = vsub.s32 2, %v1868
    %v1870 = vrot.slane %v28, %v1869
    %v1874 = vunpack.c.l.b16 %v1755
    %v1875 = vunpack.c.l.b16 %v1756
    %v1876 = vunpack.c.l.b16 %v1757
    %v1877 = vpack.c.b16 %v1875, %v1874
    %v1878 = vpack.c.b16 %v1876, %v1876
    %v1881 = vsel %vm1112, %v1866, 0
    %v1884 = vsel %vm242, %v1878, 0
    %1886 = vmatprep.subr.bf16.mxu0 0
    %1887 = vmatpush1.bf16.msra.mxu0 %v1877
    %1888 = vmatprep.subr.bf16.mxu0 0
    %1889 = vmatpush1.bf16.msra.mxu0 %v1884
    %1890 = vmatprep.subr.bf16.mxu0 0
    %1891 = vmatpush1.bf16.msra.mxu0 0
    %1892 = vmatprep.subr.bf16.mxu0 0
    %1893 = vmatpush1.bf16.msra.mxu0 0
    %1894 = vmatprep.subr.bf16.mxu0 0
    %1895 = vmatpush1.bf16.msra.mxu0 0
    %1896 = vmatprep.subr.bf16.mxu0 0
    %1897 = vmatpush1.bf16.msra.mxu0 0
    %1898 = vmatprep.subr.bf16.mxu0 0
    %1899 = vmatpush1.bf16.msra.mxu0 0
    %1900 = vmatprep.subr.bf16.mxu0 0
    %1901 = vmatpush1.bf16.msra.mxu0 0
    %1902 = vmatprep.subr.bf16.mxu0 0
    %1903 = vmatpush1.bf16.msra.mxu0 0
    %1904 = vmatprep.subr.bf16.mxu0 0
    %1905 = vmatpush1.bf16.msra.mxu0 0
    %1906 = vmatprep.subr.bf16.mxu0 0
    %1907 = vmatpush1.bf16.msra.mxu0 0
    %1908 = vmatprep.subr.bf16.mxu0 0
    %1909 = vmatpush1.bf16.msra.mxu0 0
    %1910 = vmatprep.subr.bf16.mxu0 0
    %1911 = vmatpush1.bf16.msra.mxu0 0
    %1912 = vmatprep.subr.bf16.mxu0 0
    %1913 = vmatpush1.bf16.msra.mxu0 0
    %1914 = vmatprep.subr.bf16.mxu0 0
    %1915 = vmatpush1.bf16.msra.mxu0 0
    %1916 = vmatprep.subr.bf16.mxu0 0
    %1917 = vmatpush1.bf16.msra.mxu0 0
    %1918 = vmatprep.mubr.bf16.mxu0 0
    %1919 = vmatmul.mubr.bf16.gmra.mrb[0].mxu0 %v1881
    %v1920 = vpop.f32.mrb[0].mxu0
    %v1921 = vadd.f32 %v1870, %v1920
    %v1922 = vpop.f32.mrb[0].mxu0
    %v1923 = vpop.f32.mrb[0].mxu0
    %v1924 = vadd.f32 %v1870, %v1923
    %v1925 = vpop.f32.mrb[0].mxu0
    %1926 = vdwg.mxu0
    %1929 = vrot.lane.b32.xlu0 %v1921, 32
    %v1930 = vpop.permute.xlu0 %1929
    %1931 = vrot.lane.b32.xlu0 %v1924, 32
    %v1932 = vpop.permute.xlu0 %1931
    %1935 = vrot.lane.b32.xlu0 %v1856, 32
    %v1936 = vpop.permute.xlu0 %1935
    %1937 = vrot.lane.b32.xlu0 %v1862, 32
    %v1938 = vpop.permute.xlu0 %1937
    %1941 = vrot.lane.b32.xlu0 %v1921, 64
    %v1942 = vpop.permute.xlu0 %1941
    %1943 = vrot.lane.b32.xlu0 %v1924, 64
    %v1944 = vpop.permute.xlu0 %1943
    %1947 = vrot.lane.b32.xlu0 %v1856, 64
    %v1948 = vpop.permute.xlu0 %1947
    %1949 = vrot.lane.b32.xlu0 %v1862, 64
    %v1950 = vpop.permute.xlu0 %1949
    %1953 = vrot.lane.b32.xlu0 %v1921, 96
    %v1954 = vpop.permute.xlu0 %1953
    %1955 = vrot.lane.b32.xlu0 %v1924, 96
    %v1956 = vpop.permute.xlu0 %1955
    %v1959 = vsel %vm301, %v1856, %v1930
    %v1960 = vsel %vm301, %v1862, %v1932
    %v1961 = vsel %vm323, %v1959, %v1936
    %v1962 = vsel %vm323, %v1960, %v1938
    %vm1963 = vcmask 785408
    %v1964 = vsel %vm1963, %v1961, %v1942
    %v1965 = vsel %vm1963, %v1962, %v1944
    %v1966 = vsel %vm301, %v1948, %v1954
    %v1967 = vsel %vm301, %v1950, %v1956
    %v1976 = vunpack.c.l.b16 %v1758
    %v1977 = vunpack.c.h.b16 %v1758
    %v1978 = vunpack.c.l.b16 %v1759
    %v1979 = vunpack.c.h.b16 %v1759
    %v1980 = vunpack.c.l.b16 %v1760
    %v1981 = vunpack.c.h.b16 %v1760
    %v1982 = vunpack.c.l.b16 %v1761
    %v1983 = vunpack.c.h.b16 %v1761
    %v1984 = vunpack.c.l.b16 %v1762
    %v1985 = vunpack.c.h.b16 %v1762
    %v1986 = vunpack.c.l.b16 %v1763
    %v1987 = vunpack.c.h.b16 %v1763
    %v1988 = vunpack.c.l.b16 %v1764
    %v1989 = vunpack.c.h.b16 %v1764
    %v1990 = vunpack.c.l.b16 %v1765
    %v1991 = vunpack.c.h.b16 %v1765
    %v1992 = vpack.c.b16 %v1978, %v1976
    %v1993 = vpack.c.b16 %v1979, %v1977
    %v1994 = vpack.c.b16 %v1982, %v1980
    %v1995 = vpack.c.b16 %v1983, %v1981
    %v1996 = vpack.c.b16 %v1986, %v1984
    %v1997 = vpack.c.b16 %v1987, %v1985
    %v1998 = vpack.c.b16 %v1990, %v1988
    %v1999 = vpack.c.b16 %v1991, %v1989
    %v2009 = vsel %vm323, 0, 0
    %2011 = vmatprep.subr.bf16.mxu0 %v1993
    %2012 = vmatpush1.bf16.msra.mxu0 %v1992
    %2013 = vmatprep.subr.bf16.mxu0 %v1995
    %2014 = vmatpush1.bf16.msra.mxu0 %v1994
    %2015 = vmatprep.subr.bf16.mxu0 %v1997
    %2016 = vmatpush1.bf16.msra.mxu0 %v1996
    %2017 = vmatprep.subr.bf16.mxu0 %v1999
    %2018 = vmatpush1.bf16.msra.mxu0 %v1998
    %2019 = vmatprep.subr.bf16.mxu0 0
    %2020 = vmatpush1.bf16.msra.mxu0 0
    %2021 = vmatprep.subr.bf16.mxu0 0
    %2022 = vmatpush1.bf16.msra.mxu0 0
    %2023 = vmatprep.subr.bf16.mxu0 0
    %2024 = vmatpush1.bf16.msra.mxu0 0
    %2025 = vmatprep.subr.bf16.mxu0 0
    %2026 = vmatpush1.bf16.msra.mxu0 0
    %2027 = vmatprep.subr.bf16.mxu0 0
    %2028 = vmatpush1.bf16.msra.mxu0 0
    %2029 = vmatprep.subr.bf16.mxu0 0
    %2030 = vmatpush1.bf16.msra.mxu0 0
    %2031 = vmatprep.subr.bf16.mxu0 0
    %2032 = vmatpush1.bf16.msra.mxu0 0
    %2033 = vmatprep.subr.bf16.mxu0 0
    %2034 = vmatpush1.bf16.msra.mxu0 0
    %2035 = vmatprep.subr.bf16.mxu0 0
    %2036 = vmatpush1.bf16.msra.mxu0 0
    %2037 = vmatprep.subr.bf16.mxu0 0
    %2038 = vmatpush1.bf16.msra.mxu0 0
    %2039 = vmatprep.subr.bf16.mxu0 0
    %2040 = vmatpush1.bf16.msra.mxu0 0
    %2041 = vmatprep.subr.bf16.mxu0 0
    %2042 = vmatpush1.bf16.msra.mxu0 0
    %2043 = vmatprep.mubr.bf16.mxu0 0
    %2044 = vmatmul.mubr.bf16.gmra.mrb[0].mxu0 %v2009
    %v2045 = vpop.f32.mrb[0].mxu0
    %v2046 = vadd.f32 0.0, %v2045
    %v2047 = vpop.f32.mrb[0].mxu0
    %v2048 = vadd.f32 0.0, %v2047
    %v2049 = vpop.f32.mrb[0].mxu0
    %v2050 = vpop.f32.mrb[0].mxu0
    %2051 = vdwg.mxu0
    %v2053 = vrot.slane %v2046, 1
    %v2056 = vadd.f32 %v1964, %v2046
    %v2057 = vadd.f32 %v1965, %v2053
    %v2058 = vxor.u32 %v2056, 2147483648
    %v2059 = vxor.u32 %v2057, 2147483648
    %v2060 = vmul.f32 %v2058, 1.442695
    %v2061 = vpow.pop %v2060
    %v2062 = vmul.f32 %v2059, 1.442695
    %v2063 = vpow.pop %v2062
    %v2064 = vadd.f32 %v2061, 1.0
    %v2065 = vadd.f32 %v2063, 1.0
    %v2066 = vrcp.pop %v2064
    %v2067 = vmul.f32 1.0, %v2066
    %v2068 = vrcp.pop %v2065
    %v2069 = vmul.f32 1.0, %v2068
    %v2070 = vlaneseq
    %v2071 = vshrl.u32 %v2070, 7
    %v2072 = vsub.s32 3, %v2071
    %v2073 = vrot.slane %v28, %v2072
    %v2074 = vadd.f32 %v2048, %v2073
    %v2076 = vrot.slane %v2074, 1
    %v2079 = vmul.f32 %v2067, %v2074
    %v2080 = vmul.f32 %v2069, %v2076
    %v2081 = vadd.f32 %v1966, %v2079
    %v2082 = vadd.f32 %v1967, %v2080
    %v2083 = vtanh.pop %v2081
    %v2084 = vtanh.pop %v2082
    %v2085 = vsub.f32 1.0, %v2067
    %v2086 = vsub.f32 1.0, %v2069
    %2089 = vrot.lane.b32.xlu0 %v2083, 64
    %v2090 = vpop.permute.xlu0 %2089
    %2091 = vrot.lane.b32.xlu0 %v2084, 64
    %v2092 = vpop.permute.xlu0 %2091
    %v2095 = vmul.f32 %v2085, %v2090
    %v2096 = vmul.f32 %v2086, %v2092
    %v2097 = vmul.f32 %v2067, 0.0
    %v2098 = vmul.f32 %v2069, 0.0
    %v2099 = vadd.f32 %v2095, %v2097
    %v2100 = vadd.f32 %v2096, %v2098
    %v2101 = vadd.f32 %v2099, 0.0
    %v2102 = vadd.f32 %v2100, 0.0
    %v2103 = vpack.c.bf16 %v2099, %v2099
    %v2104 = vpack.c.bf16 %v2100, %v2100
    %v2107 = vunpack.c.l.b16 %v2103
    %v2108 = vunpack.c.l.b16 %v2104
    %v2109 = vrot.slane %v2108, 7
    %v2110 = vsel %vm933, %v2109, %v2107
    %v2111 = vpack.c.b16 %v2110, %v2110
    %2112 = vrot.lane.b32.xlu0 %v2111, 64
    %v2113 = vpop.permute.xlu0 %2112
    %v2115 = vsel %vm323, %v2113, 0
    %2117 = vmatprep.subr.bf16.mxu0 %v1993
    %2118 = vmatpush1.bf16.msra.mxu0 %v1992
    %2119 = vmatprep.subr.bf16.mxu0 %v1995
    %2120 = vmatpush1.bf16.msra.mxu0 %v1994
    %2121 = vmatprep.subr.bf16.mxu0 %v1997
    %2122 = vmatpush1.bf16.msra.mxu0 %v1996
    %2123 = vmatprep.subr.bf16.mxu0 %v1999
    %2124 = vmatpush1.bf16.msra.mxu0 %v1998
    %2125 = vmatprep.subr.bf16.mxu0 0
    %2126 = vmatpush1.bf16.msra.mxu0 0
    %2127 = vmatprep.subr.bf16.mxu0 0
    %2128 = vmatpush1.bf16.msra.mxu0 0
    %2129 = vmatprep.subr.bf16.mxu0 0
    %2130 = vmatpush1.bf16.msra.mxu0 0
    %2131 = vmatprep.subr.bf16.mxu0 0
    %2132 = vmatpush1.bf16.msra.mxu0 0
    %2133 = vmatprep.subr.bf16.mxu0 0
    %2134 = vmatpush1.bf16.msra.mxu0 0
    %2135 = vmatprep.subr.bf16.mxu0 0
    %2136 = vmatpush1.bf16.msra.mxu0 0
    %2137 = vmatprep.subr.bf16.mxu0 0
    %2138 = vmatpush1.bf16.msra.mxu0 0
    %2139 = vmatprep.subr.bf16.mxu0 0
    %2140 = vmatpush1.bf16.msra.mxu0 0
    %2141 = vmatprep.subr.bf16.mxu0 0
    %2142 = vmatpush1.bf16.msra.mxu0 0
    %2143 = vmatprep.subr.bf16.mxu0 0
    %2144 = vmatpush1.bf16.msra.mxu0 0
    %2145 = vmatprep.subr.bf16.mxu0 0
    %2146 = vmatpush1.bf16.msra.mxu0 0
    %2147 = vmatprep.subr.bf16.mxu0 0
    %2148 = vmatpush1.bf16.msra.mxu0 0
    %2149 = vmatprep.mubr.bf16.mxu0 0
    %2150 = vmatmul.mubr.bf16.gmra.mrb[0].mxu0 %v2115
    %v2151 = vpop.f32.mrb[0].mxu0
    %v2152 = vadd.f32 0.0, %v2151
    %v2153 = vpop.f32.mrb[0].mxu0
    %v2154 = vadd.f32 0.0, %v2153
    %v2155 = vpop.f32.mrb[0].mxu0
    %v2156 = vpop.f32.mrb[0].mxu0
    %2157 = vdwg.mxu0
    %v2159 = vrot.slane %v2152, 7
    %v2162 = vadd.f32 %v1964, %v2159
    %v2163 = vadd.f32 %v1965, %v2152
    %v2164 = vxor.u32 %v2162, 2147483648
    %v2165 = vxor.u32 %v2163, 2147483648
    %v2166 = vmul.f32 %v2164, 1.442695
    %v2167 = vpow.pop %v2166
    %v2168 = vmul.f32 %v2165, 1.442695
    %v2169 = vpow.pop %v2168
    %v2170 = vadd.f32 %v2167, 1.0
    %v2171 = vadd.f32 %v2169, 1.0
    %v2172 = vrcp.pop %v2170
    %v2173 = vmul.f32 1.0, %v2172
    %v2174 = vrcp.pop %v2171
    %v2175 = vmul.f32 1.0, %v2174
    %v2176 = vadd.f32 %v2154, %v2073
    %v2178 = vrot.slane %v2176, 7
    %v2181 = vmul.f32 %v2173, %v2178
    %v2182 = vmul.f32 %v2175, %v2176
    %v2183 = vadd.f32 %v1966, %v2181
    %v2184 = vadd.f32 %v1967, %v2182
    %v2185 = vtanh.pop %v2183
    %v2186 = vtanh.pop %v2184
    %v2187 = vsub.f32 1.0, %v2173
    %v2188 = vsub.f32 1.0, %v2175
    %2191 = vrot.lane.b32.xlu0 %v2185, 64
    %v2192 = vpop.permute.xlu0 %2191
    %2193 = vrot.lane.b32.xlu0 %v2186, 64
    %v2194 = vpop.permute.xlu0 %2193
    %v2197 = vmul.f32 %v2187, %v2192
    %v2198 = vmul.f32 %v2188, %v2194
    %v2201 = vrot.slane %v2099, 7
    %v2202 = vrot.slane %v2100, 7
    %v2205 = vmul.f32 %v2173, %v2201
    %v2206 = vmul.f32 %v2175, %v2202
    %v2207 = vadd.f32 %v2197, %v2205
    %v2208 = vadd.f32 %v2198, %v2206
    %v2211 = vrot.slane %v2207, 1
    %v2212 = vrot.slane %v2208, 1
    %v2215 = vadd.f32 %v2101, %v2211
    %v2216 = vadd.f32 %v2102, %v2212
    %v2217 = vpack.c.bf16 %v2207, %v2207
    %v2218 = vpack.c.bf16 %v2208, %v2208
    %v2221 = vunpack.c.l.b16 %v2217
    %v2222 = vunpack.c.l.b16 %v2218
    %v2223 = vrot.slane %v2221, 1
    %v2224 = vsel %vm933, %v2222, %v2223
    %v2225 = vpack.c.b16 %v2224, %v2224
    %2226 = vrot.lane.b32.xlu0 %v2225, 64
    %v2227 = vpop.permute.xlu0 %2226
    %v2229 = vsel %vm323, %v2227, 0
    %2231 = vmatprep.subr.bf16.mxu0 %v1993
    %2232 = vmatpush1.bf16.msra.mxu0 %v1992
    %2233 = vmatprep.subr.bf16.mxu0 %v1995
    %2234 = vmatpush1.bf16.msra.mxu0 %v1994
    %2235 = vmatprep.subr.bf16.mxu0 %v1997
    %2236 = vmatpush1.bf16.msra.mxu0 %v1996
    %2237 = vmatprep.subr.bf16.mxu0 %v1999
    %2238 = vmatpush1.bf16.msra.mxu0 %v1998
    %2239 = vmatprep.subr.bf16.mxu0 0
    %2240 = vmatpush1.bf16.msra.mxu0 0
    %2241 = vmatprep.subr.bf16.mxu0 0
    %2242 = vmatpush1.bf16.msra.mxu0 0
    %2243 = vmatprep.subr.bf16.mxu0 0
    %2244 = vmatpush1.bf16.msra.mxu0 0
    %2245 = vmatprep.subr.bf16.mxu0 0
    %2246 = vmatpush1.bf16.msra.mxu0 0
    %2247 = vmatprep.subr.bf16.mxu0 0
    %2248 = vmatpush1.bf16.msra.mxu0 0
    %2249 = vmatprep.subr.bf16.mxu0 0
    %2250 = vmatpush1.bf16.msra.mxu0 0
    %2251 = vmatprep.subr.bf16.mxu0 0
    %2252 = vmatpush1.bf16.msra.mxu0 0
    %2253 = vmatprep.subr.bf16.mxu0 0
    %2254 = vmatpush1.bf16.msra.mxu0 0
    %2255 = vmatprep.subr.bf16.mxu0 0
    %2256 = vmatpush1.bf16.msra.mxu0 0
    %2257 = vmatprep.subr.bf16.mxu0 0
    %2258 = vmatpush1.bf16.msra.mxu0 0
    %2259 = vmatprep.subr.bf16.mxu0 0
    %2260 = vmatpush1.bf16.msra.mxu0 0
    %2261 = vmatprep.subr.bf16.mxu0 0
    %2262 = vmatpush1.bf16.msra.mxu0 0
    %2263 = vmatprep.mubr.bf16.mxu0 0
    %2264 = vmatmul.mubr.bf16.gmra.mrb[0].mxu0 %v2229
    %v2265 = vpop.f32.mrb[0].mxu0
    %v2266 = vadd.f32 0.0, %v2265
    %v2267 = vpop.f32.mrb[0].mxu0
    %v2268 = vadd.f32 0.0, %v2267
    %v2269 = vpop.f32.mrb[0].mxu0
    %v2270 = vpop.f32.mrb[0].mxu0
    %2271 = vdwg.mxu0
    %v2273 = vrot.slane %v2266, 6
    %v2274 = vrot.slane %v2266, 7
    %v2277 = vadd.f32 %v1964, %v2273
    %v2278 = vadd.f32 %v1965, %v2274
    %v2279 = vxor.u32 %v2277, 2147483648
    %v2280 = vxor.u32 %v2278, 2147483648
    %v2281 = vmul.f32 %v2279, 1.442695
    %v2282 = vpow.pop %v2281
    %v2283 = vmul.f32 %v2280, 1.442695
    %v2284 = vpow.pop %v2283
    %v2285 = vadd.f32 %v2282, 1.0
    %v2286 = vadd.f32 %v2284, 1.0
    %v2287 = vrcp.pop %v2285
    %v2288 = vmul.f32 1.0, %v2287
    %v2289 = vrcp.pop %v2286
    %v2290 = vmul.f32 1.0, %v2289
    %v2291 = vadd.f32 %v2268, %v2073
    %v2293 = vrot.slane %v2291, 6
    %v2294 = vrot.slane %v2291, 7
    %v2297 = vmul.f32 %v2288, %v2293
    %v2298 = vmul.f32 %v2290, %v2294
    %v2299 = vadd.f32 %v1966, %v2297
    %v2300 = vadd.f32 %v1967, %v2298
    %v2301 = vtanh.pop %v2299
    %v2302 = vtanh.pop %v2300
    %v2303 = vsub.f32 1.0, %v2288
    %v2304 = vsub.f32 1.0, %v2290
    %2307 = vrot.lane.b32.xlu0 %v2301, 64
    %v2308 = vpop.permute.xlu0 %2307
    %2309 = vrot.lane.b32.xlu0 %v2302, 64
    %v2310 = vpop.permute.xlu0 %2309
    %v2313 = vmul.f32 %v2303, %v2308
    %v2314 = vmul.f32 %v2304, %v2310
    %v2315 = vrot.slane %v2207, 7
    %v2316 = vrot.slane %v2208, 7
    %v2319 = vmul.f32 %v2288, %v2315
    %v2320 = vmul.f32 %v2290, %v2316
    %v2321 = vadd.f32 %v2313, %v2319
    %v2322 = vadd.f32 %v2314, %v2320
    %v2325 = vrot.slane %v2321, 2
    %v2326 = vrot.slane %v2322, 2
    %v2329 = vadd.f32 %v2215, %v2325
    %v2330 = vadd.f32 %v2216, %v2326
    %v2331 = vpack.c.bf16 %v2321, %v2321
    %v2332 = vpack.c.bf16 %v2322, %v2322
    %v2335 = vunpack.c.l.b16 %v2331
    %v2336 = vunpack.c.l.b16 %v2332
    %v2337 = vrot.slane %v2335, 2
    %v2338 = vrot.slane %v2336, 1
    %v2339 = vsel %vm933, %v2338, %v2337
    %v2340 = vpack.c.b16 %v2339, %v2339
    %2341 = vrot.lane.b32.xlu0 %v2340, 64
    %v2342 = vpop.permute.xlu0 %2341
    %v2344 = vsel %vm323, %v2342, 0
    %2346 = vmatprep.subr.bf16.mxu0 %v1993
    %2347 = vmatpush1.bf16.msra.mxu0 %v1992
    %2348 = vmatprep.subr.bf16.mxu0 %v1995
    %2349 = vmatpush1.bf16.msra.mxu0 %v1994
    %2350 = vmatprep.subr.bf16.mxu0 %v1997
    %2351 = vmatpush1.bf16.msra.mxu0 %v1996
    %2352 = vmatprep.subr.bf16.mxu0 %v1999
    %2353 = vmatpush1.bf16.msra.mxu0 %v1998
    %2354 = vmatprep.subr.bf16.mxu0 0
    %2355 = vmatpush1.bf16.msra.mxu0 0
    %2356 = vmatprep.subr.bf16.mxu0 0
    %2357 = vmatpush1.bf16.msra.mxu0 0
    %2358 = vmatprep.subr.bf16.mxu0 0
    %2359 = vmatpush1.bf16.msra.mxu0 0
    %2360 = vmatprep.subr.bf16.mxu0 0
    %2361 = vmatpush1.bf16.msra.mxu0 0
    %2362 = vmatprep.subr.bf16.mxu0 0
    %2363 = vmatpush1.bf16.msra.mxu0 0
    %2364 = vmatprep.subr.bf16.mxu0 0
    %2365 = vmatpush1.bf16.msra.mxu0 0
    %2366 = vmatprep.subr.bf16.mxu0 0
    %2367 = vmatpush1.bf16.msra.mxu0 0
    %2368 = vmatprep.subr.bf16.mxu0 0
    %2369 = vmatpush1.bf16.msra.mxu0 0
    %2370 = vmatprep.subr.bf16.mxu0 0
    %2371 = vmatpush1.bf16.msra.mxu0 0
    %2372 = vmatprep.subr.bf16.mxu0 0
    %2373 = vmatpush1.bf16.msra.mxu0 0
    %2374 = vmatprep.subr.bf16.mxu0 0
    %2375 = vmatpush1.bf16.msra.mxu0 0
    %2376 = vmatprep.subr.bf16.mxu0 0
    %2377 = vmatpush1.bf16.msra.mxu0 0
    %2378 = vmatprep.mubr.bf16.mxu0 0
    %2379 = vmatmul.mubr.bf16.gmra.mrb[0].mxu0 %v2344
    %v2380 = vpop.f32.mrb[0].mxu0
    %v2381 = vadd.f32 0.0, %v2380
    %v2382 = vpop.f32.mrb[0].mxu0
    %v2383 = vadd.f32 0.0, %v2382
    %v2384 = vpop.f32.mrb[0].mxu0
    %v2385 = vpop.f32.mrb[0].mxu0
    %2386 = vdwg.mxu0
    %v2388 = vrot.slane %v2381, 5
    %v2389 = vrot.slane %v2381, 6
    %v2392 = vadd.f32 %v1964, %v2388
    %v2393 = vadd.f32 %v1965, %v2389
    %v2394 = vxor.u32 %v2392, 2147483648
    %v2395 = vxor.u32 %v2393, 2147483648
    %v2396 = vmul.f32 %v2394, 1.442695
    %v2397 = vpow.pop %v2396
    %v2398 = vmul.f32 %v2395, 1.442695
    %v2399 = vpow.pop %v2398
    %v2400 = vadd.f32 %v2397, 1.0
    %v2401 = vadd.f32 %v2399, 1.0
    %v2402 = vrcp.pop %v2400
    %v2403 = vmul.f32 1.0, %v2402
    %v2404 = vrcp.pop %v2401
    %v2405 = vmul.f32 1.0, %v2404
    %v2406 = vadd.f32 %v2383, %v2073
    %v2408 = vrot.slane %v2406, 5
    %v2409 = vrot.slane %v2406, 6
    %v2412 = vmul.f32 %v2403, %v2408
    %v2413 = vmul.f32 %v2405, %v2409
    %v2414 = vadd.f32 %v1966, %v2412
    %v2415 = vadd.f32 %v1967, %v2413
    %v2416 = vtanh.pop %v2414
    %v2417 = vtanh.pop %v2415
    %v2418 = vsub.f32 1.0, %v2403
    %v2419 = vsub.f32 1.0, %v2405
    %2422 = vrot.lane.b32.xlu0 %v2416, 64
    %v2423 = vpop.permute.xlu0 %2422
    %2424 = vrot.lane.b32.xlu0 %v2417, 64
    %v2425 = vpop.permute.xlu0 %2424
    %v2428 = vmul.f32 %v2418, %v2423
    %v2429 = vmul.f32 %v2419, %v2425
    %v2430 = vrot.slane %v2321, 7
    %v2431 = vrot.slane %v2322, 7
    %v2434 = vmul.f32 %v2403, %v2430
    %v2435 = vmul.f32 %v2405, %v2431
    %v2436 = vadd.f32 %v2428, %v2434
    %v2437 = vadd.f32 %v2429, %v2435
    %v2440 = vrot.slane %v2436, 3
    %v2441 = vrot.slane %v2437, 3
    %v2444 = vadd.f32 %v2329, %v2440
    %v2445 = vadd.f32 %v2330, %v2441
    %v2446 = vpack.c.bf16 %v2436, %v2436
    %v2447 = vpack.c.bf16 %v2437, %v2437
    %v2450 = vunpack.c.l.b16 %v2446
    %v2451 = vunpack.c.l.b16 %v2447
    %v2452 = vrot.slane %v2450, 3
    %v2453 = vrot.slane %v2451, 2
    %v2454 = vsel %vm933, %v2453, %v2452
    %v2455 = vpack.c.b16 %v2454, %v2454
    %2456 = vrot.lane.b32.xlu0 %v2455, 32
    %v2457 = vpop.permute.xlu0 %2456
    %v2462 = vunpack.c.l.b16 %v1766
    %v2463 = vunpack.c.l.b16 %v1767
    %v2464 = vunpack.c.l.b16 %v1768
    %v2465 = vunpack.c.l.b16 %v1769
    %v2466 = vpack.c.b16 %v2463, %v2462
    %v2467 = vpack.c.b16 %v2465, %v2464
    %v2471 = vsel %vm301, %v2457, 0
    %2473 = vmatprep.subr.bf16.mxu0 0
    %2474 = vmatpush1.bf16.msra.mxu0 %v2466
    %2475 = vmatprep.subr.bf16.mxu0 0
    %2476 = vmatpush1.bf16.msra.mxu0 %v2467
    %2477 = vmatprep.subr.bf16.mxu0 0
    %2478 = vmatpush1.bf16.msra.mxu0 0
    %2479 = vmatprep.subr.bf16.mxu0 0
    %2480 = vmatpush1.bf16.msra.mxu0 0
    %2481 = vmatprep.subr.bf16.mxu0 0
    %2482 = vmatpush1.bf16.msra.mxu0 0
    %2483 = vmatprep.subr.bf16.mxu0 0
    %2484 = vmatpush1.bf16.msra.mxu0 0
    %2485 = vmatprep.subr.bf16.mxu0 0
    %2486 = vmatpush1.bf16.msra.mxu0 0
    %2487 = vmatprep.subr.bf16.mxu0 0
    %2488 = vmatpush1.bf16.msra.mxu0 0
    %2489 = vmatprep.subr.bf16.mxu0 0
    %2490 = vmatpush1.bf16.msra.mxu0 0
    %2491 = vmatprep.subr.bf16.mxu0 0
    %2492 = vmatpush1.bf16.msra.mxu0 0
    %2493 = vmatprep.subr.bf16.mxu0 0
    %2494 = vmatpush1.bf16.msra.mxu0 0
    %2495 = vmatprep.subr.bf16.mxu0 0
    %2496 = vmatpush1.bf16.msra.mxu0 0
    %2497 = vmatprep.subr.bf16.mxu0 0
    %2498 = vmatpush1.bf16.msra.mxu0 0
    %2499 = vmatprep.subr.bf16.mxu0 0
    %2500 = vmatpush1.bf16.msra.mxu0 0
    %2501 = vmatprep.subr.bf16.mxu0 0
    %2502 = vmatpush1.bf16.msra.mxu0 0
    %2503 = vmatprep.subr.bf16.mxu0 0
    %2504 = vmatpush1.bf16.msra.mxu0 0
    %2505 = vmatprep.mubr.bf16.mxu0 0
    %2506 = vmatmul.mubr.bf16.gmra.mrb[0].mxu0 %v2471
    %v2507 = vpop.f32.mrb[0].mxu0
    %v2508 = vadd.f32 0.0, %v2507
    %v2509 = vpop.f32.mrb[0].mxu0
    %v2510 = vpop.f32.mrb[0].mxu0
    %v2511 = vpop.f32.mrb[0].mxu0
    %2512 = vdwg.mxu0
    %v2514 = vrot.slane %v2508, 4
    %v2515 = vrot.slane %v2508, 5
    %v2518 = vadd.f32 %v1921, %v2514
    %v2519 = vadd.f32 %v1924, %v2515
    %v2520 = vxor.u32 %v2518, 2147483648
    %v2521 = vxor.u32 %v2519, 2147483648
    %v2522 = vmul.f32 %v2520, 1.442695
    %v2523 = vpow.pop %v2522
    %v2524 = vmul.f32 %v2521, 1.442695
    %v2525 = vpow.pop %v2524
    %v2526 = vadd.f32 %v2523, 1.0
    %v2527 = vadd.f32 %v2525, 1.0
    %v2528 = vrcp.pop %v2526
    %v2529 = vmul.f32 1.0, %v2528
    %v2530 = vrcp.pop %v2527
    %v2531 = vmul.f32 1.0, %v2530
    %2533 = vrot.lane.b32.xlu0 %v2073, 32
    %v2534 = vpop.permute.xlu0 %2533
    %v2536 = vadd.f32 %v2508, %v2534
    %v2538 = vrot.slane %v2536, 4
    %v2539 = vrot.slane %v2536, 5
    %2540 = vrot.lane.b32.xlu0 %v2538, 64
    %v2541 = vpop.permute.xlu0 %2540
    %2542 = vrot.lane.b32.xlu0 %v2539, 64
    %v2543 = vpop.permute.xlu0 %2542
    %v2546 = vmul.f32 %v2529, %v2541
    %v2547 = vmul.f32 %v2531, %v2543
    %2550 = vrot.lane.b32.xlu0 %v2546, 64
    %v2551 = vpop.permute.xlu0 %2550
    %2552 = vrot.lane.b32.xlu0 %v2547, 64
    %v2553 = vpop.permute.xlu0 %2552
    %v2556 = vadd.f32 %v1921, %v2551
    %v2557 = vadd.f32 %v1924, %v2553
    %v2558 = vtanh.pop %v2556
    %v2559 = vtanh.pop %v2557
    %v2560 = vsub.f32 1.0, %v2529
    %v2561 = vsub.f32 1.0, %v2531
    %2564 = vrot.lane.b32.xlu0 %v2558, 96
    %v2565 = vpop.permute.xlu0 %2564
    %2566 = vrot.lane.b32.xlu0 %v2559, 96
    %v2567 = vpop.permute.xlu0 %2566
    %v2570 = vmul.f32 %v2560, %v2565
    %v2571 = vmul.f32 %v2561, %v2567
    %v2572 = vrot.slane %v2436, 7
    %v2573 = vrot.slane %v2437, 7
    %2574 = vrot.lane.b32.xlu0 %v2572, 64
    %v2575 = vpop.permute.xlu0 %2574
    %2576 = vrot.lane.b32.xlu0 %v2573, 64
    %v2577 = vpop.permute.xlu0 %2576
    %v2580 = vmul.f32 %v2529, %v2575
    %v2581 = vmul.f32 %v2531, %v2577
    %v2582 = vadd.f32 %v2570, %v2580
    %v2583 = vadd.f32 %v2571, %v2581
    %v2586 = vrot.slane %v2582, 4
    %v2587 = vrot.slane %v2583, 4
    %2588 = vrot.lane.b32.xlu0 %v2586, 64
    %v2589 = vpop.permute.xlu0 %2588
    %2590 = vrot.lane.b32.xlu0 %v2587, 64
    %v2591 = vpop.permute.xlu0 %2590
    %v2594 = vadd.f32 %v2444, %v2589
    %v2595 = vadd.f32 %v2445, %v2591
    %v2596 = vpack.c.bf16 %v2582, %v2582
    %v2597 = vpack.c.bf16 %v2583, %v2583
    %v2600 = vunpack.c.l.b16 %v2596
    %v2601 = vunpack.c.l.b16 %v2597
    %v2602 = vrot.slane %v2600, 4
    %v2603 = vrot.slane %v2601, 3
    %v2604 = vsel %vm933, %v2603, %v2602
    %v2605 = vpack.c.b16 %v2604, %v2604
    %2606 = vrot.lane.b32.xlu0 %v2605, 96
    %v2607 = vpop.permute.xlu0 %2606
    %v2609 = vsel %vm301, %v2607, 0
    %2611 = vmatprep.subr.bf16.mxu0 0
    %2612 = vmatpush1.bf16.msra.mxu0 %v2466
    %2613 = vmatprep.subr.bf16.mxu0 0
    %2614 = vmatpush1.bf16.msra.mxu0 %v2467
    %2615 = vmatprep.subr.bf16.mxu0 0
    %2616 = vmatpush1.bf16.msra.mxu0 0
    %2617 = vmatprep.subr.bf16.mxu0 0
    %2618 = vmatpush1.bf16.msra.mxu0 0
    %2619 = vmatprep.subr.bf16.mxu0 0
    %2620 = vmatpush1.bf16.msra.mxu0 0
    %2621 = vmatprep.subr.bf16.mxu0 0
    %2622 = vmatpush1.bf16.msra.mxu0 0
    %2623 = vmatprep.subr.bf16.mxu0 0
    %2624 = vmatpush1.bf16.msra.mxu0 0
    %2625 = vmatprep.subr.bf16.mxu0 0
    %2626 = vmatpush1.bf16.msra.mxu0 0
    %2627 = vmatprep.subr.bf16.mxu0 0
    %2628 = vmatpush1.bf16.msra.mxu0 0
    %2629 = vmatprep.subr.bf16.mxu0 0
    %2630 = vmatpush1.bf16.msra.mxu0 0
    %2631 = vmatprep.subr.bf16.mxu0 0
    %2632 = vmatpush1.bf16.msra.mxu0 0
    %2633 = vmatprep.subr.bf16.mxu0 0
    %2634 = vmatpush1.bf16.msra.mxu0 0
    %2635 = vmatprep.subr.bf16.mxu0 0
    %2636 = vmatpush1.bf16.msra.mxu0 0
    %2637 = vmatprep.subr.bf16.mxu0 0
    %2638 = vmatpush1.bf16.msra.mxu0 0
    %2639 = vmatprep.subr.bf16.mxu0 0
    %2640 = vmatpush1.bf16.msra.mxu0 0
    %2641 = vmatprep.subr.bf16.mxu0 0
    %2642 = vmatpush1.bf16.msra.mxu0 0
    %2643 = vmatprep.mubr.bf16.mxu0 0
    %2644 = vmatmul.mubr.bf16.gmra.mrb[0].mxu0 %v2609
    %v2645 = vpop.f32.mrb[0].mxu0
    %v2646 = vadd.f32 0.0, %v2645
    %v2647 = vpop.f32.mrb[0].mxu0
    %v2648 = vpop.f32.mrb[0].mxu0
    %v2649 = vpop.f32.mrb[0].mxu0
    %2650 = vdwg.mxu0
    %v2652 = vrot.slane %v2646, 3
    %v2653 = vrot.slane %v2646, 4
    %v2656 = vadd.f32 %v1921, %v2652
    %v2657 = vadd.f32 %v1924, %v2653
    %v2658 = vxor.u32 %v2656, 2147483648
    %v2659 = vxor.u32 %v2657, 2147483648
    %v2660 = vmul.f32 %v2658, 1.442695
    %v2661 = vpow.pop %v2660
    %v2662 = vmul.f32 %v2659, 1.442695
    %v2663 = vpow.pop %v2662
    %v2664 = vadd.f32 %v2661, 1.0
    %v2665 = vadd.f32 %v2663, 1.0
    %v2666 = vrcp.pop %v2664
    %v2667 = vmul.f32 1.0, %v2666
    %v2668 = vrcp.pop %v2665
    %v2669 = vmul.f32 1.0, %v2668
    %v2670 = vadd.f32 %v2646, %v2534
    %v2672 = vrot.slane %v2670, 3
    %v2673 = vrot.slane %v2670, 4
    %2674 = vrot.lane.b32.xlu0 %v2672, 64
    %v2675 = vpop.permute.xlu0 %2674
    %2676 = vrot.lane.b32.xlu0 %v2673, 64
    %v2677 = vpop.permute.xlu0 %2676
    %v2680 = vmul.f32 %v2667, %v2675
    %v2681 = vmul.f32 %v2669, %v2677
    %2684 = vrot.lane.b32.xlu0 %v2680, 64
    %v2685 = vpop.permute.xlu0 %2684
    %2686 = vrot.lane.b32.xlu0 %v2681, 64
    %v2687 = vpop.permute.xlu0 %2686
    %v2690 = vadd.f32 %v1921, %v2685
    %v2691 = vadd.f32 %v1924, %v2687
    %v2692 = vtanh.pop %v2690
    %v2693 = vtanh.pop %v2691
    %v2694 = vsub.f32 1.0, %v2667
    %v2695 = vsub.f32 1.0, %v2669
    %2698 = vrot.lane.b32.xlu0 %v2692, 96
    %v2699 = vpop.permute.xlu0 %2698
    %2700 = vrot.lane.b32.xlu0 %v2693, 96
    %v2701 = vpop.permute.xlu0 %2700
    %v2704 = vmul.f32 %v2694, %v2699
    %v2705 = vmul.f32 %v2695, %v2701
    %v2706 = vrot.slane %v2582, 7
    %v2707 = vrot.slane %v2583, 7
    %v2710 = vmul.f32 %v2667, %v2706
    %v2711 = vmul.f32 %v2669, %v2707
    %v2712 = vadd.f32 %v2704, %v2710
    %v2713 = vadd.f32 %v2705, %v2711
    %v2716 = vrot.slane %v2712, 5
    %v2717 = vrot.slane %v2713, 5
    %2718 = vrot.lane.b32.xlu0 %v2716, 64
    %v2719 = vpop.permute.xlu0 %2718
    %2720 = vrot.lane.b32.xlu0 %v2717, 64
    %v2721 = vpop.permute.xlu0 %2720
    %v2724 = vadd.f32 %v2594, %v2719
    %v2725 = vadd.f32 %v2595, %v2721
    %v2726 = vpack.c.bf16 %v2712, %v2712
    %v2727 = vpack.c.bf16 %v2713, %v2713
    %v2730 = vunpack.c.l.b16 %v2726
    %v2731 = vunpack.c.l.b16 %v2727
    %v2732 = vrot.slane %v2730, 5
    %v2733 = vrot.slane %v2731, 4
    %v2734 = vsel %vm933, %v2733, %v2732
    %v2735 = vpack.c.b16 %v2734, %v2734
    %2736 = vrot.lane.b32.xlu0 %v2735, 96
    %v2737 = vpop.permute.xlu0 %2736
    %v2739 = vsel %vm301, %v2737, 0
    %2741 = vmatprep.subr.bf16.mxu0 0
    %2742 = vmatpush1.bf16.msra.mxu0 %v2466
    %2743 = vmatprep.subr.bf16.mxu0 0
    %2744 = vmatpush1.bf16.msra.mxu0 %v2467
    %2745 = vmatprep.subr.bf16.mxu0 0
    %2746 = vmatpush1.bf16.msra.mxu0 0
    %2747 = vmatprep.subr.bf16.mxu0 0
    %2748 = vmatpush1.bf16.msra.mxu0 0
    %2749 = vmatprep.subr.bf16.mxu0 0
    %2750 = vmatpush1.bf16.msra.mxu0 0
    %2751 = vmatprep.subr.bf16.mxu0 0
    %2752 = vmatpush1.bf16.msra.mxu0 0
    %2753 = vmatprep.subr.bf16.mxu0 0
    %2754 = vmatpush1.bf16.msra.mxu0 0
    %2755 = vmatprep.subr.bf16.mxu0 0
    %2756 = vmatpush1.bf16.msra.mxu0 0
    %2757 = vmatprep.subr.bf16.mxu0 0
    %2758 = vmatpush1.bf16.msra.mxu0 0
    %2759 = vmatprep.subr.bf16.mxu0 0
    %2760 = vmatpush1.bf16.msra.mxu0 0
    %2761 = vmatprep.subr.bf16.mxu0 0
    %2762 = vmatpush1.bf16.msra.mxu0 0
    %2763 = vmatprep.subr.bf16.mxu0 0
    %2764 = vmatpush1.bf16.msra.mxu0 0
    %2765 = vmatprep.subr.bf16.mxu0 0
    %2766 = vmatpush1.bf16.msra.mxu0 0
    %2767 = vmatprep.subr.bf16.mxu0 0
    %2768 = vmatpush1.bf16.msra.mxu0 0
    %2769 = vmatprep.subr.bf16.mxu0 0
    %2770 = vmatpush1.bf16.msra.mxu0 0
    %2771 = vmatprep.subr.bf16.mxu0 0
    %2772 = vmatpush1.bf16.msra.mxu0 0
    %2773 = vmatprep.mubr.bf16.mxu0 0
    %2774 = vmatmul.mubr.bf16.gmra.mrb[0].mxu0 %v2739
    %v2775 = vpop.f32.mrb[0].mxu0
    %v2776 = vadd.f32 0.0, %v2775
    %v2777 = vpop.f32.mrb[0].mxu0
    %v2778 = vpop.f32.mrb[0].mxu0
    %v2779 = vpop.f32.mrb[0].mxu0
    %2780 = vdwg.mxu0
    %v2782 = vrot.slane %v2776, 2
    %v2783 = vrot.slane %v2776, 3
    %v2786 = vadd.f32 %v1921, %v2782
    %v2787 = vadd.f32 %v1924, %v2783
    %v2788 = vxor.u32 %v2786, 2147483648
    %v2789 = vxor.u32 %v2787, 2147483648
    %v2790 = vmul.f32 %v2788, 1.442695
    %v2791 = vpow.pop %v2790
    %v2792 = vmul.f32 %v2789, 1.442695
    %v2793 = vpow.pop %v2792
    %v2794 = vadd.f32 %v2791, 1.0
    %v2795 = vadd.f32 %v2793, 1.0
    %v2796 = vrcp.pop %v2794
    %v2797 = vmul.f32 1.0, %v2796
    %v2798 = vrcp.pop %v2795
    %v2799 = vmul.f32 1.0, %v2798
    %v2800 = vadd.f32 %v2776, %v2534
    %v2802 = vrot.slane %v2800, 2
    %v2803 = vrot.slane %v2800, 3
    %2804 = vrot.lane.b32.xlu0 %v2802, 64
    %v2805 = vpop.permute.xlu0 %2804
    %2806 = vrot.lane.b32.xlu0 %v2803, 64
    %v2807 = vpop.permute.xlu0 %2806
    %v2810 = vmul.f32 %v2797, %v2805
    %v2811 = vmul.f32 %v2799, %v2807
    %2814 = vrot.lane.b32.xlu0 %v2810, 64
    %v2815 = vpop.permute.xlu0 %2814
    %2816 = vrot.lane.b32.xlu0 %v2811, 64
    %v2817 = vpop.permute.xlu0 %2816
    %v2820 = vadd.f32 %v1921, %v2815
    %v2821 = vadd.f32 %v1924, %v2817
    %v2822 = vtanh.pop %v2820
    %v2823 = vtanh.pop %v2821
    %v2824 = vsub.f32 1.0, %v2797
    %v2825 = vsub.f32 1.0, %v2799
    %2828 = vrot.lane.b32.xlu0 %v2822, 96
    %v2829 = vpop.permute.xlu0 %2828
    %2830 = vrot.lane.b32.xlu0 %v2823, 96
    %v2831 = vpop.permute.xlu0 %2830
    %v2834 = vmul.f32 %v2824, %v2829
    %v2835 = vmul.f32 %v2825, %v2831
    %v2836 = vrot.slane %v2712, 7
    %v2837 = vrot.slane %v2713, 7
    %v2840 = vmul.f32 %v2797, %v2836
    %v2841 = vmul.f32 %v2799, %v2837
    %v2842 = vadd.f32 %v2834, %v2840
    %v2843 = vadd.f32 %v2835, %v2841
    %v2846 = vrot.slane %v2842, 6
    %v2847 = vrot.slane %v2843, 6
    %2848 = vrot.lane.b32.xlu0 %v2846, 64
    %v2849 = vpop.permute.xlu0 %2848
    %2850 = vrot.lane.b32.xlu0 %v2847, 64
    %v2851 = vpop.permute.xlu0 %2850
    %v2854 = vadd.f32 %v2724, %v2849
    %v2855 = vadd.f32 %v2725, %v2851
    %v2856 = vpack.c.bf16 %v2842, %v2842
    %v2857 = vpack.c.bf16 %v2843, %v2843
    %v2860 = vunpack.c.l.b16 %v2856
    %v2861 = vunpack.c.l.b16 %v2857
    %v2862 = vrot.slane %v2860, 6
    %v2863 = vrot.slane %v2861, 5
    %v2864 = vsel %vm933, %v2863, %v2862
    %v2865 = vpack.c.b16 %v2864, %v2864
    %2866 = vrot.lane.b32.xlu0 %v2865, 96
    %v2867 = vpop.permute.xlu0 %2866
    %v2869 = vsel %vm301, %v2867, 0
    %2871 = vmatprep.subr.bf16.mxu0 0
    %2872 = vmatpush1.bf16.msra.mxu0 %v2466
    %2873 = vmatprep.subr.bf16.mxu0 0
    %2874 = vmatpush1.bf16.msra.mxu0 %v2467
    %2875 = vmatprep.subr.bf16.mxu0 0
    %2876 = vmatpush1.bf16.msra.mxu0 0
    %2877 = vmatprep.subr.bf16.mxu0 0
    %2878 = vmatpush1.bf16.msra.mxu0 0
    %2879 = vmatprep.subr.bf16.mxu0 0
    %2880 = vmatpush1.bf16.msra.mxu0 0
    %2881 = vmatprep.subr.bf16.mxu0 0
    %2882 = vmatpush1.bf16.msra.mxu0 0
    %2883 = vmatprep.subr.bf16.mxu0 0
    %2884 = vmatpush1.bf16.msra.mxu0 0
    %2885 = vmatprep.subr.bf16.mxu0 0
    %2886 = vmatpush1.bf16.msra.mxu0 0
    %2887 = vmatprep.subr.bf16.mxu0 0
    %2888 = vmatpush1.bf16.msra.mxu0 0
    %2889 = vmatprep.subr.bf16.mxu0 0
    %2890 = vmatpush1.bf16.msra.mxu0 0
    %2891 = vmatprep.subr.bf16.mxu0 0
    %2892 = vmatpush1.bf16.msra.mxu0 0
    %2893 = vmatprep.subr.bf16.mxu0 0
    %2894 = vmatpush1.bf16.msra.mxu0 0
    %2895 = vmatprep.subr.bf16.mxu0 0
    %2896 = vmatpush1.bf16.msra.mxu0 0
    %2897 = vmatprep.subr.bf16.mxu0 0
    %2898 = vmatpush1.bf16.msra.mxu0 0
    %2899 = vmatprep.subr.bf16.mxu0 0
    %2900 = vmatpush1.bf16.msra.mxu0 0
    %2901 = vmatprep.subr.bf16.mxu0 0
    %2902 = vmatpush1.bf16.msra.mxu0 0
    %2903 = vmatprep.mubr.bf16.mxu0 0
    %2904 = vmatmul.mubr.bf16.gmra.mrb[0].mxu0 %v2869
    %v2905 = vpop.f32.mrb[0].mxu0
    %v2906 = vadd.f32 0.0, %v2905
    %v2907 = vpop.f32.mrb[0].mxu0
    %v2908 = vpop.f32.mrb[0].mxu0
    %v2909 = vpop.f32.mrb[0].mxu0
    %2910 = vdwg.mxu0
    %v2912 = vrot.slane %v2906, 1
    %v2913 = vrot.slane %v2906, 2
    %v2916 = vadd.f32 %v1921, %v2912
    %v2917 = vadd.f32 %v1924, %v2913
    %v2918 = vxor.u32 %v2916, 2147483648
    %v2919 = vxor.u32 %v2917, 2147483648
    %v2920 = vmul.f32 %v2918, 1.442695
    %v2921 = vpow.pop %v2920
    %v2922 = vmul.f32 %v2919, 1.442695
    %v2923 = vpow.pop %v2922
    %v2924 = vadd.f32 %v2921, 1.0
    %v2925 = vadd.f32 %v2923, 1.0
    %v2926 = vrcp.pop %v2924
    %v2927 = vmul.f32 1.0, %v2926
    %v2928 = vrcp.pop %v2925
    %v2929 = vmul.f32 1.0, %v2928
    %v2930 = vadd.f32 %v2906, %v2534
    %v2932 = vrot.slane %v2930, 1
    %v2933 = vrot.slane %v2930, 2
    %2934 = vrot.lane.b32.xlu0 %v2932, 64
    %v2935 = vpop.permute.xlu0 %2934
    %2936 = vrot.lane.b32.xlu0 %v2933, 64
    %v2937 = vpop.permute.xlu0 %2936
    %v2940 = vmul.f32 %v2927, %v2935
    %v2941 = vmul.f32 %v2929, %v2937
    %2944 = vrot.lane.b32.xlu0 %v2940, 64
    %v2945 = vpop.permute.xlu0 %2944
    %2946 = vrot.lane.b32.xlu0 %v2941, 64
    %v2947 = vpop.permute.xlu0 %2946
    %v2950 = vadd.f32 %v1921, %v2945
    %v2951 = vadd.f32 %v1924, %v2947
    %v2952 = vtanh.pop %v2950
    %v2953 = vtanh.pop %v2951
    %v2954 = vsub.f32 1.0, %v2927
    %v2955 = vsub.f32 1.0, %v2929
    %2958 = vrot.lane.b32.xlu0 %v2952, 96
    %v2959 = vpop.permute.xlu0 %2958
    %2960 = vrot.lane.b32.xlu0 %v2953, 96
    %v2961 = vpop.permute.xlu0 %2960
    %v2964 = vmul.f32 %v2954, %v2959
    %v2965 = vmul.f32 %v2955, %v2961
    %v2966 = vrot.slane %v2842, 7
    %v2967 = vrot.slane %v2843, 7
    %v2970 = vmul.f32 %v2927, %v2966
    %v2971 = vmul.f32 %v2929, %v2967
    %v2972 = vadd.f32 %v2964, %v2970
    %v2973 = vadd.f32 %v2965, %v2971
    %v2976 = vrot.slane %v2972, 7
    %v2977 = vrot.slane %v2973, 7
    %2978 = vrot.lane.b32.xlu0 %v2976, 64
    %v2979 = vpop.permute.xlu0 %2978
    %2980 = vrot.lane.b32.xlu0 %v2977, 64
    %v2981 = vpop.permute.xlu0 %2980
    %v2984 = vadd.f32 %v2854, %v2979
    %v2985 = vadd.f32 %v2855, %v2981
    %v2986 = vmul.f32 %v2444, 0.25
    %v2987 = vmul.f32 %v2445, 0.25
    %v2988 = vmul.f32 %v2984, 0.125
    %v2989 = vmul.f32 %v2985, 0.125
    %v2992 = vrot.slane %v2987, 7
    %v2993 = vsel %vm933, %v2992, %v2986
    %2994 = vrot.lane.b32.xlu0 %v2993, 64
    %v2995 = vpop.permute.xlu0 %2994
    %v2999 = vrot.slane %v2989, 7
    %v3000 = vsel %vm933, %v2999, %v2988
    %3001 = vrot.lane.b32.xlu0 %v3000, 64
    %v3002 = vpop.permute.xlu0 %3001
    %v3004 = vsel %vm301, %v2995, %v3002
    %vm3005 = vcmask 517120
    %3006 = vst.msk [vmem:[#allocation7] sm:$0x3] %vm3005, %v3004
    %v3007 = vld [vmem:[%s4] sm:$0xf]
    %v3008 = vld [vmem:[%s4 + $0x4] sm:$0xf]
    %v3009 = vld [vmem:[%s4 + $0x8] sm:$0xf]
    %v3010 = vld [vmem:[%s4 + $0xc] sm:$0xf]
    %v3011 = vld [vmem:[%s4 + $0x10] sm:$0xf]
    %v3012 = vld [vmem:[%s4 + $0x14] sm:$0xf]
    %v3013 = vld [vmem:[%s4 + $0x18] sm:$0xf]
    %v3014 = vld [vmem:[%s4 + $0x1c] sm:$0xf]
    %v3015 = vld [vmem:[%s4 + $0x20] sm:$0xf]
    %v3016 = vld [vmem:[%s4 + $0x24] sm:$0xf]
    %v3017 = vld [vmem:[%s4 + $0x28] sm:$0xf]
    %v3018 = vld [vmem:[%s4 + $0x2c] sm:$0xf]
    %v3019 = vld [vmem:[%s4 + $0x30] sm:$0xf]
    %v3020 = vld [vmem:[%s4 + $0x34] sm:$0xf]
    %v3021 = vld [vmem:[%s4 + $0x38] sm:$0xf]
    %v3022 = vld [vmem:[%s4 + $0x3c] sm:$0xf]
    %v3023 = vpack.c.bf16 %v3004, %v3004
    %v3024 = vlaneseq
    %v3025 = vshrl.u32 %v3024, 7
    %v3026 = vsub.s32 4, %v3025
    %v3027 = vrot.slane %v28, %v3026
    %v3036 = vunpack.c.l.b16 %v3007
    %v3037 = vunpack.c.l.b16 %v3008
    %v3038 = vunpack.c.l.b16 %v3009
    %v3039 = vunpack.c.l.b16 %v3010
    %v3040 = vunpack.c.l.b16 %v3011
    %v3041 = vunpack.c.l.b16 %v3012
    %v3042 = vunpack.c.l.b16 %v3013
    %v3043 = vunpack.c.l.b16 %v3014
    %v3044 = vpack.c.b16 %v3037, %v3036
    %v3045 = vpack.c.b16 %v3039, %v3038
    %v3046 = vpack.c.b16 %v3041, %v3040
    %v3047 = vpack.c.b16 %v3043, %v3042
    %v3053 = vsel %vm323, %v3023, 0
    %3055 = vmatprep.subr.bf16.mxu0 0
    %3056 = vmatpush1.bf16.msra.mxu0 %v3044
    %3057 = vmatprep.subr.bf16.mxu0 0
    %3058 = vmatpush1.bf16.msra.mxu0 %v3045
    %3059 = vmatprep.subr.bf16.mxu0 0
    %3060 = vmatpush1.bf16.msra.mxu0 %v3046
    %3061 = vmatprep.subr.bf16.mxu0 0
    %3062 = vmatpush1.bf16.msra.mxu0 %v3047
    %3063 = vmatprep.subr.bf16.mxu0 0
    %3064 = vmatpush1.bf16.msra.mxu0 0
    %3065 = vmatprep.subr.bf16.mxu0 0
    %3066 = vmatpush1.bf16.msra.mxu0 0
    %3067 = vmatprep.subr.bf16.mxu0 0
    %3068 = vmatpush1.bf16.msra.mxu0 0
    %3069 = vmatprep.subr.bf16.mxu0 0
    %3070 = vmatpush1.bf16.msra.mxu0 0
    %3071 = vmatprep.subr.bf16.mxu0 0
    %3072 = vmatpush1.bf16.msra.mxu0 0
    %3073 = vmatprep.subr.bf16.mxu0 0
    %3074 = vmatpush1.bf16.msra.mxu0 0
    %3075 = vmatprep.subr.bf16.mxu0 0
    %3076 = vmatpush1.bf16.msra.mxu0 0
    %3077 = vmatprep.subr.bf16.mxu0 0
    %3078 = vmatpush1.bf16.msra.mxu0 0
    %3079 = vmatprep.subr.bf16.mxu0 0
    %3080 = vmatpush1.bf16.msra.mxu0 0
    %3081 = vmatprep.subr.bf16.mxu0 0
    %3082 = vmatpush1.bf16.msra.mxu0 0
    %3083 = vmatprep.subr.bf16.mxu0 0
    %3084 = vmatpush1.bf16.msra.mxu0 0
    %3085 = vmatprep.subr.bf16.mxu0 0
    %3086 = vmatpush1.bf16.msra.mxu0 0
    %3087 = vmatprep.mubr.bf16.mxu0 0
    %3088 = vmatmul.mubr.bf16.gmra.mrb[0].mxu0 %v3053
    %v3089 = vpop.f32.mrb[0].mxu0
    %v3090 = vadd.f32 %v3027, %v3089
    %v3091 = vpop.f32.mrb[0].mxu0
    %v3092 = vpop.f32.mrb[0].mxu0
    %v3093 = vpop.f32.mrb[0].mxu0
    %3094 = vdwg.mxu0
    %v3095 = vmax.f32 %v3090, 0.0
    %v3096 = vpack.c.bf16 %v3095, %v3095
    %v3097 = vlaneseq
    %v3098 = vshrl.u32 %v3097, 7
    %v3099 = vsub.s32 5, %v3098
    %v3100 = vrot.slane %v28, %v3099
    %v3109 = vunpack.c.l.b16 %v3015
    %v3110 = vunpack.c.l.b16 %v3016
    %v3111 = vunpack.c.l.b16 %v3017
    %v3112 = vunpack.c.l.b16 %v3018
    %v3113 = vunpack.c.l.b16 %v3019
    %v3114 = vunpack.c.l.b16 %v3020
    %v3115 = vunpack.c.l.b16 %v3021
    %v3116 = vunpack.c.l.b16 %v3022
    %v3117 = vpack.c.b16 %v3110, %v3109
    %v3118 = vpack.c.b16 %v3112, %v3111
    %v3119 = vpack.c.b16 %v3114, %v3113
    %v3120 = vpack.c.b16 %v3116, %v3115
    %v3126 = vsel %vm323, %v3096, 0
    %3128 = vmatprep.subr.bf16.mxu0 0
    %3129 = vmatpush1.bf16.msra.mxu0 %v3117
    %3130 = vmatprep.subr.bf16.mxu0 0
    %3131 = vmatpush1.bf16.msra.mxu0 %v3118
    %3132 = vmatprep.subr.bf16.mxu0 0
    %3133 = vmatpush1.bf16.msra.mxu0 %v3119
    %3134 = vmatprep.subr.bf16.mxu0 0
    %3135 = vmatpush1.bf16.msra.mxu0 %v3120
    %3136 = vmatprep.subr.bf16.mxu0 0
    %3137 = vmatpush1.bf16.msra.mxu0 0
    %3138 = vmatprep.subr.bf16.mxu0 0
    %3139 = vmatpush1.bf16.msra.mxu0 0
    %3140 = vmatprep.subr.bf16.mxu0 0
    %3141 = vmatpush1.bf16.msra.mxu0 0
    %3142 = vmatprep.subr.bf16.mxu0 0
    %3143 = vmatpush1.bf16.msra.mxu0 0
    %3144 = vmatprep.subr.bf16.mxu0 0
    %3145 = vmatpush1.bf16.msra.mxu0 0
    %3146 = vmatprep.subr.bf16.mxu0 0
    %3147 = vmatpush1.bf16.msra.mxu0 0
    %3148 = vmatprep.subr.bf16.mxu0 0
    %3149 = vmatpush1.bf16.msra.mxu0 0
    %3150 = vmatprep.subr.bf16.mxu0 0
    %3151 = vmatpush1.bf16.msra.mxu0 0
    %3152 = vmatprep.subr.bf16.mxu0 0
    %3153 = vmatpush1.bf16.msra.mxu0 0
    %3154 = vmatprep.subr.bf16.mxu0 0
    %3155 = vmatpush1.bf16.msra.mxu0 0
    %3156 = vmatprep.subr.bf16.mxu0 0
    %3157 = vmatpush1.bf16.msra.mxu0 0
    %3158 = vmatprep.subr.bf16.mxu0 0
    %3159 = vmatpush1.bf16.msra.mxu0 0
    %3160 = vmatprep.mubr.bf16.mxu0 0
    %3161 = vmatmul.mubr.bf16.gmra.mrb[0].mxu0 %v3126
    %v3162 = vpop.f32.mrb[0].mxu0
    %v3163 = vadd.f32 %v3100, %v3162
    %v3164 = vpop.f32.mrb[0].mxu0
    %v3165 = vpop.f32.mrb[0].mxu0
    %v3166 = vpop.f32.mrb[0].mxu0
    %3167 = vdwg.mxu0
    %vm3168 = vcmask 33792
    %3169 = vst.msk [vmem:[#allocation5] sm:$0x3] %vm3168, %v3163
    // Predicated region
    $region26: #{forward.1} parent=1 // pred_check
      _
    $region27: #{forward.1} parent=1 // pred_check_branch
      %3171 = sbr.rel (0) target = $region29
    $region28: #{forward.1} parent=1 // pred_region
      %s3173 = ssub.s32 32, 32
      %3174 = vsyncadd [#allocation6], %s3173
      %s3176 = sshll.u32 [#allocation5], 4
      %s3177 = int_to_ptr.vmem [resolvable:$true] %s3176
      %3179 = dma.vmem_to_hbm [thread:$0]  %s3177, 32, %s6, [#allocation6]
    $region29: #{forward.1} parent=1 // pred_fallthru
      _
    // Predicated region
    $region30: #{forward.1} parent=1 // pred_check
      _
    $region31: #{forward.1} parent=1 // pred_check_branch
      %3181 = sbr.rel (0) target = $region33
    $region32: #{forward.1} parent=1 // pred_region
      %s3183 = ssub.s32 32, 32
      %3184 = vsyncadd [#allocation8], %s3183
      %s3186 = sshll.u32 [#allocation7], 4
      %s3187 = int_to_ptr.vmem [resolvable:$true] %s3186
      %3189 = dma.vmem_to_hbm [thread:$0]  %s3187, 32, %s7, [#allocation8]
    $region33: #{forward.1} parent=1 // pred_fallthru
      _
    // Predicated region
    $region34: #{forward.1} parent=1 // pred_check
      _
    $region35: #{forward.1} parent=1 // pred_check_branch
      %3191 = sbr.rel (0) target = $region37
    $region36: #{forward.1} parent=1 // pred_region
      %3192 = dma.done [#allocation6], 32
    $region37: #{forward.1} parent=1 // pred_fallthru
      _
    // Predicated region
    $region38: #{forward.1} parent=1 // pred_check
      _
    $region39: #{forward.1} parent=1 // pred_check_branch
      %3194 = sbr.rel (0) target = $region41
    $region40: #{forward.1} parent=1 // pred_region
      %3195 = dma.done [#allocation8], 32
    $region41: #{forward.1} parent=1 // pred_fallthru
      _
    %3196 = vsyncpa [#allocation6], 1
    %3197 = vsyncpa [#allocation8], 1

</llo_original>
